<compile_context>
chip_gen: v7x
topology: tpu7x:2x2x1
jax: 0.10.0
libtpu: 0.0.40
codegen_flags: <defaults>
</compile_context>

<pallas_src>
import functools

import jax
import jax.numpy as jnp
import numpy as np
from jax.experimental import pallas as pl
from jax.experimental.pallas import tpu as pltpu

BN_EPS = 1e-5

# propagate chosen so every MultipleChoiceBlock is Identity (propagate[i][0] == 1);
# with len(propagate)=3 < min(PUT_DOWNSAMPLING)=4 no downsampling block is inserted.
PROPAGATE = [[1, 0, 0], [1, 0, 0], [1, 0, 0]]
PUT_DOWNSAMPLING = [4, 8, 12]


def _check_all_identity(propagate):
    for row in propagate:
        assert row[0] == 1 and sum(row) == 1, (
            "only the Identity candidate of each MultipleChoiceBlock is implemented")


def _round_up(x, m):
    return ((x + m - 1) // m) * m


# ---------------- fused Pallas kernel ----------------

def _fused_kernel(x_ref, w_in_ref, b_in_ref, w_mix_ref, b_mix_ref,
                  w_fc_ref, b_fc_ref, o_ref, acc_ref, *, hw, tm, cmix_chunk):
    t = pl.program_id(1)

    @pl.when(t == 0)
    def _():
        acc_ref[...] = jnp.zeros_like(acc_ref)

    # in_conv: 3x3 conv as im2col matmul + folded-BN bias + ReLU6 (bf16 MXU, f32 acc).
    h = jnp.dot(x_ref[0], w_in_ref[...], preferred_element_type=jnp.float32)
    h = jnp.clip(h + b_in_ref[...], 0.0, 6.0)
    h_bf16 = h.astype(jnp.bfloat16)          # hoisted: reused by every cmix chunk

    # blocks_list: every MultipleChoiceBlock.forward sums its selected candidates;
    # under PROPAGATE only Identity is selected -> output = h (no-op, stays in VMEM).

    # Row-validity mask: only compiled when HW is ragged w.r.t. tm. Padded rows become
    # nonzero after bias+ReLU6 and must be zeroed before the pooling reduction.
    ragged = (hw % tm) != 0
    if ragged:
        row = jax.lax.broadcasted_iota(jnp.int32, (tm, 1), 0)
        row_valid = row < (hw - t * tm)

    cmix = acc_ref.shape[1]
    n_groups = tm // 8
    for c0 in range(0, cmix, cmix_chunk):
        cw = min(cmix_chunk, cmix - c0)
        # features_mixing slice: 1x1 conv + folded-BN bias + ReLU6 (K=32 on the MXU).
        y = jnp.dot(h_bf16, w_mix_ref[:, c0:c0 + cw],
                    preferred_element_type=jnp.float32)
        y = jnp.clip(y + b_mix_ref[:, c0:c0 + cw], 0.0, 6.0)
        if ragged:
            y = jnp.where(row_valid, y, 0.0)
        # AdaptiveAvgPool2d partial sum on the VPU (not the MXU): tm -> 8 rows keeps
        # the accumulator stores unmasked; the 8 -> 1 collapse and the exact f32 1/HW
        # scale happen once per batch row in the epilogue.
        acc_ref[:, c0:c0 + cw] += jnp.sum(y.reshape(n_groups, 8, cw), axis=0)

    # out1 (pool done) + flatten + out2 Linear: once per batch row, lane-dense output.
    @pl.when(t == pl.num_programs(1) - 1)
    def _():
        pooled = jnp.sum(acc_ref[...], axis=0, keepdims=True) * (1.0 / hw)
        logits = jnp.dot(pooled.astype(jnp.bfloat16), w_fc_ref[...],
                         preferred_element_type=jnp.float32) + b_fc_ref[...]
        o_ref[...] = logits.reshape(o_ref.shape)


def fused_supernet_call(patches, w_in, b_in, w_mix, b_mix, w_fc_pad, b_fc_pad,
                        *, hw, tm, cmix_chunk=512,
                        vmem_limit_bytes=48 * 1024 * 1024):
    n, hw_pad, k_in = patches.shape
    c1 = w_in.shape[1]
    cmix = w_mix.shape[1]
    nc_pad = w_fc_pad.shape[1]
    s_tiles = hw_pad // tm

    kernel = functools.partial(_fused_kernel, hw=hw, tm=tm, cmix_chunk=cmix_chunk)
    const = lambda n_, t_: (0, 0)

    flops = 2 * n * hw_pad * (k_in * c1 + c1 * cmix) + 2 * n * cmix * nc_pad
    bytes_accessed = (int(patches.size) * 2
                      + (int(w_in.size) + int(w_mix.size) + int(w_fc_pad.size)) * 2
                      + (int(b_in.size) + int(b_mix.size) + int(b_fc_pad.size)) * 4
                      + n * nc_pad * 4)

    out = pl.pallas_call(
        kernel,
        out_shape=jax.ShapeDtypeStruct((n, 1, nc_pad), jnp.float32),
        grid_spec=pltpu.PrefetchScalarGridSpec(
            num_scalar_prefetch=0,
            grid=(n, s_tiles),
            in_specs=[
                pl.BlockSpec((1, tm, k_in), lambda n_, t_: (n_, t_, 0)),
                pl.BlockSpec((k_in, c1), const),       # resident, folded-BN
                pl.BlockSpec((1, c1), const),
                pl.BlockSpec((c1, cmix), const),       # resident, folded-BN
                pl.BlockSpec((1, cmix), const),
                pl.BlockSpec((cmix, nc_pad), const),   # resident bf16 FC weight
                pl.BlockSpec((1, nc_pad), const),
            ],
            out_specs=pl.BlockSpec((1, 1, nc_pad), lambda n_, t_: (n_, 0, 0)),
            scratch_shapes=[pltpu.VMEM((8, cmix), jnp.float32)],
        ),
        compiler_params=pltpu.CompilerParams(
            dimension_semantics=("parallel", "arbitrary"),
            vmem_limit_bytes=vmem_limit_bytes),
        cost_estimate=pl.CostEstimate(flops=flops, transcendentals=0,
                                      bytes_accessed=bytes_accessed),
    )(patches, w_in, b_in, w_mix, b_mix, w_fc_pad, b_fc_pad)
    return out[:, 0, :]


# ---------------- plain-JAX glue ----------------

def fold_bn(gamma, beta, mean, var):
    scale = gamma * jax.lax.rsqrt(var + BN_EPS)
    bias = beta - mean * scale
    return scale, bias


def extract_patches_3x3(x_nhwc):
    """im2col for a 3x3 / stride-1 / pad-1 cross-correlation (glue, not hot path)."""
    N, H, W, C = x_nhwc.shape
    xp = jnp.pad(x_nhwc, ((0, 0), (1, 1), (1, 1), (0, 0)))
    cols = [xp[:, dy:dy + H, dx:dx + W, :] for dy in range(3) for dx in range(3)]
    patches = jnp.concatenate(cols, axis=-1)              # (N, H, W, 9C)
    return patches.reshape(N, H * W, 9 * C)


def init_params(key, cin=3, c1=32, cmix=1280, num_classes=10):
    ks = jax.random.split(key, 12)
    p = {}
    p['w_in'] = 0.1 * jax.random.normal(ks[0], (3, 3, cin, c1), jnp.float32)
    p['g_in'] = 1.0 + 0.1 * jax.random.normal(ks[1], (c1,), jnp.float32)
    p['beta_in'] = 0.1 * jax.random.normal(ks[2], (c1,), jnp.float32)
    p['m_in'] = 0.05 * jax.random.normal(ks[3], (c1,), jnp.float32)
    p['v_in'] = 0.5 + jnp.abs(jax.random.normal(ks[4], (c1,), jnp.float32))
    p['w_mix'] = 0.05 * jax.random.normal(ks[5], (c1, cmix), jnp.float32)
    p['g_mix'] = 1.0 + 0.1 * jax.random.normal(ks[6], (cmix,), jnp.float32)
    p['beta_mix'] = 0.1 * jax.random.normal(ks[7], (cmix,), jnp.float32)
    p['m_mix'] = 0.05 * jax.random.normal(ks[8], (cmix,), jnp.float32)
    p['v_mix'] = 0.5 + jnp.abs(jax.random.normal(ks[9], (cmix,), jnp.float32))
    p['w_fc'] = 0.02 * jax.random.normal(ks[10], (cmix, num_classes), jnp.float32)
    p['b_fc'] = 0.02 * jax.random.normal(ks[11], (num_classes,), jnp.float32)
    return p


def single_path_supernet_forward(x_nchw, params, tm_max=1024, cmix_chunk=512):
    _check_all_identity(PROPAGATE)
    N, Cin, H, W = x_nchw.shape
    HW = H * W
    x = jnp.transpose(x_nchw, (0, 2, 3, 1))                       # NCHW -> NHWC
    patches = extract_patches_3x3(x)                              # (N, HW, 9*Cin)

    # spatial tiling: tm is a multiple of 256 (aligned, unmasked blocks), capped at
    # tm_max; ragged tail is zero-padded here and masked inside the kernel.
    assert tm_max % 256 == 0
    tm = min(tm_max, _round_up(HW, 256))
    s_tiles = pl.cdiv(HW, tm)
    hw_pad = s_tiles * tm
    if hw_pad != HW:
        patches = jnp.pad(patches, ((0, 0), (0, hw_pad - HW), (0, 0)))

    # fold BN scale into the conv weights; bf16 operands for the MXU dots
    s_in, b_in = fold_bn(params['g_in'], params['beta_in'],
                         params['m_in'], params['v_in'])
    w_in_eff = (params['w_in'].reshape(9 * Cin, -1) * s_in[None, :]).astype(jnp.bfloat16)
    s_mx, b_mx = fold_bn(params['g_mix'], params['beta_mix'],
                         params['m_mix'], params['v_mix'])
    w_mix_eff = (params['w_mix'] * s_mx[None, :]).astype(jnp.bfloat16)

    # pad cmix to a lane multiple (zero columns are exactly zero after bias+ReLU6 and
    # multiply zero FC rows, so they do not change the result)
    cmix = w_mix_eff.shape[1]
    cmix_pad = _round_up(cmix, 128)
    w_fc = params['w_fc']
    b_mx_row = b_mx.reshape(1, -1)
    if cmix_pad != cmix:
        w_mix_eff = jnp.pad(w_mix_eff, ((0, 0), (0, cmix_pad - cmix)))
        b_mx_row = jnp.pad(b_mx_row, ((0, 0), (0, cmix_pad - cmix)))
        w_fc = jnp.pad(w_fc, ((0, cmix_pad - cmix), (0, 0)))

    # pad the FC to a lane-dense 128-wide output slab (sliced back below); bf16 weight
    nc = params['w_fc'].shape[1]
    nc_pad = _round_up(nc, 128)
    w_fc_pad = jnp.pad(w_fc, ((0, 0), (0, nc_pad - nc))).astype(jnp.bfloat16)
    b_fc_pad = jnp.pad(params['b_fc'], (0, nc_pad - nc)).reshape(1, nc_pad)

    out = fused_supernet_call(
        patches.astype(jnp.bfloat16), w_in_eff, b_in.reshape(1, -1),
        w_mix_eff, b_mx_row, w_fc_pad, b_fc_pad,
        hw=HW, tm=tm, cmix_chunk=cmix_chunk)
    return out[:, :nc]


def reference_forward(x_nchw, params):
    """Pure-JAX f32 reference of the same forward (for a sanity check)."""
    N, Cin, H, W = x_nchw.shape
    x = jnp.transpose(x_nchw, (0, 2, 3, 1))
    patches = extract_patches_3x3(x).reshape(N * H * W, 9 * Cin)
    s_in, b_in = fold_bn(params['g_in'], params['beta_in'],
                         params['m_in'], params['v_in'])
    h = jnp.clip(patches @ (params['w_in'].reshape(9 * Cin, -1) * s_in[None, :])
                 + b_in, 0.0, 6.0)
    s_mx, b_mx = fold_bn(params['g_mix'], params['beta_mix'],
                         params['m_mix'], params['v_mix'])
    y = jnp.clip(h @ (params['w_mix'] * s_mx[None, :]) + b_mx, 0.0, 6.0)
    pooled = y.reshape(N, H * W, -1).mean(axis=1)
    return pooled @ params['w_fc'] + params['b_fc']


if __name__ == "__main__":
    key = jax.random.PRNGKey(0)
    kx, kp = jax.random.split(key)
    x = jax.random.normal(kx, (2, 3, 16, 16), jnp.float32)        # NCHW like PyTorch
    params = init_params(kp)

    fwd = jax.jit(single_path_supernet_forward)
    out = fwd(x, params)
    jax.block_until_ready(out)
    assert out.shape == (2, 10), out.shape

    ref = reference_forward(x, params)
    np.testing.assert_allclose(np.asarray(out), np.asarray(ref), rtol=2e-2, atol=2e-2)
    print("KERNEL_OK")
</pallas_src>

<mosaic_0001>
module attributes {stable_mosaic.version = 11 : i64} {
  func.func @_fused_kernel(%arg0: i32, %arg1: i32, %arg2: memref<1x256x27xbf16, #tpu.memory_space<vmem>>, %arg3: memref<27x32xbf16, #tpu.memory_space<vmem>>, %arg4: memref<1x32xf32, #tpu.memory_space<vmem>>, %arg5: memref<32x1280xbf16, #tpu.memory_space<vmem>>, %arg6: memref<1x1280xf32, #tpu.memory_space<vmem>>, %arg7: memref<1280x128xbf16, #tpu.memory_space<vmem>>, %arg8: memref<1x128xf32, #tpu.memory_space<vmem>>, %arg9: memref<1x1x128xf32, #tpu.memory_space<vmem>>, %arg10: memref<8x1280xf32, #tpu.memory_space<vmem>>) attributes {dimension_semantics = [#tpu.dimension_semantics<parallel>, #tpu.dimension_semantics<arbitrary>], iteration_bounds = array<i64: 2, 1>, scalar_prefetch = 0 : i64, scratch_operands = 1 : i64, tpu.core_type = #tpu.core_type<tc>, window_params = [{transform_indices = @transform_0, window_bounds = array<i64: 1, 256, 27>}, {pipeline_mode = #tpu.pipeline_mode<synchronous>, transform_indices = @transform_1, window_bounds = array<i64: 27, 32>}, {pipeline_mode = #tpu.pipeline_mode<synchronous>, transform_indices = @transform_2, window_bounds = array<i64: 1, 32>}, {pipeline_mode = #tpu.pipeline_mode<synchronous>, transform_indices = @transform_3, window_bounds = array<i64: 32, 1280>}, {pipeline_mode = #tpu.pipeline_mode<synchronous>, transform_indices = @transform_4, window_bounds = array<i64: 1, 1280>}, {pipeline_mode = #tpu.pipeline_mode<synchronous>, transform_indices = @transform_5, window_bounds = array<i64: 1280, 128>}, {pipeline_mode = #tpu.pipeline_mode<synchronous>, transform_indices = @transform_6, window_bounds = array<i64: 1, 128>}, {transform_indices = @transform_7, window_bounds = array<i64: 1, 1, 128>}]} {
    %c0_i32 = arith.constant 0 : i32
    %0 = arith.cmpi eq, %arg1, %c0_i32 : i32
    %1 = arith.extui %0 : i1 to i32
    %c0_i32_0 = arith.constant 0 : i32
    %2 = arith.cmpi ne, %1, %c0_i32_0 : i32
    scf.if %2 {
      %cst_45 = arith.constant 0.000000e+00 : f32
      %60 = vector.broadcast %cst_45 : f32 to vector<8x1280xf32>
      %c0_46 = arith.constant 0 : index
      %c0_47 = arith.constant 0 : index
      %61 = vector.load %arg10[%c0_46, %c0_47] : memref<8x1280xf32, #tpu.memory_space<vmem>>, vector<8x1280xf32>
      tpu.vector_store %arg10[%c0_46, %c0_47], %60 {strides = array<i32>} : memref<8x1280xf32, #tpu.memory_space<vmem>>, vector<8x1280xf32>,
    } else {
    }
    %c0 = arith.constant 0 : index
    %c0_1 = arith.constant 0 : index
    %c0_2 = arith.constant 0 : index
    %3 = vector.load %arg2[%c0, %c0_1, %c0_2] : memref<1x256x27xbf16, #tpu.memory_space<vmem>>, vector<1x256x27xbf16>
    %4 = vector.shape_cast %3 : vector<1x256x27xbf16> to vector<256x27xbf16>
    %c0_3 = arith.constant 0 : index
    %c0_4 = arith.constant 0 : index
    %5 = vector.load %arg3[%c0_3, %c0_4] : memref<27x32xbf16, #tpu.memory_space<vmem>>, vector<27x32xbf16>
    %cst = arith.constant dense<0.000000e+00> : vector<256x32xf32>
    %6 = tpu.matmul %4, %5, %cst {dimension_numbers = #tpu.dot_dimension_numbers<[1], [0], [0], [1], [0, 0, 1, 1], [], []>} : vector<256x27xbf16>, vector<27x32xbf16>, vector<256x32xf32> -> vector<256x32xf32>
    %c0_5 = arith.constant 0 : index
    %c0_6 = arith.constant 0 : index
    %7 = vector.load %arg4[%c0_5, %c0_6] : memref<1x32xf32, #tpu.memory_space<vmem>>, vector<1x32xf32>
    %8 = vector.broadcast %7 : vector<1x32xf32> to vector<256x32xf32>
    %9 = arith.addf %6, %8 : vector<256x32xf32>
    %cst_7 = arith.constant 0.000000e+00 : f32
    %cst_8 = arith.constant 6.000000e+00 : f32
    %10 = vector.broadcast %cst_7 : f32 to vector<256x32xf32>
    %11 = arith.maximumf %10, %9 : vector<256x32xf32>
    %12 = vector.broadcast %cst_8 : f32 to vector<256x32xf32>
    %13 = arith.minimumf %12, %11 : vector<256x32xf32>
    %14 = arith.truncf %13 : vector<256x32xf32> to vector<256x32xbf16>
    %c0_9 = arith.constant 0 : index
    %c0_10 = arith.constant 0 : index
    %15 = vector.load %arg5[%c0_9, %c0_10] : memref<32x1280xbf16, #tpu.memory_space<vmem>>, vector<32x512xbf16>
    %cst_11 = arith.constant dense<0.000000e+00> : vector<256x512xf32>
    %16 = tpu.matmul %14, %15, %cst_11 {dimension_numbers = #tpu.dot_dimension_numbers<[1], [0], [0], [1], [0, 0, 1, 1], [], []>} : vector<256x32xbf16>, vector<32x512xbf16>, vector<256x512xf32> -> vector<256x512xf32>
    %c0_12 = arith.constant 0 : index
    %c0_13 = arith.constant 0 : index
    %17 = vector.load %arg6[%c0_12, %c0_13] : memref<1x1280xf32, #tpu.memory_space<vmem>>, vector<1x512xf32>
    %18 = vector.broadcast %17 : vector<1x512xf32> to vector<256x512xf32>
    %19 = arith.addf %16, %18 : vector<256x512xf32>
    %cst_14 = arith.constant 0.000000e+00 : f32
    %cst_15 = arith.constant 6.000000e+00 : f32
    %20 = vector.broadcast %cst_14 : f32 to vector<256x512xf32>
    %21 = arith.maximumf %20, %19 : vector<256x512xf32>
    %22 = vector.broadcast %cst_15 : f32 to vector<256x512xf32>
    %23 = arith.minimumf %22, %21 : vector<256x512xf32>
    %c0_16 = arith.constant 0 : index
    %c0_17 = arith.constant 0 : index
    %24 = vector.load %arg10[%c0_16, %c0_17] : memref<8x1280xf32, #tpu.memory_space<vmem>>, vector<8x512xf32>
    %25 = vector.shape_cast %23 : vector<256x512xf32> to vector<32x8x512xf32>
    %cst_18 = arith.constant dense<0.000000e+00> : vector<8x512xf32>
    %26 = vector.multi_reduction <add>, %25, %cst_18 [0] : vector<32x8x512xf32> to vector<8x512xf32>
    %27 = arith.addf %24, %26 : vector<8x512xf32>
    %c0_19 = arith.constant 0 : index
    %c0_20 = arith.constant 0 : index
    %28 = vector.load %arg10[%c0_19, %c0_20] : memref<8x1280xf32, #tpu.memory_space<vmem>>, vector<8x512xf32>
    tpu.vector_store %arg10[%c0_19, %c0_20], %27 {strides = array<i32>} : memref<8x1280xf32, #tpu.memory_space<vmem>>, vector<8x512xf32>,
    %c0_21 = arith.constant 0 : index
    %c512 = arith.constant 512 : index
    %29 = vector.load %arg5[%c0_21, %c512] : memref<32x1280xbf16, #tpu.memory_space<vmem>>, vector<32x512xbf16>
    %cst_22 = arith.constant dense<0.000000e+00> : vector<256x512xf32>
    %30 = tpu.matmul %14, %29, %cst_22 {dimension_numbers = #tpu.dot_dimension_numbers<[1], [0], [0], [1], [0, 0, 1, 1], [], []>} : vector<256x32xbf16>, vector<32x512xbf16>, vector<256x512xf32> -> vector<256x512xf32>
    %c0_23 = arith.constant 0 : index
    %c512_24 = arith.constant 512 : index
    %31 = vector.load %arg6[%c0_23, %c512_24] : memref<1x1280xf32, #tpu.memory_space<vmem>>, vector<1x512xf32>
    %32 = vector.broadcast %31 : vector<1x512xf32> to vector<256x512xf32>
    %33 = arith.addf %30, %32 : vector<256x512xf32>
    %cst_25 = arith.constant 0.000000e+00 : f32
    %cst_26 = arith.constant 6.000000e+00 : f32
    %34 = vector.broadcast %cst_25 : f32 to vector<256x512xf32>
    %35 = arith.maximumf %34, %33 : vector<256x512xf32>
    %36 = vector.broadcast %cst_26 : f32 to vector<256x512xf32>
    %37 = arith.minimumf %36, %35 : vector<256x512xf32>
    %c0_27 = arith.constant 0 : index
    %c512_28 = arith.constant 512 : index
    %38 = vector.load %arg10[%c0_27, %c512_28] : memref<8x1280xf32, #tpu.memory_space<vmem>>, vector<8x512xf32>
    %39 = vector.shape_cast %37 : vector<256x512xf32> to vector<32x8x512xf32>
    %cst_29 = arith.constant dense<0.000000e+00> : vector<8x512xf32>
    %40 = vector.multi_reduction <add>, %39, %cst_29 [0] : vector<32x8x512xf32> to vector<8x512xf32>
    %41 = arith.addf %38, %40 : vector<8x512xf32>
    %c0_30 = arith.constant 0 : index
    %c512_31 = arith.constant 512 : index
    %42 = vector.load %arg10[%c0_30, %c512_31] : memref<8x1280xf32, #tpu.memory_space<vmem>>, vector<8x512xf32>
    tpu.vector_store %arg10[%c0_30, %c512_31], %41 {strides = array<i32>} : memref<8x1280xf32, #tpu.memory_space<vmem>>, vector<8x512xf32>,
    %c0_32 = arith.constant 0 : index
    %c1024 = arith.constant 1024 : index
    %43 = vector.load %arg5[%c0_32, %c1024] : memref<32x1280xbf16, #tpu.memory_space<vmem>>, vector<32x256xbf16>
    %cst_33 = arith.constant dense<0.000000e+00> : vector<256x256xf32>
    %44 = tpu.matmul %14, %43, %cst_33 {dimension_numbers = #tpu.dot_dimension_numbers<[1], [0], [0], [1], [0, 0, 1, 1], [], []>} : vector<256x32xbf16>, vector<32x256xbf16>, vector<256x256xf32> -> vector<256x256xf32>
    %c0_34 = arith.constant 0 : index
    %c1024_35 = arith.constant 1024 : index
    %45 = vector.load %arg6[%c0_34, %c1024_35] : memref<1x1280xf32, #tpu.memory_space<vmem>>, vector<1x256xf32>
    %46 = vector.broadcast %45 : vector<1x256xf32> to vector<256x256xf32>
    %47 = arith.addf %44, %46 : vector<256x256xf32>
    %cst_36 = arith.constant 0.000000e+00 : f32
    %cst_37 = arith.constant 6.000000e+00 : f32
    %48 = vector.broadcast %cst_36 : f32 to vector<256x256xf32>
    %49 = arith.maximumf %48, %47 : vector<256x256xf32>
    %50 = vector.broadcast %cst_37 : f32 to vector<256x256xf32>
    %51 = arith.minimumf %50, %49 : vector<256x256xf32>
    %c0_38 = arith.constant 0 : index
    %c1024_39 = arith.constant 1024 : index
    %52 = vector.load %arg10[%c0_38, %c1024_39] : memref<8x1280xf32, #tpu.memory_space<vmem>>, vector<8x256xf32>
    %53 = vector.shape_cast %51 : vector<256x256xf32> to vector<32x8x256xf32>
    %cst_40 = arith.constant dense<0.000000e+00> : vector<8x256xf32>
    %54 = vector.multi_reduction <add>, %53, %cst_40 [0] : vector<32x8x256xf32> to vector<8x256xf32>
    %55 = arith.addf %52, %54 : vector<8x256xf32>
    %c0_41 = arith.constant 0 : index
    %c1024_42 = arith.constant 1024 : index
    %56 = vector.load %arg10[%c0_41, %c1024_42] : memref<8x1280xf32, #tpu.memory_space<vmem>>, vector<8x256xf32>
    tpu.vector_store %arg10[%c0_41, %c1024_42], %55 {strides = array<i32>} : memref<8x1280xf32, #tpu.memory_space<vmem>>, vector<8x256xf32>,
    %c0_i32_43 = arith.constant 0 : i32
    %57 = arith.cmpi eq, %arg1, %c0_i32_43 : i32
    %58 = arith.extui %57 : i1 to i32
    %c0_i32_44 = arith.constant 0 : i32
    %59 = arith.cmpi ne, %58, %c0_i32_44 : i32
    scf.if %59 {
      %c0_45 = arith.constant 0 : index
      %c0_46 = arith.constant 0 : index
      %60 = vector.load %arg10[%c0_45, %c0_46] : memref<8x1280xf32, #tpu.memory_space<vmem>>, vector<8x1280xf32>
      %cst_47 = arith.constant dense<0.000000e+00> : vector<1280xf32>
      %61 = vector.multi_reduction <add>, %60, %cst_47 [0] : vector<8x1280xf32> to vector<1280xf32>
      %62 = vector.shape_cast %61 : vector<1280xf32> to vector<1x1280xf32>
      %cst_48 = arith.constant 3.906250e-03 : f32
      %63 = vector.broadcast %cst_48 : f32 to vector<1x1280xf32>
      %64 = arith.mulf %62, %63 : vector<1x1280xf32>
      %65 = arith.truncf %64 : vector<1x1280xf32> to vector<1x1280xbf16>
      %c0_49 = arith.constant 0 : index
      %c0_50 = arith.constant 0 : index
      %66 = vector.load %arg7[%c0_49, %c0_50] : memref<1280x128xbf16, #tpu.memory_space<vmem>>, vector<1280x128xbf16>
      %cst_51 = arith.constant dense<0.000000e+00> : vector<1x128xf32>
      %67 = tpu.matmul %65, %66, %cst_51 {dimension_numbers = #tpu.dot_dimension_numbers<[1], [0], [0], [1], [0, 0, 1, 1], [], []>} : vector<1x1280xbf16>, vector<1280x128xbf16>, vector<1x128xf32> -> vector<1x128xf32>
      %c0_52 = arith.constant 0 : index
      %c0_53 = arith.constant 0 : index
      %68 = vector.load %arg8[%c0_52, %c0_53] : memref<1x128xf32, #tpu.memory_space<vmem>>, vector<1x128xf32>
      %69 = arith.addf %67, %68 : vector<1x128xf32>
      %70 = vector.shape_cast %69 : vector<1x128xf32> to vector<1x1x128xf32>
      %c0_54 = arith.constant 0 : index
      %c0_55 = arith.constant 0 : index
      %c0_56 = arith.constant 0 : index
      %71 = vector.load %arg9[%c0_54, %c0_55, %c0_56] : memref<1x1x128xf32, #tpu.memory_space<vmem>>, vector<1x1x128xf32>
      tpu.vector_store %arg9[%c0_54, %c0_55, %c0_56], %70 {strides = array<i32>} : memref<1x1x128xf32, #tpu.memory_space<vmem>>, vector<1x1x128xf32>,
    } else {
    }
    return
  }
  func.func @transform_0(%arg0: i32, %arg1: i32) -> (i32, i32, i32) {
    %c0_i32 = arith.constant 0 : i32
    %c0_i32_0 = arith.constant 0 : i32
    return %arg0, %arg1, %c0_i32 : i32, i32, i32
  }
  func.func @transform_1(%arg0: i32, %arg1: i32) -> (i32, i32) {
    %c0_i32 = arith.constant 0 : i32
    %c0_i32_0 = arith.constant 0 : i32
    %c0_i32_1 = arith.constant 0 : i32
    return %c0_i32, %c0_i32_0 : i32, i32
  }
  func.func @transform_2(%arg0: i32, %arg1: i32) -> (i32, i32) {
    %c0_i32 = arith.constant 0 : i32
    %c0_i32_0 = arith.constant 0 : i32
    %c0_i32_1 = arith.constant 0 : i32
    return %c0_i32, %c0_i32_0 : i32, i32
  }
  func.func @transform_3(%arg0: i32, %arg1: i32) -> (i32, i32) {
    %c0_i32 = arith.constant 0 : i32
    %c0_i32_0 = arith.constant 0 : i32
    %c0_i32_1 = arith.constant 0 : i32
    return %c0_i32, %c0_i32_0 : i32, i32
  }
  func.func @transform_4(%arg0: i32, %arg1: i32) -> (i32, i32) {
    %c0_i32 = arith.constant 0 : i32
    %c0_i32_0 = arith.constant 0 : i32
    %c0_i32_1 = arith.constant 0 : i32
    return %c0_i32, %c0_i32_0 : i32, i32
  }
  func.func @transform_5(%arg0: i32, %arg1: i32) -> (i32, i32) {
    %c0_i32 = arith.constant 0 : i32
    %c0_i32_0 = arith.constant 0 : i32
    %c0_i32_1 = arith.constant 0 : i32
    return %c0_i32, %c0_i32_0 : i32, i32
  }
  func.func @transform_6(%arg0: i32, %arg1: i32) -> (i32, i32) {
    %c0_i32 = arith.constant 0 : i32
    %c0_i32_0 = arith.constant 0 : i32
    %c0_i32_1 = arith.constant 0 : i32
    return %c0_i32, %c0_i32_0 : i32, i32
  }
  func.func @transform_7(%arg0: i32, %arg1: i32) -> (i32, i32, i32) {
    %c0_i32 = arith.constant 0 : i32
    %c0_i32_0 = arith.constant 0 : i32
    %c0_i32_1 = arith.constant 0 : i32
    return %arg0, %c0_i32, %c0_i32_0 : i32, i32, i32
  }
}

</mosaic_0001>

<llo_original>
// kernel: single_path_supernet_forward.1
$region0: #{single_path_supernet_forward.1}
  #allocation0 [shape = 'u32[]', space=smem, size = 0x4, offset = 0x4, fixed_abs, tag = 'smem constant byte address 0x4 - core index']
  #allocation1 [shape = 'u32[144,128]{1,0:T(1,128)}', space=vmem, size = 0x12000, scoped, tag = 'internal scratch']
  #allocation2 [shape = 'f32[8,1280]{1,0:T(8,128)}', space=vmem, size = 0xa000, scoped, tag = 'scratch operand']
  %s0 = inlined_call_operand.vmem [shape: bf16[2,256,27], index: 0, kind: input, shape index: {}]
  %s1 = inlined_call_operand.vmem [shape: bf16[27,32], index: 1, kind: input, shape index: {}]
  %s2 = inlined_call_operand.vmem [shape: f32[1,32], index: 2, kind: input, shape index: {}]
  %s3 = inlined_call_operand.vmem [shape: bf16[32,1280], index: 3, kind: input, shape index: {}]
  %s4 = inlined_call_operand.vmem [shape: f32[1,1280], index: 4, kind: input, shape index: {}]
  %s5 = inlined_call_operand.vmem [shape: bf16[1280,128], index: 5, kind: input, shape index: {}]
  %s6 = inlined_call_operand.vmem [shape: f32[1,128], index: 6, kind: input, shape index: {}]
  %s7 = inlined_call_operand.hbm [shape: f32[2,1,128], index: 7, kind: output, shape index: {}]
  %s8 = sld [smem:[#allocation0]]
  $region69: #{single_path_supernet_forward.1} parent=0
    _
  %s10 = ssub.s32 1, %s8
  %s11 = scalar_select 0, %s10, %s8
  $region1: #{single_path_supernet_forward.1} parent=0
    #allocation3 [shape = 'u8[1024]{0}', space=vmem, size = 0x400, scoped, tag = 'output window, operand 0']
    #allocation4 [shape = 's32[2]{0}', space=sflag, size = 0x8, scoped, tag = 'scoped memory for single_path_supernet_forward.1']
    %12 = vsyncpa [#allocation4], 0
    %s13 = scalar_lea.sflag [#allocation4], 1
    %14 = vsyncpa %s13, 0
    loop: start=0, step=1, limit=4
    $region2: #{single_path_supernet_forward.1} parent=1 // loop_pre_header
      _
    $region3: #{single_path_supernet_forward.1} parent=1 // loop_header
      %s16 = sphi 0, %s20
      %p17 = scmp.ge.s32.totalorder %s16, 4
      %s23 = sphi 0, %s35
      %s24 = sphi 0, %s31
      %s25 = sphi 0, %s23
      %s26 = sphi 0, %s24
      %s27 = sphi 0, %s25
      %s28 = sphi 0, %s26
      %s40 = sphi 0, %s42
      %s43 = sphi 0, %s40
      %s44 = sphi 0, %s43
      %s60 = sphi 0, %s44
      %s64 = sphi 0, %s64
      %s66 = sphi 0, %s64
      %s67 = sphi 0, %s66
      %s81 = sphi 0, %s67
      %s85 = sphi 0, %s85
      %s87 = sphi 0, %s85
      %s88 = sphi 0, %s87
      %s102 = sphi 0, %s88
      %s106 = sphi 0, %s106
      %s108 = sphi 0, %s106
      %s109 = sphi 0, %s108
      %s123 = sphi 0, %s109
      %s127 = sphi 0, %s127
      %s129 = sphi 0, %s127
      %s130 = sphi 0, %s129
      %s144 = sphi 0, %s130
      %s148 = sphi 0, %s148
      %s150 = sphi 0, %s148
      %s151 = sphi 0, %s150
      %s165 = sphi 0, %s151
      %s169 = sphi 0, %s169
      %s171 = sphi 0, %s169
      %s172 = sphi 0, %s171
      %s186 = sphi 0, %s172
      %s192 = sphi 0, %s194
      %s195 = sphi 0, %s192
      %s196 = sphi 0, %s195
      %s212 = sphi 0, %s196
    $region4: #{single_path_supernet_forward.1} parent=1 // loop_header_branch
      %19 = sbr.rel (%p17) target = $region8
    $region5: #{single_path_supernet_forward.1} parent=1 // loop_body
      %s21 = ssub.s32 %s16, 1
      %s22 = ssub.s32 %s16, 2
      %s29 = sadd.s32 1, %s24
      %p30 = scmp.ge.s32.totalorder %s29, 1
      %s31 = scalar_select %p30, 0, %s29
      %s32 = sadd.s32 1, %s23
      %s33 = scalar_select %p30, %s32, %s23
      %p34 = scmp.ge.s32.totalorder %s33, 2
      %s35 = scalar_select %p34, 0, %s33
      %s36 = ssub.s32 %s23, %s35
      %s37 = ssub.s32 %s24, %s31
      %s38 = sor.u32 %s36, %s37
      %p39 = scmp.eq.s32.totalorder %s38, 0
      %s41 = sadd.s32 %s40, 1
      %s42 = scalar_select %p39, %s40, %s41
      %p45 = pneg %p39
      %p46 = scmp.eq.s32.totalorder %s16, 1
      %p47 = por %p45, %p46
      %p48 = scmp.ne.s32.totalorder %s40, %s43
      %p49 = scmp.eq.s32.totalorder %s16, 0
      %p50 = por %p48, %p49
      %p51 = scmp.ne.s32.totalorder %s40, %s43
      %p52 = scmp.eq.s32.totalorder %s21, 1
      %p53 = por %p51, %p52
      %p54 = scmp.ne.s32.totalorder %s43, %s44
      %p55 = scmp.eq.s32.totalorder %s21, 0
      %p56 = por %p54, %p55
      %p57 = scmp.ne.s32.totalorder %s43, %s44
      %p58 = scmp.eq.s32.totalorder %s22, 1
      %p59 = por %p57, %p58
      %p61 = scmp.ne.s32.totalorder %s44, %s60
      %p62 = scmp.eq.s32.totalorder %s22, 0
      %p63 = por %p61, %p62
      %s65 = sadd.s32 %s64, 1
      %p68 = scmp.eq.s32.totalorder %s16, 1
      %p69 = scmp.ne.s32.totalorder %s64, %s66
      %p70 = scmp.eq.s32.totalorder %s16, 0
      %p71 = por %p69, %p70
      %p72 = scmp.ne.s32.totalorder %s64, %s66
      %p73 = scmp.eq.s32.totalorder %s21, 1
      %p74 = por %p72, %p73
      %p75 = scmp.ne.s32.totalorder %s66, %s67
      %p76 = scmp.eq.s32.totalorder %s21, 0
      %p77 = por %p75, %p76
      %p78 = scmp.ne.s32.totalorder %s66, %s67
      %p79 = scmp.eq.s32.totalorder %s22, 1
      %p80 = por %p78, %p79
      %p82 = scmp.ne.s32.totalorder %s67, %s81
      %p83 = scmp.eq.s32.totalorder %s22, 0
      %p84 = por %p82, %p83
      %s86 = sadd.s32 %s85, 1
      %p89 = scmp.eq.s32.totalorder %s16, 1
      %p90 = scmp.ne.s32.totalorder %s85, %s87
      %p91 = scmp.eq.s32.totalorder %s16, 0
      %p92 = por %p90, %p91
      %p93 = scmp.ne.s32.totalorder %s85, %s87
      %p94 = scmp.eq.s32.totalorder %s21, 1
      %p95 = por %p93, %p94
      %p96 = scmp.ne.s32.totalorder %s87, %s88
      %p97 = scmp.eq.s32.totalorder %s21, 0
      %p98 = por %p96, %p97
      %p99 = scmp.ne.s32.totalorder %s87, %s88
      %p100 = scmp.eq.s32.totalorder %s22, 1
      %p101 = por %p99, %p100
      %p103 = scmp.ne.s32.totalorder %s88, %s102
      %p104 = scmp.eq.s32.totalorder %s22, 0
      %p105 = por %p103, %p104
      %s107 = sadd.s32 %s106, 1
      %p110 = scmp.eq.s32.totalorder %s16, 1
      %p111 = scmp.ne.s32.totalorder %s106, %s108
      %p112 = scmp.eq.s32.totalorder %s16, 0
      %p113 = por %p111, %p112
      %p114 = scmp.ne.s32.totalorder %s106, %s108
      %p115 = scmp.eq.s32.totalorder %s21, 1
      %p116 = por %p114, %p115
      %p117 = scmp.ne.s32.totalorder %s108, %s109
      %p118 = scmp.eq.s32.totalorder %s21, 0
      %p119 = por %p117, %p118
      %p120 = scmp.ne.s32.totalorder %s108, %s109
      %p121 = scmp.eq.s32.totalorder %s22, 1
      %p122 = por %p120, %p121
      %p124 = scmp.ne.s32.totalorder %s109, %s123
      %p125 = scmp.eq.s32.totalorder %s22, 0
      %p126 = por %p124, %p125
      %s128 = sadd.s32 %s127, 1
      %p131 = scmp.eq.s32.totalorder %s16, 1
      %p132 = scmp.ne.s32.totalorder %s127, %s129
      %p133 = scmp.eq.s32.totalorder %s16, 0
      %p134 = por %p132, %p133
      %p135 = scmp.ne.s32.totalorder %s127, %s129
      %p136 = scmp.eq.s32.totalorder %s21, 1
      %p137 = por %p135, %p136
      %p138 = scmp.ne.s32.totalorder %s129, %s130
      %p139 = scmp.eq.s32.totalorder %s21, 0
      %p140 = por %p138, %p139
      %p141 = scmp.ne.s32.totalorder %s129, %s130
      %p142 = scmp.eq.s32.totalorder %s22, 1
      %p143 = por %p141, %p142
      %p145 = scmp.ne.s32.totalorder %s130, %s144
      %p146 = scmp.eq.s32.totalorder %s22, 0
      %p147 = por %p145, %p146
      %s149 = sadd.s32 %s148, 1
      %p152 = scmp.eq.s32.totalorder %s16, 1
      %p153 = scmp.ne.s32.totalorder %s148, %s150
      %p154 = scmp.eq.s32.totalorder %s16, 0
      %p155 = por %p153, %p154
      %p156 = scmp.ne.s32.totalorder %s148, %s150
      %p157 = scmp.eq.s32.totalorder %s21, 1
      %p158 = por %p156, %p157
      %p159 = scmp.ne.s32.totalorder %s150, %s151
      %p160 = scmp.eq.s32.totalorder %s21, 0
      %p161 = por %p159, %p160
      %p162 = scmp.ne.s32.totalorder %s150, %s151
      %p163 = scmp.eq.s32.totalorder %s22, 1
      %p164 = por %p162, %p163
      %p166 = scmp.ne.s32.totalorder %s151, %s165
      %p167 = scmp.eq.s32.totalorder %s22, 0
      %p168 = por %p166, %p167
      %s170 = sadd.s32 %s169, 1
      %p173 = scmp.eq.s32.totalorder %s16, 1
      %p174 = scmp.ne.s32.totalorder %s169, %s171
      %p175 = scmp.eq.s32.totalorder %s16, 0
      %p176 = por %p174, %p175
      %p177 = scmp.ne.s32.totalorder %s169, %s171
      %p178 = scmp.eq.s32.totalorder %s21, 1
      %p179 = por %p177, %p178
      %p180 = scmp.ne.s32.totalorder %s171, %s172
      %p181 = scmp.eq.s32.totalorder %s21, 0
      %p182 = por %p180, %p181
      %p183 = scmp.ne.s32.totalorder %s171, %s172
      %p184 = scmp.eq.s32.totalorder %s22, 1
      %p185 = por %p183, %p184
      %p187 = scmp.ne.s32.totalorder %s172, %s186
      %p188 = scmp.eq.s32.totalorder %s22, 0
      %p189 = por %p187, %p188
      %s190 = ssub.s32 %s23, %s35
      %p191 = scmp.eq.s32.totalorder %s190, 0
      %s193 = sadd.s32 %s192, 1
      %s194 = scalar_select %p191, %s192, %s193
      %p197 = pneg %p191
      %p198 = scmp.eq.s32.totalorder %s16, 1
      %p199 = por %p197, %p198
      %p200 = scmp.ne.s32.totalorder %s192, %s195
      %p201 = scmp.eq.s32.totalorder %s16, 0
      %p202 = por %p200, %p201
      %p203 = scmp.ne.s32.totalorder %s192, %s195
      %p204 = scmp.eq.s32.totalorder %s21, 1
      %p205 = por %p203, %p204
      %p206 = scmp.ne.s32.totalorder %s195, %s196
      %p207 = scmp.eq.s32.totalorder %s21, 0
      %p208 = por %p206, %p207
      %p209 = scmp.ne.s32.totalorder %s195, %s196
      %p210 = scmp.eq.s32.totalorder %s22, 1
      %p211 = por %p209, %p210
      %p213 = scmp.ne.s32.totalorder %s196, %s212
      %p214 = scmp.eq.s32.totalorder %s22, 0
      %p215 = por %p213, %p214
      %p216 = scmp.le.s32.totalorder 1, %s16
      %p217 = scmp.lt.s32.totalorder %s16, 3
      %p218 = pnand %p216, %p217
      %p219 = pneg %p218
      // Predicated region
      $region9: #{single_path_supernet_forward.1} parent=5 // pred_check
        _
      $region10: #{single_path_supernet_forward.1} parent=5 // pred_check_branch
        %221 = sbr.rel (%p218) target = $region12
      $region11: #{single_path_supernet_forward.1} parent=5 // pred_region
        %s222 = ssub.s32 %s16, 1
        // Predicated region
        $region13: #{single_path_supernet_forward.1} parent=11 // pred_check
          %p223 = pneg %p77
        $region14: #{single_path_supernet_forward.1} parent=11 // pred_check_branch
          %225 = sbr.rel (%p223) target = $region16
        $region15: #{single_path_supernet_forward.1} parent=11 // pred_region
          _
        $region16: #{single_path_supernet_forward.1} parent=11 // pred_fallthru
          _
        // Predicated region
        $region17: #{single_path_supernet_forward.1} parent=11 // pred_check
          %p226 = pneg %p98
        $region18: #{single_path_supernet_forward.1} parent=11 // pred_check_branch
          %228 = sbr.rel (%p226) target = $region20
        $region19: #{single_path_supernet_forward.1} parent=11 // pred_region
          _
        $region20: #{single_path_supernet_forward.1} parent=11 // pred_fallthru
          _
        // Predicated region
        $region21: #{single_path_supernet_forward.1} parent=11 // pred_check
          %p229 = pneg %p119
        $region22: #{single_path_supernet_forward.1} parent=11 // pred_check_branch
          %231 = sbr.rel (%p229) target = $region24
        $region23: #{single_path_supernet_forward.1} parent=11 // pred_region
          _
        $region24: #{single_path_supernet_forward.1} parent=11 // pred_fallthru
          _
        // Predicated region
        $region25: #{single_path_supernet_forward.1} parent=11 // pred_check
          %p232 = pneg %p140
        $region26: #{single_path_supernet_forward.1} parent=11 // pred_check_branch
          %234 = sbr.rel (%p232) target = $region28
        $region27: #{single_path_supernet_forward.1} parent=11 // pred_region
          _
        $region28: #{single_path_supernet_forward.1} parent=11 // pred_fallthru
          _
        // Predicated region
        $region29: #{single_path_supernet_forward.1} parent=11 // pred_check
          %p235 = pneg %p161
        $region30: #{single_path_supernet_forward.1} parent=11 // pred_check_branch
          %237 = sbr.rel (%p235) target = $region32
        $region31: #{single_path_supernet_forward.1} parent=11 // pred_region
          _
        $region32: #{single_path_supernet_forward.1} parent=11 // pred_fallthru
          _
        // Predicated region
        $region33: #{single_path_supernet_forward.1} parent=11 // pred_check
          %p238 = pneg %p182
        $region34: #{single_path_supernet_forward.1} parent=11 // pred_check_branch
          %240 = sbr.rel (%p238) target = $region36
        $region35: #{single_path_supernet_forward.1} parent=11 // pred_region
          _
        $region36: #{single_path_supernet_forward.1} parent=11 // pred_fallthru
          _
      $region12: #{single_path_supernet_forward.1} parent=5 // pred_fallthru
        _
      %p241 = scmp.lt.s32.totalorder %s16, 2
      // Predicated region
      $region37: #{single_path_supernet_forward.1} parent=5 // pred_check
        %p242 = pneg %p241
      $region38: #{single_path_supernet_forward.1} parent=5 // pred_check_branch
        %244 = sbr.rel (%p242) target = $region40
      $region39: #{single_path_supernet_forward.1} parent=5 // pred_region
        // Predicated region
        $region41: #{single_path_supernet_forward.1} parent=39 // pred_check
          %p245 = pneg %p50
        $region42: #{single_path_supernet_forward.1} parent=39 // pred_check_branch
          %247 = sbr.rel (%p245) target = $region44
        $region43: #{single_path_supernet_forward.1} parent=39 // pred_region
          %s248 = smul.u32 32, %s24
          %p249 = scmp.lt.s32.totalorder %s23, 1
          %s250 = scalar_select %p249, %s23, 1
          %p251 = scmp.lt.s32.totalorder %s248, 31
          %s252 = scalar_select %p251, %s248, 31
          %s253 = smul.addr %s250, 32
          %s254 = sadd.s32 %s252, %s253
          %s255 = smul.addr %s254, 4
          %s256 = scalar_lea.vmem %s0, %s255
          %s257 = smul.u32 32, %s24
        $region44: #{single_path_supernet_forward.1} parent=39 // pred_fallthru
          _
      $region40: #{single_path_supernet_forward.1} parent=5 // pred_fallthru
        _
      %p258 = scmp.le.s32.totalorder 1, %s16
      %p259 = scmp.lt.s32.totalorder %s16, 3
      %p260 = pnand %p258, %p259
      %p261 = pneg %p260
      // Predicated region
      $region45: #{single_path_supernet_forward.1} parent=5 // pred_check
        _
      $region46: #{single_path_supernet_forward.1} parent=5 // pred_check_branch
        %263 = sbr.rel (%p260) target = $region48
      $region47: #{single_path_supernet_forward.1} parent=5 // pred_region
        %s264 = ssub.s32 %s16, 1
        %s265 = smul.u32 32, %s26
        %p266 = scmp.lt.s32.totalorder %s25, 1
        %s267 = scalar_select %p266, %s25, 1
        %p268 = scmp.lt.s32.totalorder %s265, 31
        %s269 = scalar_select %p268, %s265, 31
        %s270 = smul.addr %s267, 32
        %s271 = sadd.s32 %s269, %s270
        %s272 = smul.addr %s271, 4
        %s273 = scalar_lea.vmem %s0, %s272
        %p274 = pneg %p56
        %p275 = pneg %p53
        %p276 = pneg %p77
        %p277 = pneg %p74
        %p278 = pneg %p98
        %p279 = pneg %p95
        %p280 = pneg %p119
        %p281 = pneg %p116
        %p282 = pneg %p140
        %p283 = pneg %p137
        %p284 = pneg %p161
        %p285 = pneg %p158
        %p286 = pneg %p182
        %p287 = pneg %p179
        %p288 = pneg %p208
        %p289 = pneg %p205
        %s290 = sand.u32 %s195, 1
        %s291 = scalar_lea.sflag [#allocation4], %s290
        %s292 = sand.u32 %s195, 1
        %s293 = scalar_lea.vmem [#allocation3], %s292
        %s294 = smul.u32 32, %s26
        %p295 = scmp.lt.s32.totalorder %s25, 1
        %s296 = scalar_select %p295, %s25, 1
        %p297 = scmp.lt.s32.totalorder %s294, 31
        %s298 = scalar_select %p297, %s294, 31
        %s299 = smul.addr %s296, 32
        %s300 = sadd.s32 %s298, %s299
        %s301 = smul.addr %s300, 4
        %s302 = scalar_lea.vmem %s0, %s301
        %s303 = smul.u32 32, %s26
        %p305 = scmp.eq.s32.totalorder %s26, 0
        // Predicated region
        $region49: #{single_path_supernet_forward.1} parent=47 // pred_check
          %p306 = pneg %p305
        $region50: #{single_path_supernet_forward.1} parent=47 // pred_check_branch
          %308 = sbr.rel (%p306) target = $region52
        $region51: #{single_path_supernet_forward.1} parent=47 // pred_region
          %309 = vst [vmem:[#allocation2] sm:$0xff] 0.0
          %310 = vst [vmem:[#allocation2 + $0x8] sm:$0xff] 0.0
          %311 = vst [vmem:[#allocation2 + $0x10] sm:$0xff] 0.0
          %312 = vst [vmem:[#allocation2 + $0x18] sm:$0xff] 0.0
          %313 = vst [vmem:[#allocation2 + $0x20] sm:$0xff] 0.0
          %314 = vst [vmem:[#allocation2 + $0x28] sm:$0xff] 0.0
          %315 = vst [vmem:[#allocation2 + $0x30] sm:$0xff] 0.0
          %316 = vst [vmem:[#allocation2 + $0x38] sm:$0xff] 0.0
          %317 = vst [vmem:[#allocation2 + $0x40] sm:$0xff] 0.0
          %318 = vst [vmem:[#allocation2 + $0x48] sm:$0xff] 0.0
        $region52: #{single_path_supernet_forward.1} parent=47 // pred_fallthru
          _
        %v319 = vld [vmem:[%s302] sm:$0xf]
        %v320 = vld [vmem:[%s302 + $0x4] sm:$0xf]
        %v321 = vld [vmem:[%s302 + $0x8] sm:$0xf]
        %v322 = vld [vmem:[%s302 + $0xc] sm:$0xf]
        %v323 = vld [vmem:[%s302 + $0x10] sm:$0xf]
        %v324 = vld [vmem:[%s302 + $0x14] sm:$0xf]
        %v325 = vld [vmem:[%s302 + $0x18] sm:$0xf]
        %v326 = vld [vmem:[%s302 + $0x1c] sm:$0xf]
        %v327 = vld [vmem:[%s302 + $0x20] sm:$0xf]
        %v328 = vld [vmem:[%s302 + $0x24] sm:$0xf]
        %v329 = vld [vmem:[%s302 + $0x28] sm:$0xf]
        %v330 = vld [vmem:[%s302 + $0x2c] sm:$0xf]
        %v331 = vld [vmem:[%s302 + $0x30] sm:$0xf]
        %v332 = vld [vmem:[%s302 + $0x34] sm:$0xf]
        %v333 = vld [vmem:[%s302 + $0x38] sm:$0xf]
        %v334 = vld [vmem:[%s302 + $0x3c] sm:$0xf]
        %v335 = vld [vmem:[%s302 + $0x40] sm:$0xf]
        %v336 = vld [vmem:[%s302 + $0x44] sm:$0xf]
        %v337 = vld [vmem:[%s302 + $0x48] sm:$0xf]
        %v338 = vld [vmem:[%s302 + $0x4c] sm:$0xf]
        %v339 = vld [vmem:[%s302 + $0x50] sm:$0xf]
        %v340 = vld [vmem:[%s302 + $0x54] sm:$0xf]
        %v341 = vld [vmem:[%s302 + $0x58] sm:$0xf]
        %v342 = vld [vmem:[%s302 + $0x5c] sm:$0xf]
        %v343 = vld [vmem:[%s302 + $0x60] sm:$0xf]
        %v344 = vld [vmem:[%s302 + $0x64] sm:$0xf]
        %v345 = vld [vmem:[%s302 + $0x68] sm:$0xf]
        %v346 = vld [vmem:[%s302 + $0x6c] sm:$0xf]
        %v347 = vld [vmem:[%s302 + $0x70] sm:$0xf]
        %v348 = vld [vmem:[%s302 + $0x74] sm:$0xf]
        %v349 = vld [vmem:[%s302 + $0x78] sm:$0xf]
        %v350 = vld [vmem:[%s302 + $0x7c] sm:$0xf]
        %v351 = vld [vmem:[%s1] sm:$0xf]
        %v352 = vld [vmem:[%s1 + $0x4] sm:$0xf]
        %v353 = vld [vmem:[%s1 + $0x8] sm:$0xf]
        %v354 = vld [vmem:[%s1 + $0xc] sm:$0x3]
        %v355 = vld [vmem:[%s2] sm:$0x1]
        %v357 = vlaneseq
        %v358 = vshrl.u32 %v357, 7
        %v359 = vsub.s32 0, %v358
        %v360 = vrot.slane %v355, %v359
        %v394 = vunpack.c.l.b16 %v319
        %v395 = vunpack.c.l.b16 %v320
        %v396 = vunpack.c.l.b16 %v321
        %v397 = vunpack.c.l.b16 %v322
        %v398 = vunpack.c.l.b16 %v323
        %v399 = vunpack.c.l.b16 %v324
        %v400 = vunpack.c.l.b16 %v325
        %v401 = vunpack.c.l.b16 %v326
        %v402 = vunpack.c.l.b16 %v327
        %v403 = vunpack.c.l.b16 %v328
        %v404 = vunpack.c.l.b16 %v329
        %v405 = vunpack.c.l.b16 %v330
        %v406 = vunpack.c.l.b16 %v331
        %v407 = vunpack.c.l.b16 %v332
        %v408 = vunpack.c.l.b16 %v333
        %v409 = vunpack.c.l.b16 %v334
        %v410 = vunpack.c.l.b16 %v335
        %v411 = vunpack.c.l.b16 %v336
        %v412 = vunpack.c.l.b16 %v337
        %v413 = vunpack.c.l.b16 %v338
        %v414 = vunpack.c.l.b16 %v339
        %v415 = vunpack.c.l.b16 %v340
        %v416 = vunpack.c.l.b16 %v341
        %v417 = vunpack.c.l.b16 %v342
        %v418 = vunpack.c.l.b16 %v343
        %v419 = vunpack.c.l.b16 %v344
        %v420 = vunpack.c.l.b16 %v345
        %v421 = vunpack.c.l.b16 %v346
        %v422 = vunpack.c.l.b16 %v347
        %v423 = vunpack.c.l.b16 %v348
        %v424 = vunpack.c.l.b16 %v349
        %v425 = vunpack.c.l.b16 %v350
        %v426 = vpack.c.b16 %v395, %v394
        %v427 = vpack.c.b16 %v397, %v396
        %v428 = vpack.c.b16 %v399, %v398
        %v429 = vpack.c.b16 %v401, %v400
        %v430 = vpack.c.b16 %v403, %v402
        %v431 = vpack.c.b16 %v405, %v404
        %v432 = vpack.c.b16 %v407, %v406
        %v433 = vpack.c.b16 %v409, %v408
        %v434 = vpack.c.b16 %v411, %v410
        %v435 = vpack.c.b16 %v413, %v412
        %v436 = vpack.c.b16 %v415, %v414
        %v437 = vpack.c.b16 %v417, %v416
        %v438 = vpack.c.b16 %v419, %v418
        %v439 = vpack.c.b16 %v421, %v420
        %v440 = vpack.c.b16 %v423, %v422
        %v441 = vpack.c.b16 %v425, %v424
        %v446 = vunpack.c.l.b16 %v351
        %v447 = vunpack.c.l.b16 %v352
        %v448 = vunpack.c.l.b16 %v353
        %v449 = vunpack.c.l.b16 %v354
        %v450 = vpack.c.b16 %v447, %v446
        %v451 = vpack.c.b16 %v449, %v448
        %vm453 = vcmask 220160
        %v455 = vsel %vm453, %v426, 0
        %v458 = vsel %vm453, %v427, 0
        %v461 = vsel %vm453, %v428, 0
        %v464 = vsel %vm453, %v429, 0
        %v467 = vsel %vm453, %v430, 0
        %v470 = vsel %vm453, %v431, 0
        %v473 = vsel %vm453, %v432, 0
        %v476 = vsel %vm453, %v433, 0
        %v479 = vsel %vm453, %v434, 0
        %v482 = vsel %vm453, %v435, 0
        %v485 = vsel %vm453, %v436, 0
        %v488 = vsel %vm453, %v437, 0
        %v491 = vsel %vm453, %v438, 0
        %v494 = vsel %vm453, %v439, 0
        %v497 = vsel %vm453, %v440, 0
        %v500 = vsel %vm453, %v441, 0
        %vm502 = vcmask 1044480
        %vm503 = vcmask 1045504
        %v504 = vsel %vm502, 4294967295, 65535
        %v505 = vsel %vm503, %v504, 0
        %v507 = vand.u32 %v451, %v505
        %509 = vmatprep.subr.bf16.mxu0 0
        %510 = vmatpush1.bf16.msra.mxu0 %v450
        %511 = vmatprep.subr.bf16.mxu0 0
        %512 = vmatpush1.bf16.msra.mxu0 %v507
        %513 = vmatprep.subr.bf16.mxu0 0
        %514 = vmatpush1.bf16.msra.mxu0 0
        %515 = vmatprep.subr.bf16.mxu0 0
        %516 = vmatpush1.bf16.msra.mxu0 0
        %517 = vmatprep.subr.bf16.mxu0 0
        %518 = vmatpush1.bf16.msra.mxu0 0
        %519 = vmatprep.subr.bf16.mxu0 0
        %520 = vmatpush1.bf16.msra.mxu0 0
        %521 = vmatprep.subr.bf16.mxu0 0
        %522 = vmatpush1.bf16.msra.mxu0 0
        %523 = vmatprep.subr.bf16.mxu0 0
        %524 = vmatpush1.bf16.msra.mxu0 0
        %525 = vmatprep.subr.bf16.mxu0 0
        %526 = vmatpush1.bf16.msra.mxu0 0
        %527 = vmatprep.subr.bf16.mxu0 0
        %528 = vmatpush1.bf16.msra.mxu0 0
        %529 = vmatprep.subr.bf16.mxu0 0
        %530 = vmatpush1.bf16.msra.mxu0 0
        %531 = vmatprep.subr.bf16.mxu0 0
        %532 = vmatpush1.bf16.msra.mxu0 0
        %533 = vmatprep.subr.bf16.mxu0 0
        %534 = vmatpush1.bf16.msra.mxu0 0
        %535 = vmatprep.subr.bf16.mxu0 0
        %536 = vmatpush1.bf16.msra.mxu0 0
        %537 = vmatprep.subr.bf16.mxu0 0
        %538 = vmatpush1.bf16.msra.mxu0 0
        %539 = vmatprep.subr.bf16.mxu0 0
        %540 = vmatpush1.bf16.msra.mxu0 0
        %541 = vmatprep.mubr.bf16.mxu0 0
        %542 = vmatmul.mubr.bf16.gmra.mrb[0].mxu0 %v455
        %v543 = vpop.f32.mrb[0].mxu0
        %v544 = vadd.f32 %v360, %v543
        %v545 = vpop.f32.mrb[0].mxu0
        %v546 = vpop.f32.mrb[0].mxu0
        %v547 = vadd.f32 %v360, %v546
        %v548 = vpop.f32.mrb[0].mxu0
        %549 = vmatprep.mubr.bf16.mxu0 0
        %550 = vmatmul.mubr.bf16.gmra.mrb[0].mxu0 %v458
        %v551 = vpop.f32.mrb[0].mxu0
        %v552 = vadd.f32 %v360, %v551
        %v553 = vpop.f32.mrb[0].mxu0
        %v554 = vpop.f32.mrb[0].mxu0
        %v555 = vadd.f32 %v360, %v554
        %v556 = vpop.f32.mrb[0].mxu0
        %557 = vmatprep.mubr.bf16.mxu0 0
        %558 = vmatmul.mubr.bf16.gmra.mrb[0].mxu0 %v461
        %v559 = vpop.f32.mrb[0].mxu0
        %v560 = vadd.f32 %v360, %v559
        %v561 = vpop.f32.mrb[0].mxu0
        %v562 = vpop.f32.mrb[0].mxu0
        %v563 = vadd.f32 %v360, %v562
        %v564 = vpop.f32.mrb[0].mxu0
        %565 = vmatprep.mubr.bf16.mxu0 0
        %566 = vmatmul.mubr.bf16.gmra.mrb[0].mxu0 %v464
        %v567 = vpop.f32.mrb[0].mxu0
        %v568 = vadd.f32 %v360, %v567
        %v569 = vpop.f32.mrb[0].mxu0
        %v570 = vpop.f32.mrb[0].mxu0
        %v571 = vadd.f32 %v360, %v570
        %v572 = vpop.f32.mrb[0].mxu0
        %573 = vmatprep.mubr.bf16.mxu0 0
        %574 = vmatmul.mubr.bf16.gmra.mrb[0].mxu0 %v467
        %v575 = vpop.f32.mrb[0].mxu0
        %v576 = vadd.f32 %v360, %v575
        %v577 = vpop.f32.mrb[0].mxu0
        %v578 = vpop.f32.mrb[0].mxu0
        %v579 = vadd.f32 %v360, %v578
        %v580 = vpop.f32.mrb[0].mxu0
        %581 = vmatprep.mubr.bf16.mxu0 0
        %582 = vmatmul.mubr.bf16.gmra.mrb[0].mxu0 %v470
        %v583 = vpop.f32.mrb[0].mxu0
        %v584 = vadd.f32 %v360, %v583
        %v585 = vpop.f32.mrb[0].mxu0
        %v586 = vpop.f32.mrb[0].mxu0
        %v587 = vadd.f32 %v360, %v586
        %v588 = vpop.f32.mrb[0].mxu0
        %589 = vmatprep.mubr.bf16.mxu0 0
        %590 = vmatmul.mubr.bf16.gmra.mrb[0].mxu0 %v473
        %v591 = vpop.f32.mrb[0].mxu0
        %v592 = vadd.f32 %v360, %v591
        %v593 = vpop.f32.mrb[0].mxu0
        %v594 = vpop.f32.mrb[0].mxu0
        %v595 = vadd.f32 %v360, %v594
        %v596 = vpop.f32.mrb[0].mxu0
        %597 = vmatprep.mubr.bf16.mxu0 0
        %598 = vmatmul.mubr.bf16.gmra.mrb[0].mxu0 %v476
        %v599 = vpop.f32.mrb[0].mxu0
        %v600 = vadd.f32 %v360, %v599
        %v601 = vpop.f32.mrb[0].mxu0
        %v602 = vpop.f32.mrb[0].mxu0
        %v603 = vadd.f32 %v360, %v602
        %v604 = vpop.f32.mrb[0].mxu0
        %605 = vmatprep.mubr.bf16.mxu0 0
        %606 = vmatmul.mubr.bf16.gmra.mrb[0].mxu0 %v479
        %v607 = vpop.f32.mrb[0].mxu0
        %v608 = vadd.f32 %v360, %v607
        %v609 = vpop.f32.mrb[0].mxu0
        %v610 = vpop.f32.mrb[0].mxu0
        %v611 = vadd.f32 %v360, %v610
        %v612 = vpop.f32.mrb[0].mxu0
        %613 = vmatprep.mubr.bf16.mxu0 0
        %614 = vmatmul.mubr.bf16.gmra.mrb[0].mxu0 %v482
        %v615 = vpop.f32.mrb[0].mxu0
        %v616 = vadd.f32 %v360, %v615
        %v617 = vpop.f32.mrb[0].mxu0
        %v618 = vpop.f32.mrb[0].mxu0
        %v619 = vadd.f32 %v360, %v618
        %v620 = vpop.f32.mrb[0].mxu0
        %621 = vmatprep.mubr.bf16.mxu0 0
        %622 = vmatmul.mubr.bf16.gmra.mrb[0].mxu0 %v485
        %v623 = vpop.f32.mrb[0].mxu0
        %v624 = vadd.f32 %v360, %v623
        %v625 = vpop.f32.mrb[0].mxu0
        %v626 = vpop.f32.mrb[0].mxu0
        %v627 = vadd.f32 %v360, %v626
        %v628 = vpop.f32.mrb[0].mxu0
        %629 = vmatprep.mubr.bf16.mxu0 0
        %630 = vmatmul.mubr.bf16.gmra.mrb[0].mxu0 %v488
        %v631 = vpop.f32.mrb[0].mxu0
        %v632 = vadd.f32 %v360, %v631
        %v633 = vpop.f32.mrb[0].mxu0
        %v634 = vpop.f32.mrb[0].mxu0
        %v635 = vadd.f32 %v360, %v634
        %v636 = vpop.f32.mrb[0].mxu0
        %637 = vmatprep.mubr.bf16.mxu0 0
        %638 = vmatmul.mubr.bf16.gmra.mrb[0].mxu0 %v491
        %v639 = vpop.f32.mrb[0].mxu0
        %v640 = vadd.f32 %v360, %v639
        %v641 = vpop.f32.mrb[0].mxu0
        %v642 = vpop.f32.mrb[0].mxu0
        %v643 = vadd.f32 %v360, %v642
        %v644 = vpop.f32.mrb[0].mxu0
        %645 = vmatprep.mubr.bf16.mxu0 0
        %646 = vmatmul.mubr.bf16.gmra.mrb[0].mxu0 %v494
        %v647 = vpop.f32.mrb[0].mxu0
        %v648 = vadd.f32 %v360, %v647
        %v649 = vpop.f32.mrb[0].mxu0
        %v650 = vpop.f32.mrb[0].mxu0
        %v651 = vadd.f32 %v360, %v650
        %v652 = vpop.f32.mrb[0].mxu0
        %653 = vmatprep.mubr.bf16.mxu0 0
        %654 = vmatmul.mubr.bf16.gmra.mrb[0].mxu0 %v497
        %v655 = vpop.f32.mrb[0].mxu0
        %v656 = vadd.f32 %v360, %v655
        %v657 = vpop.f32.mrb[0].mxu0
        %v658 = vpop.f32.mrb[0].mxu0
        %v659 = vadd.f32 %v360, %v658
        %v660 = vpop.f32.mrb[0].mxu0
        %661 = vmatprep.mubr.bf16.mxu0 0
        %662 = vmatmul.mubr.bf16.gmra.mrb[0].mxu0 %v500
        %v663 = vpop.f32.mrb[0].mxu0
        %v664 = vadd.f32 %v360, %v663
        %v665 = vpop.f32.mrb[0].mxu0
        %v666 = vpop.f32.mrb[0].mxu0
        %v667 = vadd.f32 %v360, %v666
        %v668 = vpop.f32.mrb[0].mxu0
        %669 = vdwg.mxu0
        %v670 = vmax.f32 %v544, 0.0
        %v671 = vmax.f32 %v547, 0.0
        %v672 = vmax.f32 %v552, 0.0
        %v673 = vmax.f32 %v555, 0.0
        %v674 = vmax.f32 %v560, 0.0
        %v675 = vmax.f32 %v563, 0.0
        %v676 = vmax.f32 %v568, 0.0
        %v677 = vmax.f32 %v571, 0.0
        %v678 = vmax.f32 %v576, 0.0
        %v679 = vmax.f32 %v579, 0.0
        %v680 = vmax.f32 %v584, 0.0
        %v681 = vmax.f32 %v587, 0.0
        %v682 = vmax.f32 %v592, 0.0
        %v683 = vmax.f32 %v595, 0.0
        %v684 = vmax.f32 %v600, 0.0
        %v685 = vmax.f32 %v603, 0.0
        %v686 = vmax.f32 %v608, 0.0
        %v687 = vmax.f32 %v611, 0.0
        %v688 = vmax.f32 %v616, 0.0
        %v689 = vmax.f32 %v619, 0.0
        %v690 = vmax.f32 %v624, 0.0
        %v691 = vmax.f32 %v627, 0.0
        %v692 = vmax.f32 %v632, 0.0
        %v693 = vmax.f32 %v635, 0.0
        %v694 = vmax.f32 %v640, 0.0
        %v695 = vmax.f32 %v643, 0.0
        %v696 = vmax.f32 %v648, 0.0
        %v697 = vmax.f32 %v651, 0.0
        %v698 = vmax.f32 %v656, 0.0
        %v699 = vmax.f32 %v659, 0.0
        %v700 = vmax.f32 %v664, 0.0
        %v701 = vmax.f32 %v667, 0.0
        %v702 = vmin.f32 %v670, 6.0
        %v703 = vmin.f32 %v671, 6.0
        %v704 = vmin.f32 %v672, 6.0
        %v705 = vmin.f32 %v673, 6.0
        %v706 = vmin.f32 %v674, 6.0
        %v707 = vmin.f32 %v675, 6.0
        %v708 = vmin.f32 %v676, 6.0
        %v709 = vmin.f32 %v677, 6.0
        %v710 = vmin.f32 %v678, 6.0
        %v711 = vmin.f32 %v679, 6.0
        %v712 = vmin.f32 %v680, 6.0
        %v713 = vmin.f32 %v681, 6.0
        %v714 = vmin.f32 %v682, 6.0
        %v715 = vmin.f32 %v683, 6.0
        %v716 = vmin.f32 %v684, 6.0
        %v717 = vmin.f32 %v685, 6.0
        %v718 = vmin.f32 %v686, 6.0
        %v719 = vmin.f32 %v687, 6.0
        %v720 = vmin.f32 %v688, 6.0
        %v721 = vmin.f32 %v689, 6.0
        %v722 = vmin.f32 %v690, 6.0
        %v723 = vmin.f32 %v691, 6.0
        %v724 = vmin.f32 %v692, 6.0
        %v725 = vmin.f32 %v693, 6.0
        %v726 = vmin.f32 %v694, 6.0
        %v727 = vmin.f32 %v695, 6.0
        %v728 = vmin.f32 %v696, 6.0
        %v729 = vmin.f32 %v697, 6.0
        %v730 = vmin.f32 %v698, 6.0
        %v731 = vmin.f32 %v699, 6.0
        %v732 = vmin.f32 %v700, 6.0
        %v733 = vmin.f32 %v701, 6.0
        %v734 = vpack.c.bf16 %v703, %v702
        %v735 = vpack.c.bf16 %v705, %v704
        %v736 = vpack.c.bf16 %v707, %v706
        %v737 = vpack.c.bf16 %v709, %v708
        %v738 = vpack.c.bf16 %v711, %v710
        %v739 = vpack.c.bf16 %v713, %v712
        %v740 = vpack.c.bf16 %v715, %v714
        %v741 = vpack.c.bf16 %v717, %v716
        %v742 = vpack.c.bf16 %v719, %v718
        %v743 = vpack.c.bf16 %v721, %v720
        %v744 = vpack.c.bf16 %v723, %v722
        %v745 = vpack.c.bf16 %v725, %v724
        %v746 = vpack.c.bf16 %v727, %v726
        %v747 = vpack.c.bf16 %v729, %v728
        %v748 = vpack.c.bf16 %v731, %v730
        %v749 = vpack.c.bf16 %v733, %v732
        %v750 = vld [vmem:[%s3] sm:$0xff]
        %v751 = vld [vmem:[%s3 + $0x8] sm:$0xff]
        %v752 = vld [vmem:[%s3 + $0x28] sm:$0xff]
        %v753 = vld [vmem:[%s3 + $0x30] sm:$0xff]
        %v754 = vld [vmem:[%s3 + $0x50] sm:$0xff]
        %v755 = vld [vmem:[%s3 + $0x58] sm:$0xff]
        %v756 = vld [vmem:[%s3 + $0x78] sm:$0xff]
        %v757 = vld [vmem:[%s3 + $0x80] sm:$0xff]
        %v758 = vld [vmem:[%s4] sm:$0xf]
        %v760 = vlaneseq
        %v761 = vshrl.u32 %v760, 7
        %v762 = vsub.s32 0, %v761
        %v763 = vrot.slane %v758, %v762
        %v764 = vlaneseq
        %v765 = vshrl.u32 %v764, 7
        %v766 = vsub.s32 1, %v765
        %v767 = vrot.slane %v758, %v766
        %v768 = vlaneseq
        %v769 = vshrl.u32 %v768, 7
        %v770 = vsub.s32 2, %v769
        %v771 = vrot.slane %v758, %v770
        %v772 = vlaneseq
        %v773 = vshrl.u32 %v772, 7
        %v774 = vsub.s32 3, %v773
        %v775 = vrot.slane %v758, %v774
        %v788 = vunpack.c.l.b16 %v750
        %v789 = vunpack.c.h.b16 %v750
        %v790 = vunpack.c.l.b16 %v751
        %v791 = vunpack.c.h.b16 %v751
        %v792 = vunpack.c.l.b16 %v752
        %v793 = vunpack.c.h.b16 %v752
        %v794 = vunpack.c.l.b16 %v753
        %v795 = vunpack.c.h.b16 %v753
        %v796 = vunpack.c.l.b16 %v754
        %v797 = vunpack.c.h.b16 %v754
        %v798 = vunpack.c.l.b16 %v755
        %v799 = vunpack.c.h.b16 %v755
        %v800 = vunpack.c.l.b16 %v756
        %v801 = vunpack.c.h.b16 %v756
        %v802 = vunpack.c.l.b16 %v757
        %v803 = vunpack.c.h.b16 %v757
        %v804 = vpack.c.b16 %v792, %v788
        %v805 = vpack.c.b16 %v793, %v789
        %v806 = vpack.c.b16 %v794, %v790
        %v807 = vpack.c.b16 %v795, %v791
        %v808 = vpack.c.b16 %v800, %v796
        %v809 = vpack.c.b16 %v801, %v797
        %v810 = vpack.c.b16 %v802, %v798
        %v811 = vpack.c.b16 %v803, %v799
        %vm820 = vcmask 261120
        %v822 = vsel %vm820, %v734, 0
        %v825 = vsel %vm820, %v735, 0
        %v828 = vsel %vm820, %v736, 0
        %v831 = vsel %vm820, %v737, 0
        %v834 = vsel %vm820, %v738, 0
        %v837 = vsel %vm820, %v739, 0
        %v840 = vsel %vm820, %v740, 0
        %v843 = vsel %vm820, %v741, 0
        %v846 = vsel %vm820, %v742, 0
        %v849 = vsel %vm820, %v743, 0
        %v852 = vsel %vm820, %v744, 0
        %v855 = vsel %vm820, %v745, 0
        %v858 = vsel %vm820, %v746, 0
        %v861 = vsel %vm820, %v747, 0
        %v864 = vsel %vm820, %v748, 0
        %v867 = vsel %vm820, %v749, 0
        %869 = vmatprep.subr.bf16.mxu0 %v805
        %870 = vmatpush1.bf16.msra.mxu0 %v804
        %871 = vmatprep.subr.bf16.mxu0 %v809
        %872 = vmatpush1.bf16.msra.mxu0 %v808
        %873 = vmatprep.subr.bf16.mxu0 0
        %874 = vmatpush1.bf16.msra.mxu0 0
        %875 = vmatprep.subr.bf16.mxu0 0
        %876 = vmatpush1.bf16.msra.mxu0 0
        %877 = vmatprep.subr.bf16.mxu0 0
        %878 = vmatpush1.bf16.msra.mxu0 0
        %879 = vmatprep.subr.bf16.mxu0 0
        %880 = vmatpush1.bf16.msra.mxu0 0
        %881 = vmatprep.subr.bf16.mxu0 0
        %882 = vmatpush1.bf16.msra.mxu0 0
        %883 = vmatprep.subr.bf16.mxu0 0
        %884 = vmatpush1.bf16.msra.mxu0 0
        %885 = vmatprep.subr.bf16.mxu0 0
        %886 = vmatpush1.bf16.msra.mxu0 0
        %887 = vmatprep.subr.bf16.mxu0 0
        %888 = vmatpush1.bf16.msra.mxu0 0
        %889 = vmatprep.subr.bf16.mxu0 0
        %890 = vmatpush1.bf16.msra.mxu0 0
        %891 = vmatprep.subr.bf16.mxu0 0
        %892 = vmatpush1.bf16.msra.mxu0 0
        %893 = vmatprep.subr.bf16.mxu0 0
        %894 = vmatpush1.bf16.msra.mxu0 0
        %895 = vmatprep.subr.bf16.mxu0 0
        %896 = vmatpush1.bf16.msra.mxu0 0
        %897 = vmatprep.subr.bf16.mxu0 0
        %898 = vmatpush1.bf16.msra.mxu0 0
        %899 = vmatprep.subr.bf16.mxu0 0
        %900 = vmatpush1.bf16.msra.mxu0 0
        %901 = vmatprep.mubr.bf16.mxu0 0
        %902 = vmatmul.mubr.bf16.gmra.mrb[0].mxu0 %v822
        %v903 = vpop.f32.mrb[0].mxu0
        %v904 = vadd.f32 %v763, %v903
        %v905 = vpop.f32.mrb[0].mxu0
        %v906 = vadd.f32 %v767, %v905
        %v907 = vpop.f32.mrb[0].mxu0
        %v908 = vadd.f32 %v763, %v907
        %v909 = vpop.f32.mrb[0].mxu0
        %v910 = vadd.f32 %v767, %v909
        %911 = vmatprep.mubr.bf16.mxu0 0
        %912 = vmatmul.mubr.bf16.gmra.mrb[0].mxu0 %v825
        %v913 = vpop.f32.mrb[0].mxu0
        %v914 = vadd.f32 %v763, %v913
        %v915 = vpop.f32.mrb[0].mxu0
        %v916 = vadd.f32 %v767, %v915
        %v917 = vpop.f32.mrb[0].mxu0
        %v918 = vadd.f32 %v763, %v917
        %v919 = vpop.f32.mrb[0].mxu0
        %v920 = vadd.f32 %v767, %v919
        %921 = vmatprep.mubr.bf16.mxu0 0
        %922 = vmatmul.mubr.bf16.gmra.mrb[0].mxu0 %v828
        %v923 = vpop.f32.mrb[0].mxu0
        %v924 = vadd.f32 %v763, %v923
        %v925 = vpop.f32.mrb[0].mxu0
        %v926 = vadd.f32 %v767, %v925
        %v927 = vpop.f32.mrb[0].mxu0
        %v928 = vadd.f32 %v763, %v927
        %v929 = vpop.f32.mrb[0].mxu0
        %v930 = vadd.f32 %v767, %v929
        %931 = vmatprep.mubr.bf16.mxu0 0
        %932 = vmatmul.mubr.bf16.gmra.mrb[0].mxu0 %v831
        %v933 = vpop.f32.mrb[0].mxu0
        %v934 = vadd.f32 %v763, %v933
        %v935 = vpop.f32.mrb[0].mxu0
        %v936 = vadd.f32 %v767, %v935
        %v937 = vpop.f32.mrb[0].mxu0
        %v938 = vadd.f32 %v763, %v937
        %v939 = vpop.f32.mrb[0].mxu0
        %v940 = vadd.f32 %v767, %v939
        %941 = vmatprep.mubr.bf16.mxu0 0
        %942 = vmatmul.mubr.bf16.gmra.mrb[0].mxu0 %v834
        %v943 = vpop.f32.mrb[0].mxu0
        %v944 = vadd.f32 %v763, %v943
        %v945 = vpop.f32.mrb[0].mxu0
        %v946 = vadd.f32 %v767, %v945
        %v947 = vpop.f32.mrb[0].mxu0
        %v948 = vadd.f32 %v763, %v947
        %v949 = vpop.f32.mrb[0].mxu0
        %v950 = vadd.f32 %v767, %v949
        %951 = vmatprep.mubr.bf16.mxu0 0
        %952 = vmatmul.mubr.bf16.gmra.mrb[0].mxu0 %v837
        %v953 = vpop.f32.mrb[0].mxu0
        %v954 = vadd.f32 %v763, %v953
        %v955 = vpop.f32.mrb[0].mxu0
        %v956 = vadd.f32 %v767, %v955
        %v957 = vpop.f32.mrb[0].mxu0
        %v958 = vadd.f32 %v763, %v957
        %v959 = vpop.f32.mrb[0].mxu0
        %v960 = vadd.f32 %v767, %v959
        %961 = vmatprep.mubr.bf16.mxu0 0
        %962 = vmatmul.mubr.bf16.gmra.mrb[0].mxu0 %v840
        %v963 = vpop.f32.mrb[0].mxu0
        %v964 = vadd.f32 %v763, %v963
        %v965 = vpop.f32.mrb[0].mxu0
        %v966 = vadd.f32 %v767, %v965
        %v967 = vpop.f32.mrb[0].mxu0
        %v968 = vadd.f32 %v763, %v967
        %v969 = vpop.f32.mrb[0].mxu0
        %v970 = vadd.f32 %v767, %v969
        %971 = vmatprep.mubr.bf16.mxu0 0
        %972 = vmatmul.mubr.bf16.gmra.mrb[0].mxu0 %v843
        %v973 = vpop.f32.mrb[0].mxu0
        %v974 = vadd.f32 %v763, %v973
        %v975 = vpop.f32.mrb[0].mxu0
        %v976 = vadd.f32 %v767, %v975
        %v977 = vpop.f32.mrb[0].mxu0
        %v978 = vadd.f32 %v763, %v977
        %v979 = vpop.f32.mrb[0].mxu0
        %v980 = vadd.f32 %v767, %v979
        %981 = vmatprep.mubr.bf16.mxu0 0
        %982 = vmatmul.mubr.bf16.gmra.mrb[0].mxu0 %v846
        %v983 = vpop.f32.mrb[0].mxu0
        %v984 = vadd.f32 %v763, %v983
        %v985 = vpop.f32.mrb[0].mxu0
        %v986 = vadd.f32 %v767, %v985
        %v987 = vpop.f32.mrb[0].mxu0
        %v988 = vadd.f32 %v763, %v987
        %v989 = vpop.f32.mrb[0].mxu0
        %v990 = vadd.f32 %v767, %v989
        %991 = vmatprep.mubr.bf16.mxu0 0
        %992 = vmatmul.mubr.bf16.gmra.mrb[0].mxu0 %v849
        %v993 = vpop.f32.mrb[0].mxu0
        %v994 = vadd.f32 %v763, %v993
        %v995 = vpop.f32.mrb[0].mxu0
        %v996 = vadd.f32 %v767, %v995
        %v997 = vpop.f32.mrb[0].mxu0
        %v998 = vadd.f32 %v763, %v997
        %v999 = vpop.f32.mrb[0].mxu0
        %v1000 = vadd.f32 %v767, %v999
        %1001 = vmatprep.mubr.bf16.mxu0 0
        %1002 = vmatmul.mubr.bf16.gmra.mrb[0].mxu0 %v852
        %v1003 = vpop.f32.mrb[0].mxu0
        %v1004 = vadd.f32 %v763, %v1003
        %v1005 = vpop.f32.mrb[0].mxu0
        %v1006 = vadd.f32 %v767, %v1005
        %v1007 = vpop.f32.mrb[0].mxu0
        %v1008 = vadd.f32 %v763, %v1007
        %v1009 = vpop.f32.mrb[0].mxu0
        %v1010 = vadd.f32 %v767, %v1009
        %1011 = vmatprep.mubr.bf16.mxu0 0
        %1012 = vmatmul.mubr.bf16.gmra.mrb[0].mxu0 %v855
        %v1013 = vpop.f32.mrb[0].mxu0
        %v1014 = vadd.f32 %v763, %v1013
        %v1015 = vpop.f32.mrb[0].mxu0
        %v1016 = vadd.f32 %v767, %v1015
        %v1017 = vpop.f32.mrb[0].mxu0
        %v1018 = vadd.f32 %v763, %v1017
        %v1019 = vpop.f32.mrb[0].mxu0
        %v1020 = vadd.f32 %v767, %v1019
        %1021 = vmatprep.mubr.bf16.mxu0 0
        %1022 = vmatmul.mubr.bf16.gmra.mrb[0].mxu0 %v858
        %v1023 = vpop.f32.mrb[0].mxu0
        %v1024 = vadd.f32 %v763, %v1023
        %v1025 = vpop.f32.mrb[0].mxu0
        %v1026 = vadd.f32 %v767, %v1025
        %v1027 = vpop.f32.mrb[0].mxu0
        %v1028 = vadd.f32 %v763, %v1027
        %v1029 = vpop.f32.mrb[0].mxu0
        %v1030 = vadd.f32 %v767, %v1029
        %1031 = vmatprep.mubr.bf16.mxu0 0
        %1032 = vmatmul.mubr.bf16.gmra.mrb[0].mxu0 %v861
        %v1033 = vpop.f32.mrb[0].mxu0
        %v1034 = vadd.f32 %v763, %v1033
        %v1035 = vpop.f32.mrb[0].mxu0
        %v1036 = vadd.f32 %v767, %v1035
        %v1037 = vpop.f32.mrb[0].mxu0
        %v1038 = vadd.f32 %v763, %v1037
        %v1039 = vpop.f32.mrb[0].mxu0
        %v1040 = vadd.f32 %v767, %v1039
        %1041 = vmatprep.mubr.bf16.mxu0 0
        %1042 = vmatmul.mubr.bf16.gmra.mrb[0].mxu0 %v864
        %v1043 = vpop.f32.mrb[0].mxu0
        %v1044 = vadd.f32 %v763, %v1043
        %v1045 = vpop.f32.mrb[0].mxu0
        %v1046 = vadd.f32 %v767, %v1045
        %v1047 = vpop.f32.mrb[0].mxu0
        %v1048 = vadd.f32 %v763, %v1047
        %v1049 = vpop.f32.mrb[0].mxu0
        %v1050 = vadd.f32 %v767, %v1049
        %1051 = vmatprep.mubr.bf16.mxu0 0
        %1052 = vmatmul.mubr.bf16.gmra.mrb[0].mxu0 %v867
        %v1053 = vpop.f32.mrb[0].mxu0
        %v1054 = vadd.f32 %v763, %v1053
        %v1055 = vpop.f32.mrb[0].mxu0
        %v1056 = vadd.f32 %v767, %v1055
        %v1057 = vpop.f32.mrb[0].mxu0
        %v1058 = vadd.f32 %v763, %v1057
        %v1059 = vpop.f32.mrb[0].mxu0
        %v1060 = vadd.f32 %v767, %v1059
        %1061 = vdwg.mxu0
        %1062 = vmatprep.subr.bf16.mxu0 %v807
        %1063 = vmatpush1.bf16.msra.mxu0 %v806
        %1064 = vmatprep.subr.bf16.mxu0 %v811
        %1065 = vmatpush1.bf16.msra.mxu0 %v810
        %1066 = vmatprep.subr.bf16.mxu0 0
        %1067 = vmatpush1.bf16.msra.mxu0 0
        %1068 = vmatprep.subr.bf16.mxu0 0
        %1069 = vmatpush1.bf16.msra.mxu0 0
        %1070 = vmatprep.subr.bf16.mxu0 0
        %1071 = vmatpush1.bf16.msra.mxu0 0
        %1072 = vmatprep.subr.bf16.mxu0 0
        %1073 = vmatpush1.bf16.msra.mxu0 0
        %1074 = vmatprep.subr.bf16.mxu0 0
        %1075 = vmatpush1.bf16.msra.mxu0 0
        %1076 = vmatprep.subr.bf16.mxu0 0
        %1077 = vmatpush1.bf16.msra.mxu0 0
        %1078 = vmatprep.subr.bf16.mxu0 0
        %1079 = vmatpush1.bf16.msra.mxu0 0
        %1080 = vmatprep.subr.bf16.mxu0 0
        %1081 = vmatpush1.bf16.msra.mxu0 0
        %1082 = vmatprep.subr.bf16.mxu0 0
        %1083 = vmatpush1.bf16.msra.mxu0 0
        %1084 = vmatprep.subr.bf16.mxu0 0
        %1085 = vmatpush1.bf16.msra.mxu0 0
        %1086 = vmatprep.subr.bf16.mxu0 0
        %1087 = vmatpush1.bf16.msra.mxu0 0
        %1088 = vmatprep.subr.bf16.mxu0 0
        %1089 = vmatpush1.bf16.msra.mxu0 0
        %1090 = vmatprep.subr.bf16.mxu0 0
        %1091 = vmatpush1.bf16.msra.mxu0 0
        %1092 = vmatprep.subr.bf16.mxu0 0
        %1093 = vmatpush1.bf16.msra.mxu0 0
        %1094 = vmatprep.mubr.bf16.mxu0 0
        %1095 = vmatmul.mubr.bf16.gmra.mrb[0].mxu0 %v822
        %v1096 = vpop.f32.mrb[0].mxu0
        %v1097 = vadd.f32 %v771, %v1096
        %v1098 = vpop.f32.mrb[0].mxu0
        %v1099 = vadd.f32 %v775, %v1098
        %v1100 = vpop.f32.mrb[0].mxu0
        %v1101 = vadd.f32 %v771, %v1100
        %v1102 = vpop.f32.mrb[0].mxu0
        %v1103 = vadd.f32 %v775, %v1102
        %1104 = vmatprep.mubr.bf16.mxu0 0
        %1105 = vmatmul.mubr.bf16.gmra.mrb[0].mxu0 %v825
        %v1106 = vpop.f32.mrb[0].mxu0
        %v1107 = vadd.f32 %v771, %v1106
        %v1108 = vpop.f32.mrb[0].mxu0
        %v1109 = vadd.f32 %v775, %v1108
        %v1110 = vpop.f32.mrb[0].mxu0
        %v1111 = vadd.f32 %v771, %v1110
        %v1112 = vpop.f32.mrb[0].mxu0
        %v1113 = vadd.f32 %v775, %v1112
        %1114 = vmatprep.mubr.bf16.mxu0 0
        %1115 = vmatmul.mubr.bf16.gmra.mrb[0].mxu0 %v828
        %v1116 = vpop.f32.mrb[0].mxu0
        %v1117 = vadd.f32 %v771, %v1116
        %v1118 = vpop.f32.mrb[0].mxu0
        %v1119 = vadd.f32 %v775, %v1118
        %v1120 = vpop.f32.mrb[0].mxu0
        %v1121 = vadd.f32 %v771, %v1120
        %v1122 = vpop.f32.mrb[0].mxu0
        %v1123 = vadd.f32 %v775, %v1122
        %1124 = vmatprep.mubr.bf16.mxu0 0
        %1125 = vmatmul.mubr.bf16.gmra.mrb[0].mxu0 %v831
        %v1126 = vpop.f32.mrb[0].mxu0
        %v1127 = vadd.f32 %v771, %v1126
        %v1128 = vpop.f32.mrb[0].mxu0
        %v1129 = vadd.f32 %v775, %v1128
        %v1130 = vpop.f32.mrb[0].mxu0
        %v1131 = vadd.f32 %v771, %v1130
        %v1132 = vpop.f32.mrb[0].mxu0
        %v1133 = vadd.f32 %v775, %v1132
        %1134 = vmatprep.mubr.bf16.mxu0 0
        %1135 = vmatmul.mubr.bf16.gmra.mrb[0].mxu0 %v834
        %v1136 = vpop.f32.mrb[0].mxu0
        %v1137 = vadd.f32 %v771, %v1136
        %v1138 = vpop.f32.mrb[0].mxu0
        %v1139 = vadd.f32 %v775, %v1138
        %v1140 = vpop.f32.mrb[0].mxu0
        %v1141 = vadd.f32 %v771, %v1140
        %v1142 = vpop.f32.mrb[0].mxu0
        %v1143 = vadd.f32 %v775, %v1142
        %1144 = vmatprep.mubr.bf16.mxu0 0
        %1145 = vmatmul.mubr.bf16.gmra.mrb[0].mxu0 %v837
        %v1146 = vpop.f32.mrb[0].mxu0
        %v1147 = vadd.f32 %v771, %v1146
        %v1148 = vpop.f32.mrb[0].mxu0
        %v1149 = vadd.f32 %v775, %v1148
        %v1150 = vpop.f32.mrb[0].mxu0
        %v1151 = vadd.f32 %v771, %v1150
        %v1152 = vpop.f32.mrb[0].mxu0
        %v1153 = vadd.f32 %v775, %v1152
        %1154 = vmatprep.mubr.bf16.mxu0 0
        %1155 = vmatmul.mubr.bf16.gmra.mrb[0].mxu0 %v840
        %v1156 = vpop.f32.mrb[0].mxu0
        %v1157 = vadd.f32 %v771, %v1156
        %v1158 = vpop.f32.mrb[0].mxu0
        %v1159 = vadd.f32 %v775, %v1158
        %v1160 = vpop.f32.mrb[0].mxu0
        %v1161 = vadd.f32 %v771, %v1160
        %v1162 = vpop.f32.mrb[0].mxu0
        %v1163 = vadd.f32 %v775, %v1162
        %1164 = vmatprep.mubr.bf16.mxu0 0
        %1165 = vmatmul.mubr.bf16.gmra.mrb[0].mxu0 %v843
        %v1166 = vpop.f32.mrb[0].mxu0
        %v1167 = vadd.f32 %v771, %v1166
        %v1168 = vpop.f32.mrb[0].mxu0
        %v1169 = vadd.f32 %v775, %v1168
        %v1170 = vpop.f32.mrb[0].mxu0
        %v1171 = vadd.f32 %v771, %v1170
        %v1172 = vpop.f32.mrb[0].mxu0
        %v1173 = vadd.f32 %v775, %v1172
        %1174 = vmatprep.mubr.bf16.mxu0 0
        %1175 = vmatmul.mubr.bf16.gmra.mrb[0].mxu0 %v846
        %v1176 = vpop.f32.mrb[0].mxu0
        %v1177 = vadd.f32 %v771, %v1176
        %v1178 = vpop.f32.mrb[0].mxu0
        %v1179 = vadd.f32 %v775, %v1178
        %v1180 = vpop.f32.mrb[0].mxu0
        %v1181 = vadd.f32 %v771, %v1180
        %v1182 = vpop.f32.mrb[0].mxu0
        %v1183 = vadd.f32 %v775, %v1182
        %1184 = vmatprep.mubr.bf16.mxu0 0
        %1185 = vmatmul.mubr.bf16.gmra.mrb[0].mxu0 %v849
        %v1186 = vpop.f32.mrb[0].mxu0
        %v1187 = vadd.f32 %v771, %v1186
        %v1188 = vpop.f32.mrb[0].mxu0
        %v1189 = vadd.f32 %v775, %v1188
        %v1190 = vpop.f32.mrb[0].mxu0
        %v1191 = vadd.f32 %v771, %v1190
        %v1192 = vpop.f32.mrb[0].mxu0
        %v1193 = vadd.f32 %v775, %v1192
        %1194 = vmatprep.mubr.bf16.mxu0 0
        %1195 = vmatmul.mubr.bf16.gmra.mrb[0].mxu0 %v852
        %v1196 = vpop.f32.mrb[0].mxu0
        %v1197 = vadd.f32 %v771, %v1196
        %v1198 = vpop.f32.mrb[0].mxu0
        %v1199 = vadd.f32 %v775, %v1198
        %v1200 = vpop.f32.mrb[0].mxu0
        %v1201 = vadd.f32 %v771, %v1200
        %v1202 = vpop.f32.mrb[0].mxu0
        %v1203 = vadd.f32 %v775, %v1202
        %1204 = vmatprep.mubr.bf16.mxu0 0
        %1205 = vmatmul.mubr.bf16.gmra.mrb[0].mxu0 %v855
        %v1206 = vpop.f32.mrb[0].mxu0
        %v1207 = vadd.f32 %v771, %v1206
        %v1208 = vpop.f32.mrb[0].mxu0
        %v1209 = vadd.f32 %v775, %v1208
        %v1210 = vpop.f32.mrb[0].mxu0
        %v1211 = vadd.f32 %v771, %v1210
        %v1212 = vpop.f32.mrb[0].mxu0
        %v1213 = vadd.f32 %v775, %v1212
        %1214 = vmatprep.mubr.bf16.mxu0 0
        %1215 = vmatmul.mubr.bf16.gmra.mrb[0].mxu0 %v858
        %v1216 = vpop.f32.mrb[0].mxu0
        %v1217 = vadd.f32 %v771, %v1216
        %v1218 = vpop.f32.mrb[0].mxu0
        %v1219 = vadd.f32 %v775, %v1218
        %v1220 = vpop.f32.mrb[0].mxu0
        %v1221 = vadd.f32 %v771, %v1220
        %v1222 = vpop.f32.mrb[0].mxu0
        %v1223 = vadd.f32 %v775, %v1222
        %1224 = vmatprep.mubr.bf16.mxu0 0
        %1225 = vmatmul.mubr.bf16.gmra.mrb[0].mxu0 %v861
        %v1226 = vpop.f32.mrb[0].mxu0
        %v1227 = vadd.f32 %v771, %v1226
        %v1228 = vpop.f32.mrb[0].mxu0
        %v1229 = vadd.f32 %v775, %v1228
        %v1230 = vpop.f32.mrb[0].mxu0
        %v1231 = vadd.f32 %v771, %v1230
        %v1232 = vpop.f32.mrb[0].mxu0
        %v1233 = vadd.f32 %v775, %v1232
        %1234 = vmatprep.mubr.bf16.mxu0 0
        %1235 = vmatmul.mubr.bf16.gmra.mrb[0].mxu0 %v864
        %v1236 = vpop.f32.mrb[0].mxu0
        %v1237 = vadd.f32 %v771, %v1236
        %v1238 = vpop.f32.mrb[0].mxu0
        %v1239 = vadd.f32 %v775, %v1238
        %v1240 = vpop.f32.mrb[0].mxu0
        %v1241 = vadd.f32 %v771, %v1240
        %v1242 = vpop.f32.mrb[0].mxu0
        %v1243 = vadd.f32 %v775, %v1242
        %1244 = vmatprep.mubr.bf16.mxu0 0
        %1245 = vmatmul.mubr.bf16.gmra.mrb[0].mxu0 %v867
        %v1246 = vpop.f32.mrb[0].mxu0
        %v1247 = vadd.f32 %v771, %v1246
        %v1248 = vpop.f32.mrb[0].mxu0
        %v1249 = vadd.f32 %v775, %v1248
        %v1250 = vpop.f32.mrb[0].mxu0
        %v1251 = vadd.f32 %v771, %v1250
        %v1252 = vpop.f32.mrb[0].mxu0
        %v1253 = vadd.f32 %v775, %v1252
        %1254 = vdwg.mxu0
        %v1255 = vmax.f32 %v904, 0.0
        %v1256 = vmax.f32 %v906, 0.0
        %v1257 = vmax.f32 %v1097, 0.0
        %v1258 = vmax.f32 %v1099, 0.0
        %v1259 = vmax.f32 %v908, 0.0
        %v1260 = vmax.f32 %v910, 0.0
        %v1261 = vmax.f32 %v1101, 0.0
        %v1262 = vmax.f32 %v1103, 0.0
        %v1263 = vmax.f32 %v914, 0.0
        %v1264 = vmax.f32 %v916, 0.0
        %v1265 = vmax.f32 %v1107, 0.0
        %v1266 = vmax.f32 %v1109, 0.0
        %v1267 = vmax.f32 %v918, 0.0
        %v1268 = vmax.f32 %v920, 0.0
        %v1269 = vmax.f32 %v1111, 0.0
        %v1270 = vmax.f32 %v1113, 0.0
        %v1271 = vmax.f32 %v924, 0.0
        %v1272 = vmax.f32 %v926, 0.0
        %v1273 = vmax.f32 %v1117, 0.0
        %v1274 = vmax.f32 %v1119, 0.0
        %v1275 = vmax.f32 %v928, 0.0
        %v1276 = vmax.f32 %v930, 0.0
        %v1277 = vmax.f32 %v1121, 0.0
        %v1278 = vmax.f32 %v1123, 0.0
        %v1279 = vmax.f32 %v934, 0.0
        %v1280 = vmax.f32 %v936, 0.0
        %v1281 = vmax.f32 %v1127, 0.0
        %v1282 = vmax.f32 %v1129, 0.0
        %v1283 = vmax.f32 %v938, 0.0
        %v1284 = vmax.f32 %v940, 0.0
        %v1285 = vmax.f32 %v1131, 0.0
        %v1286 = vmax.f32 %v1133, 0.0
        %v1287 = vmax.f32 %v944, 0.0
        %v1288 = vmax.f32 %v946, 0.0
        %v1289 = vmax.f32 %v1137, 0.0
        %v1290 = vmax.f32 %v1139, 0.0
        %v1291 = vmax.f32 %v948, 0.0
        %v1292 = vmax.f32 %v950, 0.0
        %v1293 = vmax.f32 %v1141, 0.0
        %v1294 = vmax.f32 %v1143, 0.0
        %v1295 = vmax.f32 %v954, 0.0
        %v1296 = vmax.f32 %v956, 0.0
        %v1297 = vmax.f32 %v1147, 0.0
        %v1298 = vmax.f32 %v1149, 0.0
        %v1299 = vmax.f32 %v958, 0.0
        %v1300 = vmax.f32 %v960, 0.0
        %v1301 = vmax.f32 %v1151, 0.0
        %v1302 = vmax.f32 %v1153, 0.0
        %v1303 = vmax.f32 %v964, 0.0
        %v1304 = vmax.f32 %v966, 0.0
        %v1305 = vmax.f32 %v1157, 0.0
        %v1306 = vmax.f32 %v1159, 0.0
        %v1307 = vmax.f32 %v968, 0.0
        %v1308 = vmax.f32 %v970, 0.0
        %v1309 = vmax.f32 %v1161, 0.0
        %v1310 = vmax.f32 %v1163, 0.0
        %v1311 = vmax.f32 %v974, 0.0
        %v1312 = vmax.f32 %v976, 0.0
        %v1313 = vmax.f32 %v1167, 0.0
        %v1314 = vmax.f32 %v1169, 0.0
        %v1315 = vmax.f32 %v978, 0.0
        %v1316 = vmax.f32 %v980, 0.0
        %v1317 = vmax.f32 %v1171, 0.0
        %v1318 = vmax.f32 %v1173, 0.0
        %v1319 = vmax.f32 %v984, 0.0
        %v1320 = vmax.f32 %v986, 0.0
        %v1321 = vmax.f32 %v1177, 0.0
        %v1322 = vmax.f32 %v1179, 0.0
        %v1323 = vmax.f32 %v988, 0.0
        %v1324 = vmax.f32 %v990, 0.0
        %v1325 = vmax.f32 %v1181, 0.0
        %v1326 = vmax.f32 %v1183, 0.0
        %v1327 = vmax.f32 %v994, 0.0
        %v1328 = vmax.f32 %v996, 0.0
        %v1329 = vmax.f32 %v1187, 0.0
        %v1330 = vmax.f32 %v1189, 0.0
        %v1331 = vmax.f32 %v998, 0.0
        %v1332 = vmax.f32 %v1000, 0.0
        %v1333 = vmax.f32 %v1191, 0.0
        %v1334 = vmax.f32 %v1193, 0.0
        %v1335 = vmax.f32 %v1004, 0.0
        %v1336 = vmax.f32 %v1006, 0.0
        %v1337 = vmax.f32 %v1197, 0.0
        %v1338 = vmax.f32 %v1199, 0.0
        %v1339 = vmax.f32 %v1008, 0.0
        %v1340 = vmax.f32 %v1010, 0.0
        %v1341 = vmax.f32 %v1201, 0.0
        %v1342 = vmax.f32 %v1203, 0.0
        %v1343 = vmax.f32 %v1014, 0.0
        %v1344 = vmax.f32 %v1016, 0.0
        %v1345 = vmax.f32 %v1207, 0.0
        %v1346 = vmax.f32 %v1209, 0.0
        %v1347 = vmax.f32 %v1018, 0.0
        %v1348 = vmax.f32 %v1020, 0.0
        %v1349 = vmax.f32 %v1211, 0.0
        %v1350 = vmax.f32 %v1213, 0.0
        %v1351 = vmax.f32 %v1024, 0.0
        %v1352 = vmax.f32 %v1026, 0.0
        %v1353 = vmax.f32 %v1217, 0.0
        %v1354 = vmax.f32 %v1219, 0.0
        %v1355 = vmax.f32 %v1028, 0.0
        %v1356 = vmax.f32 %v1030, 0.0
        %v1357 = vmax.f32 %v1221, 0.0
        %v1358 = vmax.f32 %v1223, 0.0
        %v1359 = vmax.f32 %v1034, 0.0
        %v1360 = vmax.f32 %v1036, 0.0
        %v1361 = vmax.f32 %v1227, 0.0
        %v1362 = vmax.f32 %v1229, 0.0
        %v1363 = vmax.f32 %v1038, 0.0
        %v1364 = vmax.f32 %v1040, 0.0
        %v1365 = vmax.f32 %v1231, 0.0
        %v1366 = vmax.f32 %v1233, 0.0
        %v1367 = vmax.f32 %v1044, 0.0
        %v1368 = vmax.f32 %v1046, 0.0
        %v1369 = vmax.f32 %v1237, 0.0
        %v1370 = vmax.f32 %v1239, 0.0
        %v1371 = vmax.f32 %v1048, 0.0
        %v1372 = vmax.f32 %v1050, 0.0
        %v1373 = vmax.f32 %v1241, 0.0
        %v1374 = vmax.f32 %v1243, 0.0
        %v1375 = vmax.f32 %v1054, 0.0
        %v1376 = vmax.f32 %v1056, 0.0
        %v1377 = vmax.f32 %v1247, 0.0
        %v1378 = vmax.f32 %v1249, 0.0
        %v1379 = vmax.f32 %v1058, 0.0
        %v1380 = vmax.f32 %v1060, 0.0
        %v1381 = vmax.f32 %v1251, 0.0
        %v1382 = vmax.f32 %v1253, 0.0
        %v1383 = vmin.f32 %v1255, 6.0
        %v1384 = vmin.f32 %v1256, 6.0
        %v1385 = vmin.f32 %v1257, 6.0
        %v1386 = vmin.f32 %v1258, 6.0
        %v1387 = vmin.f32 %v1259, 6.0
        %v1388 = vmin.f32 %v1260, 6.0
        %v1389 = vmin.f32 %v1261, 6.0
        %v1390 = vmin.f32 %v1262, 6.0
        %v1391 = vmin.f32 %v1263, 6.0
        %v1392 = vmin.f32 %v1264, 6.0
        %v1393 = vmin.f32 %v1265, 6.0
        %v1394 = vmin.f32 %v1266, 6.0
        %v1395 = vmin.f32 %v1267, 6.0
        %v1396 = vmin.f32 %v1268, 6.0
        %v1397 = vmin.f32 %v1269, 6.0
        %v1398 = vmin.f32 %v1270, 6.0
        %v1399 = vmin.f32 %v1271, 6.0
        %v1400 = vmin.f32 %v1272, 6.0
        %v1401 = vmin.f32 %v1273, 6.0
        %v1402 = vmin.f32 %v1274, 6.0
        %v1403 = vmin.f32 %v1275, 6.0
        %v1404 = vmin.f32 %v1276, 6.0
        %v1405 = vmin.f32 %v1277, 6.0
        %v1406 = vmin.f32 %v1278, 6.0
        %v1407 = vmin.f32 %v1279, 6.0
        %v1408 = vmin.f32 %v1280, 6.0
        %v1409 = vmin.f32 %v1281, 6.0
        %v1410 = vmin.f32 %v1282, 6.0
        %v1411 = vmin.f32 %v1283, 6.0
        %v1412 = vmin.f32 %v1284, 6.0
        %v1413 = vmin.f32 %v1285, 6.0
        %v1414 = vmin.f32 %v1286, 6.0
        %v1415 = vmin.f32 %v1287, 6.0
        %v1416 = vmin.f32 %v1288, 6.0
        %v1417 = vmin.f32 %v1289, 6.0
        %v1418 = vmin.f32 %v1290, 6.0
        %v1419 = vmin.f32 %v1291, 6.0
        %v1420 = vmin.f32 %v1292, 6.0
        %v1421 = vmin.f32 %v1293, 6.0
        %v1422 = vmin.f32 %v1294, 6.0
        %v1423 = vmin.f32 %v1295, 6.0
        %v1424 = vmin.f32 %v1296, 6.0
        %v1425 = vmin.f32 %v1297, 6.0
        %v1426 = vmin.f32 %v1298, 6.0
        %v1427 = vmin.f32 %v1299, 6.0
        %v1428 = vmin.f32 %v1300, 6.0
        %v1429 = vmin.f32 %v1301, 6.0
        %v1430 = vmin.f32 %v1302, 6.0
        %v1431 = vmin.f32 %v1303, 6.0
        %v1432 = vmin.f32 %v1304, 6.0
        %v1433 = vmin.f32 %v1305, 6.0
        %v1434 = vmin.f32 %v1306, 6.0
        %v1435 = vmin.f32 %v1307, 6.0
        %v1436 = vmin.f32 %v1308, 6.0
        %v1437 = vmin.f32 %v1309, 6.0
        %v1438 = vmin.f32 %v1310, 6.0
        %v1439 = vmin.f32 %v1311, 6.0
        %v1440 = vmin.f32 %v1312, 6.0
        %v1441 = vmin.f32 %v1313, 6.0
        %v1442 = vmin.f32 %v1314, 6.0
        %v1443 = vmin.f32 %v1315, 6.0
        %v1444 = vmin.f32 %v1316, 6.0
        %v1445 = vmin.f32 %v1317, 6.0
        %v1446 = vmin.f32 %v1318, 6.0
        %v1447 = vmin.f32 %v1319, 6.0
        %v1448 = vmin.f32 %v1320, 6.0
        %v1449 = vmin.f32 %v1321, 6.0
        %v1450 = vmin.f32 %v1322, 6.0
        %v1451 = vmin.f32 %v1323, 6.0
        %v1452 = vmin.f32 %v1324, 6.0
        %v1453 = vmin.f32 %v1325, 6.0
        %v1454 = vmin.f32 %v1326, 6.0
        %v1455 = vmin.f32 %v1327, 6.0
        %v1456 = vmin.f32 %v1328, 6.0
        %v1457 = vmin.f32 %v1329, 6.0
        %v1458 = vmin.f32 %v1330, 6.0
        %v1459 = vmin.f32 %v1331, 6.0
        %v1460 = vmin.f32 %v1332, 6.0
        %v1461 = vmin.f32 %v1333, 6.0
        %v1462 = vmin.f32 %v1334, 6.0
        %v1463 = vmin.f32 %v1335, 6.0
        %v1464 = vmin.f32 %v1336, 6.0
        %v1465 = vmin.f32 %v1337, 6.0
        %v1466 = vmin.f32 %v1338, 6.0
        %v1467 = vmin.f32 %v1339, 6.0
        %v1468 = vmin.f32 %v1340, 6.0
        %v1469 = vmin.f32 %v1341, 6.0
        %v1470 = vmin.f32 %v1342, 6.0
        %v1471 = vmin.f32 %v1343, 6.0
        %v1472 = vmin.f32 %v1344, 6.0
        %v1473 = vmin.f32 %v1345, 6.0
        %v1474 = vmin.f32 %v1346, 6.0
        %v1475 = vmin.f32 %v1347, 6.0
        %v1476 = vmin.f32 %v1348, 6.0
        %v1477 = vmin.f32 %v1349, 6.0
        %v1478 = vmin.f32 %v1350, 6.0
        %v1479 = vmin.f32 %v1351, 6.0
        %v1480 = vmin.f32 %v1352, 6.0
        %v1481 = vmin.f32 %v1353, 6.0
        %v1482 = vmin.f32 %v1354, 6.0
        %v1483 = vmin.f32 %v1355, 6.0
        %v1484 = vmin.f32 %v1356, 6.0
        %v1485 = vmin.f32 %v1357, 6.0
        %v1486 = vmin.f32 %v1358, 6.0
        %v1487 = vmin.f32 %v1359, 6.0
        %v1488 = vmin.f32 %v1360, 6.0
        %v1489 = vmin.f32 %v1361, 6.0
        %v1490 = vmin.f32 %v1362, 6.0
        %v1491 = vmin.f32 %v1363, 6.0
        %v1492 = vmin.f32 %v1364, 6.0
        %v1493 = vmin.f32 %v1365, 6.0
        %v1494 = vmin.f32 %v1366, 6.0
        %v1495 = vmin.f32 %v1367, 6.0
        %v1496 = vmin.f32 %v1368, 6.0
        %v1497 = vmin.f32 %v1369, 6.0
        %v1498 = vmin.f32 %v1370, 6.0
        %v1499 = vmin.f32 %v1371, 6.0
        %v1500 = vmin.f32 %v1372, 6.0
        %v1501 = vmin.f32 %v1373, 6.0
        %v1502 = vmin.f32 %v1374, 6.0
        %v1503 = vmin.f32 %v1375, 6.0
        %v1504 = vmin.f32 %v1376, 6.0
        %v1505 = vmin.f32 %v1377, 6.0
        %v1506 = vmin.f32 %v1378, 6.0
        %v1507 = vmin.f32 %v1379, 6.0
        %v1508 = vmin.f32 %v1380, 6.0
        %v1509 = vmin.f32 %v1381, 6.0
        %v1510 = vmin.f32 %v1382, 6.0
        %v1511 = vld [vmem:[#allocation2] sm:$0xff]
        %v1512 = vld [vmem:[#allocation2 + $0x8] sm:$0xff]
        %v1513 = vld [vmem:[#allocation2 + $0x10] sm:$0xff]
        %v1514 = vld [vmem:[#allocation2 + $0x18] sm:$0xff]
        %v1515 = vadd.f32 %v1383, %v1387
        %v1516 = vadd.f32 %v1515, %v1391
        %v1517 = vadd.f32 %v1516, %v1395
        %v1518 = vadd.f32 %v1517, %v1399
        %v1519 = vadd.f32 %v1518, %v1403
        %v1520 = vadd.f32 %v1519, %v1407
        %v1521 = vadd.f32 %v1520, %v1411
        %v1522 = vadd.f32 %v1521, %v1415
        %v1523 = vadd.f32 %v1522, %v1419
        %v1524 = vadd.f32 %v1523, %v1423
        %v1525 = vadd.f32 %v1524, %v1427
        %v1526 = vadd.f32 %v1525, %v1431
        %v1527 = vadd.f32 %v1526, %v1435
        %v1528 = vadd.f32 %v1527, %v1439
        %v1529 = vadd.f32 %v1528, %v1443
        %v1530 = vadd.f32 %v1529, %v1447
        %v1531 = vadd.f32 %v1530, %v1451
        %v1532 = vadd.f32 %v1531, %v1455
        %v1533 = vadd.f32 %v1532, %v1459
        %v1534 = vadd.f32 %v1533, %v1463
        %v1535 = vadd.f32 %v1534, %v1467
        %v1536 = vadd.f32 %v1535, %v1471
        %v1537 = vadd.f32 %v1536, %v1475
        %v1538 = vadd.f32 %v1537, %v1479
        %v1539 = vadd.f32 %v1538, %v1483
        %v1540 = vadd.f32 %v1539, %v1487
        %v1541 = vadd.f32 %v1540, %v1491
        %v1542 = vadd.f32 %v1541, %v1495
        %v1543 = vadd.f32 %v1542, %v1499
        %v1544 = vadd.f32 %v1543, %v1503
        %v1545 = vadd.f32 %v1544, %v1507
        %v1546 = vadd.f32 %v1384, %v1388
        %v1547 = vadd.f32 %v1546, %v1392
        %v1548 = vadd.f32 %v1547, %v1396
        %v1549 = vadd.f32 %v1548, %v1400
        %v1550 = vadd.f32 %v1549, %v1404
        %v1551 = vadd.f32 %v1550, %v1408
        %v1552 = vadd.f32 %v1551, %v1412
        %v1553 = vadd.f32 %v1552, %v1416
        %v1554 = vadd.f32 %v1553, %v1420
        %v1555 = vadd.f32 %v1554, %v1424
        %v1556 = vadd.f32 %v1555, %v1428
        %v1557 = vadd.f32 %v1556, %v1432
        %v1558 = vadd.f32 %v1557, %v1436
        %v1559 = vadd.f32 %v1558, %v1440
        %v1560 = vadd.f32 %v1559, %v1444
        %v1561 = vadd.f32 %v1560, %v1448
        %v1562 = vadd.f32 %v1561, %v1452
        %v1563 = vadd.f32 %v1562, %v1456
        %v1564 = vadd.f32 %v1563, %v1460
        %v1565 = vadd.f32 %v1564, %v1464
        %v1566 = vadd.f32 %v1565, %v1468
        %v1567 = vadd.f32 %v1566, %v1472
        %v1568 = vadd.f32 %v1567, %v1476
        %v1569 = vadd.f32 %v1568, %v1480
        %v1570 = vadd.f32 %v1569, %v1484
        %v1571 = vadd.f32 %v1570, %v1488
        %v1572 = vadd.f32 %v1571, %v1492
        %v1573 = vadd.f32 %v1572, %v1496
        %v1574 = vadd.f32 %v1573, %v1500
        %v1575 = vadd.f32 %v1574, %v1504
        %v1576 = vadd.f32 %v1575, %v1508
        %v1577 = vadd.f32 %v1385, %v1389
        %v1578 = vadd.f32 %v1577, %v1393
        %v1579 = vadd.f32 %v1578, %v1397
        %v1580 = vadd.f32 %v1579, %v1401
        %v1581 = vadd.f32 %v1580, %v1405
        %v1582 = vadd.f32 %v1581, %v1409
        %v1583 = vadd.f32 %v1582, %v1413
        %v1584 = vadd.f32 %v1583, %v1417
        %v1585 = vadd.f32 %v1584, %v1421
        %v1586 = vadd.f32 %v1585, %v1425
        %v1587 = vadd.f32 %v1586, %v1429
        %v1588 = vadd.f32 %v1587, %v1433
        %v1589 = vadd.f32 %v1588, %v1437
        %v1590 = vadd.f32 %v1589, %v1441
        %v1591 = vadd.f32 %v1590, %v1445
        %v1592 = vadd.f32 %v1591, %v1449
        %v1593 = vadd.f32 %v1592, %v1453
        %v1594 = vadd.f32 %v1593, %v1457
        %v1595 = vadd.f32 %v1594, %v1461
        %v1596 = vadd.f32 %v1595, %v1465
        %v1597 = vadd.f32 %v1596, %v1469
        %v1598 = vadd.f32 %v1597, %v1473
        %v1599 = vadd.f32 %v1598, %v1477
        %v1600 = vadd.f32 %v1599, %v1481
        %v1601 = vadd.f32 %v1600, %v1485
        %v1602 = vadd.f32 %v1601, %v1489
        %v1603 = vadd.f32 %v1602, %v1493
        %v1604 = vadd.f32 %v1603, %v1497
        %v1605 = vadd.f32 %v1604, %v1501
        %v1606 = vadd.f32 %v1605, %v1505
        %v1607 = vadd.f32 %v1606, %v1509
        %v1608 = vadd.f32 %v1386, %v1390
        %v1609 = vadd.f32 %v1608, %v1394
        %v1610 = vadd.f32 %v1609, %v1398
        %v1611 = vadd.f32 %v1610, %v1402
        %v1612 = vadd.f32 %v1611, %v1406
        %v1613 = vadd.f32 %v1612, %v1410
        %v1614 = vadd.f32 %v1613, %v1414
        %v1615 = vadd.f32 %v1614, %v1418
        %v1616 = vadd.f32 %v1615, %v1422
        %v1617 = vadd.f32 %v1616, %v1426
        %v1618 = vadd.f32 %v1617, %v1430
        %v1619 = vadd.f32 %v1618, %v1434
        %v1620 = vadd.f32 %v1619, %v1438
        %v1621 = vadd.f32 %v1620, %v1442
        %v1622 = vadd.f32 %v1621, %v1446
        %v1623 = vadd.f32 %v1622, %v1450
        %v1624 = vadd.f32 %v1623, %v1454
        %v1625 = vadd.f32 %v1624, %v1458
        %v1626 = vadd.f32 %v1625, %v1462
        %v1627 = vadd.f32 %v1626, %v1466
        %v1628 = vadd.f32 %v1627, %v1470
        %v1629 = vadd.f32 %v1628, %v1474
        %v1630 = vadd.f32 %v1629, %v1478
        %v1631 = vadd.f32 %v1630, %v1482
        %v1632 = vadd.f32 %v1631, %v1486
        %v1633 = vadd.f32 %v1632, %v1490
        %v1634 = vadd.f32 %v1633, %v1494
        %v1635 = vadd.f32 %v1634, %v1498
        %v1636 = vadd.f32 %v1635, %v1502
        %v1637 = vadd.f32 %v1636, %v1506
        %v1638 = vadd.f32 %v1637, %v1510
        %v1639 = vadd.f32 %v1511, %v1545
        %v1640 = vadd.f32 %v1512, %v1576
        %v1641 = vadd.f32 %v1513, %v1607
        %v1642 = vadd.f32 %v1514, %v1638
        %1643 = vst [vmem:[#allocation2] sm:$0xff] %v1639
        %1644 = vst [vmem:[#allocation2 + $0x8] sm:$0xff] %v1640
        %1645 = vst [vmem:[#allocation2 + $0x10] sm:$0xff] %v1641
        %1646 = vst [vmem:[#allocation2 + $0x18] sm:$0xff] %v1642
        %v1647 = vld [vmem:[%s3 + $0x10] sm:$0xff]
        %v1648 = vld [vmem:[%s3 + $0x18] sm:$0xff]
        %v1649 = vld [vmem:[%s3 + $0x38] sm:$0xff]
        %v1650 = vld [vmem:[%s3 + $0x40] sm:$0xff]
        %v1651 = vld [vmem:[%s3 + $0x60] sm:$0xff]
        %v1652 = vld [vmem:[%s3 + $0x68] sm:$0xff]
        %v1653 = vld [vmem:[%s3 + $0x88] sm:$0xff]
        %v1654 = vld [vmem:[%s3 + $0x90] sm:$0xff]
        %v1655 = vld [vmem:[%s4 + $0x4] sm:$0xf]
        %v1657 = vlaneseq
        %v1658 = vshrl.u32 %v1657, 7
        %v1659 = vsub.s32 0, %v1658
        %v1660 = vrot.slane %v1655, %v1659
        %v1661 = vlaneseq
        %v1662 = vshrl.u32 %v1661, 7
        %v1663 = vsub.s32 1, %v1662
        %v1664 = vrot.slane %v1655, %v1663
        %v1665 = vlaneseq
        %v1666 = vshrl.u32 %v1665, 7
        %v1667 = vsub.s32 2, %v1666
        %v1668 = vrot.slane %v1655, %v1667
        %v1669 = vlaneseq
        %v1670 = vshrl.u32 %v1669, 7
        %v1671 = vsub.s32 3, %v1670
        %v1672 = vrot.slane %v1655, %v1671
        %v1685 = vunpack.c.l.b16 %v1647
        %v1686 = vunpack.c.h.b16 %v1647
        %v1687 = vunpack.c.l.b16 %v1648
        %v1688 = vunpack.c.h.b16 %v1648
        %v1689 = vunpack.c.l.b16 %v1649
        %v1690 = vunpack.c.h.b16 %v1649
        %v1691 = vunpack.c.l.b16 %v1650
        %v1692 = vunpack.c.h.b16 %v1650
        %v1693 = vunpack.c.l.b16 %v1651
        %v1694 = vunpack.c.h.b16 %v1651
        %v1695 = vunpack.c.l.b16 %v1652
        %v1696 = vunpack.c.h.b16 %v1652
        %v1697 = vunpack.c.l.b16 %v1653
        %v1698 = vunpack.c.h.b16 %v1653
        %v1699 = vunpack.c.l.b16 %v1654
        %v1700 = vunpack.c.h.b16 %v1654
        %v1701 = vpack.c.b16 %v1689, %v1685
        %v1702 = vpack.c.b16 %v1690, %v1686
        %v1703 = vpack.c.b16 %v1691, %v1687
        %v1704 = vpack.c.b16 %v1692, %v1688
        %v1705 = vpack.c.b16 %v1697, %v1693
        %v1706 = vpack.c.b16 %v1698, %v1694
        %v1707 = vpack.c.b16 %v1699, %v1695
        %v1708 = vpack.c.b16 %v1700, %v1696
        %1717 = vmatprep.subr.bf16.mxu0 %v1702
        %1718 = vmatpush1.bf16.msra.mxu0 %v1701
        %1719 = vmatprep.subr.bf16.mxu0 %v1706
        %1720 = vmatpush1.bf16.msra.mxu0 %v1705
        %1721 = vmatprep.subr.bf16.mxu0 0
        %1722 = vmatpush1.bf16.msra.mxu0 0
        %1723 = vmatprep.subr.bf16.mxu0 0
        %1724 = vmatpush1.bf16.msra.mxu0 0
        %1725 = vmatprep.subr.bf16.mxu0 0
        %1726 = vmatpush1.bf16.msra.mxu0 0
        %1727 = vmatprep.subr.bf16.mxu0 0
        %1728 = vmatpush1.bf16.msra.mxu0 0
        %1729 = vmatprep.subr.bf16.mxu0 0
        %1730 = vmatpush1.bf16.msra.mxu0 0
        %1731 = vmatprep.subr.bf16.mxu0 0
        %1732 = vmatpush1.bf16.msra.mxu0 0
        %1733 = vmatprep.subr.bf16.mxu0 0
        %1734 = vmatpush1.bf16.msra.mxu0 0
        %1735 = vmatprep.subr.bf16.mxu0 0
        %1736 = vmatpush1.bf16.msra.mxu0 0
        %1737 = vmatprep.subr.bf16.mxu0 0
        %1738 = vmatpush1.bf16.msra.mxu0 0
        %1739 = vmatprep.subr.bf16.mxu0 0
        %1740 = vmatpush1.bf16.msra.mxu0 0
        %1741 = vmatprep.subr.bf16.mxu0 0
        %1742 = vmatpush1.bf16.msra.mxu0 0
        %1743 = vmatprep.subr.bf16.mxu0 0
        %1744 = vmatpush1.bf16.msra.mxu0 0
        %1745 = vmatprep.subr.bf16.mxu0 0
        %1746 = vmatpush1.bf16.msra.mxu0 0
        %1747 = vmatprep.subr.bf16.mxu0 0
        %1748 = vmatpush1.bf16.msra.mxu0 0
        %1749 = vmatprep.mubr.bf16.mxu0 0
        %1750 = vmatmul.mubr.bf16.gmra.mrb[0].mxu0 %v822
        %v1751 = vpop.f32.mrb[0].mxu0
        %v1752 = vadd.f32 %v1660, %v1751
        %v1753 = vpop.f32.mrb[0].mxu0
        %v1754 = vadd.f32 %v1664, %v1753
        %v1755 = vpop.f32.mrb[0].mxu0
        %v1756 = vadd.f32 %v1660, %v1755
        %v1757 = vpop.f32.mrb[0].mxu0
        %v1758 = vadd.f32 %v1664, %v1757
        %1759 = vmatprep.mubr.bf16.mxu0 0
        %1760 = vmatmul.mubr.bf16.gmra.mrb[0].mxu0 %v825
        %v1761 = vpop.f32.mrb[0].mxu0
        %v1762 = vadd.f32 %v1660, %v1761
        %v1763 = vpop.f32.mrb[0].mxu0
        %v1764 = vadd.f32 %v1664, %v1763
        %v1765 = vpop.f32.mrb[0].mxu0
        %v1766 = vadd.f32 %v1660, %v1765
        %v1767 = vpop.f32.mrb[0].mxu0
        %v1768 = vadd.f32 %v1664, %v1767
        %1769 = vmatprep.mubr.bf16.mxu0 0
        %1770 = vmatmul.mubr.bf16.gmra.mrb[0].mxu0 %v828
        %v1771 = vpop.f32.mrb[0].mxu0
        %v1772 = vadd.f32 %v1660, %v1771
        %v1773 = vpop.f32.mrb[0].mxu0
        %v1774 = vadd.f32 %v1664, %v1773
        %v1775 = vpop.f32.mrb[0].mxu0
        %v1776 = vadd.f32 %v1660, %v1775
        %v1777 = vpop.f32.mrb[0].mxu0
        %v1778 = vadd.f32 %v1664, %v1777
        %1779 = vmatprep.mubr.bf16.mxu0 0
        %1780 = vmatmul.mubr.bf16.gmra.mrb[0].mxu0 %v831
        %v1781 = vpop.f32.mrb[0].mxu0
        %v1782 = vadd.f32 %v1660, %v1781
        %v1783 = vpop.f32.mrb[0].mxu0
        %v1784 = vadd.f32 %v1664, %v1783
        %v1785 = vpop.f32.mrb[0].mxu0
        %v1786 = vadd.f32 %v1660, %v1785
        %v1787 = vpop.f32.mrb[0].mxu0
        %v1788 = vadd.f32 %v1664, %v1787
        %1789 = vmatprep.mubr.bf16.mxu0 0
        %1790 = vmatmul.mubr.bf16.gmra.mrb[0].mxu0 %v834
        %v1791 = vpop.f32.mrb[0].mxu0
        %v1792 = vadd.f32 %v1660, %v1791
        %v1793 = vpop.f32.mrb[0].mxu0
        %v1794 = vadd.f32 %v1664, %v1793
        %v1795 = vpop.f32.mrb[0].mxu0
        %v1796 = vadd.f32 %v1660, %v1795
        %v1797 = vpop.f32.mrb[0].mxu0
        %v1798 = vadd.f32 %v1664, %v1797
        %1799 = vmatprep.mubr.bf16.mxu0 0
        %1800 = vmatmul.mubr.bf16.gmra.mrb[0].mxu0 %v837
        %v1801 = vpop.f32.mrb[0].mxu0
        %v1802 = vadd.f32 %v1660, %v1801
        %v1803 = vpop.f32.mrb[0].mxu0
        %v1804 = vadd.f32 %v1664, %v1803
        %v1805 = vpop.f32.mrb[0].mxu0
        %v1806 = vadd.f32 %v1660, %v1805
        %v1807 = vpop.f32.mrb[0].mxu0
        %v1808 = vadd.f32 %v1664, %v1807
        %1809 = vmatprep.mubr.bf16.mxu0 0
        %1810 = vmatmul.mubr.bf16.gmra.mrb[0].mxu0 %v840
        %v1811 = vpop.f32.mrb[0].mxu0
        %v1812 = vadd.f32 %v1660, %v1811
        %v1813 = vpop.f32.mrb[0].mxu0
        %v1814 = vadd.f32 %v1664, %v1813
        %v1815 = vpop.f32.mrb[0].mxu0
        %v1816 = vadd.f32 %v1660, %v1815
        %v1817 = vpop.f32.mrb[0].mxu0
        %v1818 = vadd.f32 %v1664, %v1817
        %1819 = vmatprep.mubr.bf16.mxu0 0
        %1820 = vmatmul.mubr.bf16.gmra.mrb[0].mxu0 %v843
        %v1821 = vpop.f32.mrb[0].mxu0
        %v1822 = vadd.f32 %v1660, %v1821
        %v1823 = vpop.f32.mrb[0].mxu0
        %v1824 = vadd.f32 %v1664, %v1823
        %v1825 = vpop.f32.mrb[0].mxu0
        %v1826 = vadd.f32 %v1660, %v1825
        %v1827 = vpop.f32.mrb[0].mxu0
        %v1828 = vadd.f32 %v1664, %v1827
        %1829 = vmatprep.mubr.bf16.mxu0 0
        %1830 = vmatmul.mubr.bf16.gmra.mrb[0].mxu0 %v846
        %v1831 = vpop.f32.mrb[0].mxu0
        %v1832 = vadd.f32 %v1660, %v1831
        %v1833 = vpop.f32.mrb[0].mxu0
        %v1834 = vadd.f32 %v1664, %v1833
        %v1835 = vpop.f32.mrb[0].mxu0
        %v1836 = vadd.f32 %v1660, %v1835
        %v1837 = vpop.f32.mrb[0].mxu0
        %v1838 = vadd.f32 %v1664, %v1837
        %1839 = vmatprep.mubr.bf16.mxu0 0
        %1840 = vmatmul.mubr.bf16.gmra.mrb[0].mxu0 %v849
        %v1841 = vpop.f32.mrb[0].mxu0
        %v1842 = vadd.f32 %v1660, %v1841
        %v1843 = vpop.f32.mrb[0].mxu0
        %v1844 = vadd.f32 %v1664, %v1843
        %v1845 = vpop.f32.mrb[0].mxu0
        %v1846 = vadd.f32 %v1660, %v1845
        %v1847 = vpop.f32.mrb[0].mxu0
        %v1848 = vadd.f32 %v1664, %v1847
        %1849 = vmatprep.mubr.bf16.mxu0 0
        %1850 = vmatmul.mubr.bf16.gmra.mrb[0].mxu0 %v852
        %v1851 = vpop.f32.mrb[0].mxu0
        %v1852 = vadd.f32 %v1660, %v1851
        %v1853 = vpop.f32.mrb[0].mxu0
        %v1854 = vadd.f32 %v1664, %v1853
        %v1855 = vpop.f32.mrb[0].mxu0
        %v1856 = vadd.f32 %v1660, %v1855
        %v1857 = vpop.f32.mrb[0].mxu0
        %v1858 = vadd.f32 %v1664, %v1857
        %1859 = vmatprep.mubr.bf16.mxu0 0
        %1860 = vmatmul.mubr.bf16.gmra.mrb[0].mxu0 %v855
        %v1861 = vpop.f32.mrb[0].mxu0
        %v1862 = vadd.f32 %v1660, %v1861
        %v1863 = vpop.f32.mrb[0].mxu0
        %v1864 = vadd.f32 %v1664, %v1863
        %v1865 = vpop.f32.mrb[0].mxu0
        %v1866 = vadd.f32 %v1660, %v1865
        %v1867 = vpop.f32.mrb[0].mxu0
        %v1868 = vadd.f32 %v1664, %v1867
        %1869 = vmatprep.mubr.bf16.mxu0 0
        %1870 = vmatmul.mubr.bf16.gmra.mrb[0].mxu0 %v858
        %v1871 = vpop.f32.mrb[0].mxu0
        %v1872 = vadd.f32 %v1660, %v1871
        %v1873 = vpop.f32.mrb[0].mxu0
        %v1874 = vadd.f32 %v1664, %v1873
        %v1875 = vpop.f32.mrb[0].mxu0
        %v1876 = vadd.f32 %v1660, %v1875
        %v1877 = vpop.f32.mrb[0].mxu0
        %v1878 = vadd.f32 %v1664, %v1877
        %1879 = vmatprep.mubr.bf16.mxu0 0
        %1880 = vmatmul.mubr.bf16.gmra.mrb[0].mxu0 %v861
        %v1881 = vpop.f32.mrb[0].mxu0
        %v1882 = vadd.f32 %v1660, %v1881
        %v1883 = vpop.f32.mrb[0].mxu0
        %v1884 = vadd.f32 %v1664, %v1883
        %v1885 = vpop.f32.mrb[0].mxu0
        %v1886 = vadd.f32 %v1660, %v1885
        %v1887 = vpop.f32.mrb[0].mxu0
        %v1888 = vadd.f32 %v1664, %v1887
        %1889 = vmatprep.mubr.bf16.mxu0 0
        %1890 = vmatmul.mubr.bf16.gmra.mrb[0].mxu0 %v864
        %v1891 = vpop.f32.mrb[0].mxu0
        %v1892 = vadd.f32 %v1660, %v1891
        %v1893 = vpop.f32.mrb[0].mxu0
        %v1894 = vadd.f32 %v1664, %v1893
        %v1895 = vpop.f32.mrb[0].mxu0
        %v1896 = vadd.f32 %v1660, %v1895
        %v1897 = vpop.f32.mrb[0].mxu0
        %v1898 = vadd.f32 %v1664, %v1897
        %1899 = vmatprep.mubr.bf16.mxu0 0
        %1900 = vmatmul.mubr.bf16.gmra.mrb[0].mxu0 %v867
        %v1901 = vpop.f32.mrb[0].mxu0
        %v1902 = vadd.f32 %v1660, %v1901
        %v1903 = vpop.f32.mrb[0].mxu0
        %v1904 = vadd.f32 %v1664, %v1903
        %v1905 = vpop.f32.mrb[0].mxu0
        %v1906 = vadd.f32 %v1660, %v1905
        %v1907 = vpop.f32.mrb[0].mxu0
        %v1908 = vadd.f32 %v1664, %v1907
        %1909 = vdwg.mxu0
        %1910 = vmatprep.subr.bf16.mxu0 %v1704
        %1911 = vmatpush1.bf16.msra.mxu0 %v1703
        %1912 = vmatprep.subr.bf16.mxu0 %v1708
        %1913 = vmatpush1.bf16.msra.mxu0 %v1707
        %1914 = vmatprep.subr.bf16.mxu0 0
        %1915 = vmatpush1.bf16.msra.mxu0 0
        %1916 = vmatprep.subr.bf16.mxu0 0
        %1917 = vmatpush1.bf16.msra.mxu0 0
        %1918 = vmatprep.subr.bf16.mxu0 0
        %1919 = vmatpush1.bf16.msra.mxu0 0
        %1920 = vmatprep.subr.bf16.mxu0 0
        %1921 = vmatpush1.bf16.msra.mxu0 0
        %1922 = vmatprep.subr.bf16.mxu0 0
        %1923 = vmatpush1.bf16.msra.mxu0 0
        %1924 = vmatprep.subr.bf16.mxu0 0
        %1925 = vmatpush1.bf16.msra.mxu0 0
        %1926 = vmatprep.subr.bf16.mxu0 0
        %1927 = vmatpush1.bf16.msra.mxu0 0
        %1928 = vmatprep.subr.bf16.mxu0 0
        %1929 = vmatpush1.bf16.msra.mxu0 0
        %1930 = vmatprep.subr.bf16.mxu0 0
        %1931 = vmatpush1.bf16.msra.mxu0 0
        %1932 = vmatprep.subr.bf16.mxu0 0
        %1933 = vmatpush1.bf16.msra.mxu0 0
        %1934 = vmatprep.subr.bf16.mxu0 0
        %1935 = vmatpush1.bf16.msra.mxu0 0
        %1936 = vmatprep.subr.bf16.mxu0 0
        %1937 = vmatpush1.bf16.msra.mxu0 0
        %1938 = vmatprep.subr.bf16.mxu0 0
        %1939 = vmatpush1.bf16.msra.mxu0 0
        %1940 = vmatprep.subr.bf16.mxu0 0
        %1941 = vmatpush1.bf16.msra.mxu0 0
        %1942 = vmatprep.mubr.bf16.mxu0 0
        %1943 = vmatmul.mubr.bf16.gmra.mrb[0].mxu0 %v822
        %v1944 = vpop.f32.mrb[0].mxu0
        %v1945 = vadd.f32 %v1668, %v1944
        %v1946 = vpop.f32.mrb[0].mxu0
        %v1947 = vadd.f32 %v1672, %v1946
        %v1948 = vpop.f32.mrb[0].mxu0
        %v1949 = vadd.f32 %v1668, %v1948
        %v1950 = vpop.f32.mrb[0].mxu0
        %v1951 = vadd.f32 %v1672, %v1950
        %1952 = vmatprep.mubr.bf16.mxu0 0
        %1953 = vmatmul.mubr.bf16.gmra.mrb[0].mxu0 %v825
        %v1954 = vpop.f32.mrb[0].mxu0
        %v1955 = vadd.f32 %v1668, %v1954
        %v1956 = vpop.f32.mrb[0].mxu0
        %v1957 = vadd.f32 %v1672, %v1956
        %v1958 = vpop.f32.mrb[0].mxu0
        %v1959 = vadd.f32 %v1668, %v1958
        %v1960 = vpop.f32.mrb[0].mxu0
        %v1961 = vadd.f32 %v1672, %v1960
        %1962 = vmatprep.mubr.bf16.mxu0 0
        %1963 = vmatmul.mubr.bf16.gmra.mrb[0].mxu0 %v828
        %v1964 = vpop.f32.mrb[0].mxu0
        %v1965 = vadd.f32 %v1668, %v1964
        %v1966 = vpop.f32.mrb[0].mxu0
        %v1967 = vadd.f32 %v1672, %v1966
        %v1968 = vpop.f32.mrb[0].mxu0
        %v1969 = vadd.f32 %v1668, %v1968
        %v1970 = vpop.f32.mrb[0].mxu0
        %v1971 = vadd.f32 %v1672, %v1970
        %1972 = vmatprep.mubr.bf16.mxu0 0
        %1973 = vmatmul.mubr.bf16.gmra.mrb[0].mxu0 %v831
        %v1974 = vpop.f32.mrb[0].mxu0
        %v1975 = vadd.f32 %v1668, %v1974
        %v1976 = vpop.f32.mrb[0].mxu0
        %v1977 = vadd.f32 %v1672, %v1976
        %v1978 = vpop.f32.mrb[0].mxu0
        %v1979 = vadd.f32 %v1668, %v1978
        %v1980 = vpop.f32.mrb[0].mxu0
        %v1981 = vadd.f32 %v1672, %v1980
        %1982 = vmatprep.mubr.bf16.mxu0 0
        %1983 = vmatmul.mubr.bf16.gmra.mrb[0].mxu0 %v834
        %v1984 = vpop.f32.mrb[0].mxu0
        %v1985 = vadd.f32 %v1668, %v1984
        %v1986 = vpop.f32.mrb[0].mxu0
        %v1987 = vadd.f32 %v1672, %v1986
        %v1988 = vpop.f32.mrb[0].mxu0
        %v1989 = vadd.f32 %v1668, %v1988
        %v1990 = vpop.f32.mrb[0].mxu0
        %v1991 = vadd.f32 %v1672, %v1990
        %1992 = vmatprep.mubr.bf16.mxu0 0
        %1993 = vmatmul.mubr.bf16.gmra.mrb[0].mxu0 %v837
        %v1994 = vpop.f32.mrb[0].mxu0
        %v1995 = vadd.f32 %v1668, %v1994
        %v1996 = vpop.f32.mrb[0].mxu0
        %v1997 = vadd.f32 %v1672, %v1996
        %v1998 = vpop.f32.mrb[0].mxu0
        %v1999 = vadd.f32 %v1668, %v1998
        %v2000 = vpop.f32.mrb[0].mxu0
        %v2001 = vadd.f32 %v1672, %v2000
        %2002 = vmatprep.mubr.bf16.mxu0 0
        %2003 = vmatmul.mubr.bf16.gmra.mrb[0].mxu0 %v840
        %v2004 = vpop.f32.mrb[0].mxu0
        %v2005 = vadd.f32 %v1668, %v2004
        %v2006 = vpop.f32.mrb[0].mxu0
        %v2007 = vadd.f32 %v1672, %v2006
        %v2008 = vpop.f32.mrb[0].mxu0
        %v2009 = vadd.f32 %v1668, %v2008
        %v2010 = vpop.f32.mrb[0].mxu0
        %v2011 = vadd.f32 %v1672, %v2010
        %2012 = vmatprep.mubr.bf16.mxu0 0
        %2013 = vmatmul.mubr.bf16.gmra.mrb[0].mxu0 %v843
        %v2014 = vpop.f32.mrb[0].mxu0
        %v2015 = vadd.f32 %v1668, %v2014
        %v2016 = vpop.f32.mrb[0].mxu0
        %v2017 = vadd.f32 %v1672, %v2016
        %v2018 = vpop.f32.mrb[0].mxu0
        %v2019 = vadd.f32 %v1668, %v2018
        %v2020 = vpop.f32.mrb[0].mxu0
        %v2021 = vadd.f32 %v1672, %v2020
        %2022 = vmatprep.mubr.bf16.mxu0 0
        %2023 = vmatmul.mubr.bf16.gmra.mrb[0].mxu0 %v846
        %v2024 = vpop.f32.mrb[0].mxu0
        %v2025 = vadd.f32 %v1668, %v2024
        %v2026 = vpop.f32.mrb[0].mxu0
        %v2027 = vadd.f32 %v1672, %v2026
        %v2028 = vpop.f32.mrb[0].mxu0
        %v2029 = vadd.f32 %v1668, %v2028
        %v2030 = vpop.f32.mrb[0].mxu0
        %v2031 = vadd.f32 %v1672, %v2030
        %2032 = vmatprep.mubr.bf16.mxu0 0
        %2033 = vmatmul.mubr.bf16.gmra.mrb[0].mxu0 %v849
        %v2034 = vpop.f32.mrb[0].mxu0
        %v2035 = vadd.f32 %v1668, %v2034
        %v2036 = vpop.f32.mrb[0].mxu0
        %v2037 = vadd.f32 %v1672, %v2036
        %v2038 = vpop.f32.mrb[0].mxu0
        %v2039 = vadd.f32 %v1668, %v2038
        %v2040 = vpop.f32.mrb[0].mxu0
        %v2041 = vadd.f32 %v1672, %v2040
        %2042 = vmatprep.mubr.bf16.mxu0 0
        %2043 = vmatmul.mubr.bf16.gmra.mrb[0].mxu0 %v852
        %v2044 = vpop.f32.mrb[0].mxu0
        %v2045 = vadd.f32 %v1668, %v2044
        %v2046 = vpop.f32.mrb[0].mxu0
        %v2047 = vadd.f32 %v1672, %v2046
        %v2048 = vpop.f32.mrb[0].mxu0
        %v2049 = vadd.f32 %v1668, %v2048
        %v2050 = vpop.f32.mrb[0].mxu0
        %v2051 = vadd.f32 %v1672, %v2050
        %2052 = vmatprep.mubr.bf16.mxu0 0
        %2053 = vmatmul.mubr.bf16.gmra.mrb[0].mxu0 %v855
        %v2054 = vpop.f32.mrb[0].mxu0
        %v2055 = vadd.f32 %v1668, %v2054
        %v2056 = vpop.f32.mrb[0].mxu0
        %v2057 = vadd.f32 %v1672, %v2056
        %v2058 = vpop.f32.mrb[0].mxu0
        %v2059 = vadd.f32 %v1668, %v2058
        %v2060 = vpop.f32.mrb[0].mxu0
        %v2061 = vadd.f32 %v1672, %v2060
        %2062 = vmatprep.mubr.bf16.mxu0 0
        %2063 = vmatmul.mubr.bf16.gmra.mrb[0].mxu0 %v858
        %v2064 = vpop.f32.mrb[0].mxu0
        %v2065 = vadd.f32 %v1668, %v2064
        %v2066 = vpop.f32.mrb[0].mxu0
        %v2067 = vadd.f32 %v1672, %v2066
        %v2068 = vpop.f32.mrb[0].mxu0
        %v2069 = vadd.f32 %v1668, %v2068
        %v2070 = vpop.f32.mrb[0].mxu0
        %v2071 = vadd.f32 %v1672, %v2070
        %2072 = vmatprep.mubr.bf16.mxu0 0
        %2073 = vmatmul.mubr.bf16.gmra.mrb[0].mxu0 %v861
        %v2074 = vpop.f32.mrb[0].mxu0
        %v2075 = vadd.f32 %v1668, %v2074
        %v2076 = vpop.f32.mrb[0].mxu0
        %v2077 = vadd.f32 %v1672, %v2076
        %v2078 = vpop.f32.mrb[0].mxu0
        %v2079 = vadd.f32 %v1668, %v2078
        %v2080 = vpop.f32.mrb[0].mxu0
        %v2081 = vadd.f32 %v1672, %v2080
        %2082 = vmatprep.mubr.bf16.mxu0 0
        %2083 = vmatmul.mubr.bf16.gmra.mrb[0].mxu0 %v864
        %v2084 = vpop.f32.mrb[0].mxu0
        %v2085 = vadd.f32 %v1668, %v2084
        %v2086 = vpop.f32.mrb[0].mxu0
        %v2087 = vadd.f32 %v1672, %v2086
        %v2088 = vpop.f32.mrb[0].mxu0
        %v2089 = vadd.f32 %v1668, %v2088
        %v2090 = vpop.f32.mrb[0].mxu0
        %v2091 = vadd.f32 %v1672, %v2090
        %2092 = vmatprep.mubr.bf16.mxu0 0
        %2093 = vmatmul.mubr.bf16.gmra.mrb[0].mxu0 %v867
        %v2094 = vpop.f32.mrb[0].mxu0
        %v2095 = vadd.f32 %v1668, %v2094
        %v2096 = vpop.f32.mrb[0].mxu0
        %v2097 = vadd.f32 %v1672, %v2096
        %v2098 = vpop.f32.mrb[0].mxu0
        %v2099 = vadd.f32 %v1668, %v2098
        %v2100 = vpop.f32.mrb[0].mxu0
        %v2101 = vadd.f32 %v1672, %v2100
        %2102 = vdwg.mxu0
        %v2103 = vmax.f32 %v1752, 0.0
        %v2104 = vmax.f32 %v1754, 0.0
        %v2105 = vmax.f32 %v1945, 0.0
        %v2106 = vmax.f32 %v1947, 0.0
        %v2107 = vmax.f32 %v1756, 0.0
        %v2108 = vmax.f32 %v1758, 0.0
        %v2109 = vmax.f32 %v1949, 0.0
        %v2110 = vmax.f32 %v1951, 0.0
        %v2111 = vmax.f32 %v1762, 0.0
        %v2112 = vmax.f32 %v1764, 0.0
        %v2113 = vmax.f32 %v1955, 0.0
        %v2114 = vmax.f32 %v1957, 0.0
        %v2115 = vmax.f32 %v1766, 0.0
        %v2116 = vmax.f32 %v1768, 0.0
        %v2117 = vmax.f32 %v1959, 0.0
        %v2118 = vmax.f32 %v1961, 0.0
        %v2119 = vmax.f32 %v1772, 0.0
        %v2120 = vmax.f32 %v1774, 0.0
        %v2121 = vmax.f32 %v1965, 0.0
        %v2122 = vmax.f32 %v1967, 0.0
        %v2123 = vmax.f32 %v1776, 0.0
        %v2124 = vmax.f32 %v1778, 0.0
        %v2125 = vmax.f32 %v1969, 0.0
        %v2126 = vmax.f32 %v1971, 0.0
        %v2127 = vmax.f32 %v1782, 0.0
        %v2128 = vmax.f32 %v1784, 0.0
        %v2129 = vmax.f32 %v1975, 0.0
        %v2130 = vmax.f32 %v1977, 0.0
        %v2131 = vmax.f32 %v1786, 0.0
        %v2132 = vmax.f32 %v1788, 0.0
        %v2133 = vmax.f32 %v1979, 0.0
        %v2134 = vmax.f32 %v1981, 0.0
        %v2135 = vmax.f32 %v1792, 0.0
        %v2136 = vmax.f32 %v1794, 0.0
        %v2137 = vmax.f32 %v1985, 0.0
        %v2138 = vmax.f32 %v1987, 0.0
        %v2139 = vmax.f32 %v1796, 0.0
        %v2140 = vmax.f32 %v1798, 0.0
        %v2141 = vmax.f32 %v1989, 0.0
        %v2142 = vmax.f32 %v1991, 0.0
        %v2143 = vmax.f32 %v1802, 0.0
        %v2144 = vmax.f32 %v1804, 0.0
        %v2145 = vmax.f32 %v1995, 0.0
        %v2146 = vmax.f32 %v1997, 0.0
        %v2147 = vmax.f32 %v1806, 0.0
        %v2148 = vmax.f32 %v1808, 0.0
        %v2149 = vmax.f32 %v1999, 0.0
        %v2150 = vmax.f32 %v2001, 0.0
        %v2151 = vmax.f32 %v1812, 0.0
        %v2152 = vmax.f32 %v1814, 0.0
        %v2153 = vmax.f32 %v2005, 0.0
        %v2154 = vmax.f32 %v2007, 0.0
        %v2155 = vmax.f32 %v1816, 0.0
        %v2156 = vmax.f32 %v1818, 0.0
        %v2157 = vmax.f32 %v2009, 0.0
        %v2158 = vmax.f32 %v2011, 0.0
        %v2159 = vmax.f32 %v1822, 0.0
        %v2160 = vmax.f32 %v1824, 0.0
        %v2161 = vmax.f32 %v2015, 0.0
        %v2162 = vmax.f32 %v2017, 0.0
        %v2163 = vmax.f32 %v1826, 0.0
        %v2164 = vmax.f32 %v1828, 0.0
        %v2165 = vmax.f32 %v2019, 0.0
        %v2166 = vmax.f32 %v2021, 0.0
        %v2167 = vmax.f32 %v1832, 0.0
        %v2168 = vmax.f32 %v1834, 0.0
        %v2169 = vmax.f32 %v2025, 0.0
        %v2170 = vmax.f32 %v2027, 0.0
        %v2171 = vmax.f32 %v1836, 0.0
        %v2172 = vmax.f32 %v1838, 0.0
        %v2173 = vmax.f32 %v2029, 0.0
        %v2174 = vmax.f32 %v2031, 0.0
        %v2175 = vmax.f32 %v1842, 0.0
        %v2176 = vmax.f32 %v1844, 0.0
        %v2177 = vmax.f32 %v2035, 0.0
        %v2178 = vmax.f32 %v2037, 0.0
        %v2179 = vmax.f32 %v1846, 0.0
        %v2180 = vmax.f32 %v1848, 0.0
        %v2181 = vmax.f32 %v2039, 0.0
        %v2182 = vmax.f32 %v2041, 0.0
        %v2183 = vmax.f32 %v1852, 0.0
        %v2184 = vmax.f32 %v1854, 0.0
        %v2185 = vmax.f32 %v2045, 0.0
        %v2186 = vmax.f32 %v2047, 0.0
        %v2187 = vmax.f32 %v1856, 0.0
        %v2188 = vmax.f32 %v1858, 0.0
        %v2189 = vmax.f32 %v2049, 0.0
        %v2190 = vmax.f32 %v2051, 0.0
        %v2191 = vmax.f32 %v1862, 0.0
        %v2192 = vmax.f32 %v1864, 0.0
        %v2193 = vmax.f32 %v2055, 0.0
        %v2194 = vmax.f32 %v2057, 0.0
        %v2195 = vmax.f32 %v1866, 0.0
        %v2196 = vmax.f32 %v1868, 0.0
        %v2197 = vmax.f32 %v2059, 0.0
        %v2198 = vmax.f32 %v2061, 0.0
        %v2199 = vmax.f32 %v1872, 0.0
        %v2200 = vmax.f32 %v1874, 0.0
        %v2201 = vmax.f32 %v2065, 0.0
        %v2202 = vmax.f32 %v2067, 0.0
        %v2203 = vmax.f32 %v1876, 0.0
        %v2204 = vmax.f32 %v1878, 0.0
        %v2205 = vmax.f32 %v2069, 0.0
        %v2206 = vmax.f32 %v2071, 0.0
        %v2207 = vmax.f32 %v1882, 0.0
        %v2208 = vmax.f32 %v1884, 0.0
        %v2209 = vmax.f32 %v2075, 0.0
        %v2210 = vmax.f32 %v2077, 0.0
        %v2211 = vmax.f32 %v1886, 0.0
        %v2212 = vmax.f32 %v1888, 0.0
        %v2213 = vmax.f32 %v2079, 0.0
        %v2214 = vmax.f32 %v2081, 0.0
        %v2215 = vmax.f32 %v1892, 0.0
        %v2216 = vmax.f32 %v1894, 0.0
        %v2217 = vmax.f32 %v2085, 0.0
        %v2218 = vmax.f32 %v2087, 0.0
        %v2219 = vmax.f32 %v1896, 0.0
        %v2220 = vmax.f32 %v1898, 0.0
        %v2221 = vmax.f32 %v2089, 0.0
        %v2222 = vmax.f32 %v2091, 0.0
        %v2223 = vmax.f32 %v1902, 0.0
        %v2224 = vmax.f32 %v1904, 0.0
        %v2225 = vmax.f32 %v2095, 0.0
        %v2226 = vmax.f32 %v2097, 0.0
        %v2227 = vmax.f32 %v1906, 0.0
        %v2228 = vmax.f32 %v1908, 0.0
        %v2229 = vmax.f32 %v2099, 0.0
        %v2230 = vmax.f32 %v2101, 0.0
        %v2231 = vmin.f32 %v2103, 6.0
        %v2232 = vmin.f32 %v2104, 6.0
        %v2233 = vmin.f32 %v2105, 6.0
        %v2234 = vmin.f32 %v2106, 6.0
        %v2235 = vmin.f32 %v2107, 6.0
        %v2236 = vmin.f32 %v2108, 6.0
        %v2237 = vmin.f32 %v2109, 6.0
        %v2238 = vmin.f32 %v2110, 6.0
        %v2239 = vmin.f32 %v2111, 6.0
        %v2240 = vmin.f32 %v2112, 6.0
        %v2241 = vmin.f32 %v2113, 6.0
        %v2242 = vmin.f32 %v2114, 6.0
        %v2243 = vmin.f32 %v2115, 6.0
        %v2244 = vmin.f32 %v2116, 6.0
        %v2245 = vmin.f32 %v2117, 6.0
        %v2246 = vmin.f32 %v2118, 6.0
        %v2247 = vmin.f32 %v2119, 6.0
        %v2248 = vmin.f32 %v2120, 6.0
        %v2249 = vmin.f32 %v2121, 6.0
        %v2250 = vmin.f32 %v2122, 6.0
        %v2251 = vmin.f32 %v2123, 6.0
        %v2252 = vmin.f32 %v2124, 6.0
        %v2253 = vmin.f32 %v2125, 6.0
        %v2254 = vmin.f32 %v2126, 6.0
        %v2255 = vmin.f32 %v2127, 6.0
        %v2256 = vmin.f32 %v2128, 6.0
        %v2257 = vmin.f32 %v2129, 6.0
        %v2258 = vmin.f32 %v2130, 6.0
        %v2259 = vmin.f32 %v2131, 6.0
        %v2260 = vmin.f32 %v2132, 6.0
        %v2261 = vmin.f32 %v2133, 6.0
        %v2262 = vmin.f32 %v2134, 6.0
        %v2263 = vmin.f32 %v2135, 6.0
        %v2264 = vmin.f32 %v2136, 6.0
        %v2265 = vmin.f32 %v2137, 6.0
        %v2266 = vmin.f32 %v2138, 6.0
        %v2267 = vmin.f32 %v2139, 6.0
        %v2268 = vmin.f32 %v2140, 6.0
        %v2269 = vmin.f32 %v2141, 6.0
        %v2270 = vmin.f32 %v2142, 6.0
        %v2271 = vmin.f32 %v2143, 6.0
        %v2272 = vmin.f32 %v2144, 6.0
        %v2273 = vmin.f32 %v2145, 6.0
        %v2274 = vmin.f32 %v2146, 6.0
        %v2275 = vmin.f32 %v2147, 6.0
        %v2276 = vmin.f32 %v2148, 6.0
        %v2277 = vmin.f32 %v2149, 6.0
        %v2278 = vmin.f32 %v2150, 6.0
        %v2279 = vmin.f32 %v2151, 6.0
        %v2280 = vmin.f32 %v2152, 6.0
        %v2281 = vmin.f32 %v2153, 6.0
        %v2282 = vmin.f32 %v2154, 6.0
        %v2283 = vmin.f32 %v2155, 6.0
        %v2284 = vmin.f32 %v2156, 6.0
        %v2285 = vmin.f32 %v2157, 6.0
        %v2286 = vmin.f32 %v2158, 6.0
        %v2287 = vmin.f32 %v2159, 6.0
        %v2288 = vmin.f32 %v2160, 6.0
        %v2289 = vmin.f32 %v2161, 6.0
        %v2290 = vmin.f32 %v2162, 6.0
        %v2291 = vmin.f32 %v2163, 6.0
        %v2292 = vmin.f32 %v2164, 6.0
        %v2293 = vmin.f32 %v2165, 6.0
        %v2294 = vmin.f32 %v2166, 6.0
        %v2295 = vmin.f32 %v2167, 6.0
        %v2296 = vmin.f32 %v2168, 6.0
        %v2297 = vmin.f32 %v2169, 6.0
        %v2298 = vmin.f32 %v2170, 6.0
        %v2299 = vmin.f32 %v2171, 6.0
        %v2300 = vmin.f32 %v2172, 6.0
        %v2301 = vmin.f32 %v2173, 6.0
        %v2302 = vmin.f32 %v2174, 6.0
        %v2303 = vmin.f32 %v2175, 6.0
        %v2304 = vmin.f32 %v2176, 6.0
        %v2305 = vmin.f32 %v2177, 6.0
        %v2306 = vmin.f32 %v2178, 6.0
        %v2307 = vmin.f32 %v2179, 6.0
        %v2308 = vmin.f32 %v2180, 6.0
        %v2309 = vmin.f32 %v2181, 6.0
        %v2310 = vmin.f32 %v2182, 6.0
        %v2311 = vmin.f32 %v2183, 6.0
        %v2312 = vmin.f32 %v2184, 6.0
        %v2313 = vmin.f32 %v2185, 6.0
        %v2314 = vmin.f32 %v2186, 6.0
        %v2315 = vmin.f32 %v2187, 6.0
        %v2316 = vmin.f32 %v2188, 6.0
        %v2317 = vmin.f32 %v2189, 6.0
        %v2318 = vmin.f32 %v2190, 6.0
        %v2319 = vmin.f32 %v2191, 6.0
        %v2320 = vmin.f32 %v2192, 6.0
        %v2321 = vmin.f32 %v2193, 6.0
        %v2322 = vmin.f32 %v2194, 6.0
        %v2323 = vmin.f32 %v2195, 6.0
        %v2324 = vmin.f32 %v2196, 6.0
        %v2325 = vmin.f32 %v2197, 6.0
        %v2326 = vmin.f32 %v2198, 6.0
        %v2327 = vmin.f32 %v2199, 6.0
        %v2328 = vmin.f32 %v2200, 6.0
        %v2329 = vmin.f32 %v2201, 6.0
        %v2330 = vmin.f32 %v2202, 6.0
        %v2331 = vmin.f32 %v2203, 6.0
        %v2332 = vmin.f32 %v2204, 6.0
        %v2333 = vmin.f32 %v2205, 6.0
        %v2334 = vmin.f32 %v2206, 6.0
        %v2335 = vmin.f32 %v2207, 6.0
        %v2336 = vmin.f32 %v2208, 6.0
        %v2337 = vmin.f32 %v2209, 6.0
        %v2338 = vmin.f32 %v2210, 6.0
        %v2339 = vmin.f32 %v2211, 6.0
        %v2340 = vmin.f32 %v2212, 6.0
        %v2341 = vmin.f32 %v2213, 6.0
        %v2342 = vmin.f32 %v2214, 6.0
        %v2343 = vmin.f32 %v2215, 6.0
        %v2344 = vmin.f32 %v2216, 6.0
        %v2345 = vmin.f32 %v2217, 6.0
        %v2346 = vmin.f32 %v2218, 6.0
        %v2347 = vmin.f32 %v2219, 6.0
        %v2348 = vmin.f32 %v2220, 6.0
        %v2349 = vmin.f32 %v2221, 6.0
        %v2350 = vmin.f32 %v2222, 6.0
        %v2351 = vmin.f32 %v2223, 6.0
        %v2352 = vmin.f32 %v2224, 6.0
        %v2353 = vmin.f32 %v2225, 6.0
        %v2354 = vmin.f32 %v2226, 6.0
        %v2355 = vmin.f32 %v2227, 6.0
        %v2356 = vmin.f32 %v2228, 6.0
        %v2357 = vmin.f32 %v2229, 6.0
        %v2358 = vmin.f32 %v2230, 6.0
        %v2359 = vld [vmem:[#allocation2 + $0x20] sm:$0xff]
        %v2360 = vld [vmem:[#allocation2 + $0x28] sm:$0xff]
        %v2361 = vld [vmem:[#allocation2 + $0x30] sm:$0xff]
        %v2362 = vld [vmem:[#allocation2 + $0x38] sm:$0xff]
        %v2363 = vadd.f32 %v2231, %v2235
        %v2364 = vadd.f32 %v2363, %v2239
        %v2365 = vadd.f32 %v2364, %v2243
        %v2366 = vadd.f32 %v2365, %v2247
        %v2367 = vadd.f32 %v2366, %v2251
        %v2368 = vadd.f32 %v2367, %v2255
        %v2369 = vadd.f32 %v2368, %v2259
        %v2370 = vadd.f32 %v2369, %v2263
        %v2371 = vadd.f32 %v2370, %v2267
        %v2372 = vadd.f32 %v2371, %v2271
        %v2373 = vadd.f32 %v2372, %v2275
        %v2374 = vadd.f32 %v2373, %v2279
        %v2375 = vadd.f32 %v2374, %v2283
        %v2376 = vadd.f32 %v2375, %v2287
        %v2377 = vadd.f32 %v2376, %v2291
        %v2378 = vadd.f32 %v2377, %v2295
        %v2379 = vadd.f32 %v2378, %v2299
        %v2380 = vadd.f32 %v2379, %v2303
        %v2381 = vadd.f32 %v2380, %v2307
        %v2382 = vadd.f32 %v2381, %v2311
        %v2383 = vadd.f32 %v2382, %v2315
        %v2384 = vadd.f32 %v2383, %v2319
        %v2385 = vadd.f32 %v2384, %v2323
        %v2386 = vadd.f32 %v2385, %v2327
        %v2387 = vadd.f32 %v2386, %v2331
        %v2388 = vadd.f32 %v2387, %v2335
        %v2389 = vadd.f32 %v2388, %v2339
        %v2390 = vadd.f32 %v2389, %v2343
        %v2391 = vadd.f32 %v2390, %v2347
        %v2392 = vadd.f32 %v2391, %v2351
        %v2393 = vadd.f32 %v2392, %v2355
        %v2394 = vadd.f32 %v2232, %v2236
        %v2395 = vadd.f32 %v2394, %v2240
        %v2396 = vadd.f32 %v2395, %v2244
        %v2397 = vadd.f32 %v2396, %v2248
        %v2398 = vadd.f32 %v2397, %v2252
        %v2399 = vadd.f32 %v2398, %v2256
        %v2400 = vadd.f32 %v2399, %v2260
        %v2401 = vadd.f32 %v2400, %v2264
        %v2402 = vadd.f32 %v2401, %v2268
        %v2403 = vadd.f32 %v2402, %v2272
        %v2404 = vadd.f32 %v2403, %v2276
        %v2405 = vadd.f32 %v2404, %v2280
        %v2406 = vadd.f32 %v2405, %v2284
        %v2407 = vadd.f32 %v2406, %v2288
        %v2408 = vadd.f32 %v2407, %v2292
        %v2409 = vadd.f32 %v2408, %v2296
        %v2410 = vadd.f32 %v2409, %v2300
        %v2411 = vadd.f32 %v2410, %v2304
        %v2412 = vadd.f32 %v2411, %v2308
        %v2413 = vadd.f32 %v2412, %v2312
        %v2414 = vadd.f32 %v2413, %v2316
        %v2415 = vadd.f32 %v2414, %v2320
        %v2416 = vadd.f32 %v2415, %v2324
        %v2417 = vadd.f32 %v2416, %v2328
        %v2418 = vadd.f32 %v2417, %v2332
        %v2419 = vadd.f32 %v2418, %v2336
        %v2420 = vadd.f32 %v2419, %v2340
        %v2421 = vadd.f32 %v2420, %v2344
        %v2422 = vadd.f32 %v2421, %v2348
        %v2423 = vadd.f32 %v2422, %v2352
        %v2424 = vadd.f32 %v2423, %v2356
        %v2425 = vadd.f32 %v2233, %v2237
        %v2426 = vadd.f32 %v2425, %v2241
        %v2427 = vadd.f32 %v2426, %v2245
        %v2428 = vadd.f32 %v2427, %v2249
        %v2429 = vadd.f32 %v2428, %v2253
        %v2430 = vadd.f32 %v2429, %v2257
        %v2431 = vadd.f32 %v2430, %v2261
        %v2432 = vadd.f32 %v2431, %v2265
        %v2433 = vadd.f32 %v2432, %v2269
        %v2434 = vadd.f32 %v2433, %v2273
        %v2435 = vadd.f32 %v2434, %v2277
        %v2436 = vadd.f32 %v2435, %v2281
        %v2437 = vadd.f32 %v2436, %v2285
        %v2438 = vadd.f32 %v2437, %v2289
        %v2439 = vadd.f32 %v2438, %v2293
        %v2440 = vadd.f32 %v2439, %v2297
        %v2441 = vadd.f32 %v2440, %v2301
        %v2442 = vadd.f32 %v2441, %v2305
        %v2443 = vadd.f32 %v2442, %v2309
        %v2444 = vadd.f32 %v2443, %v2313
        %v2445 = vadd.f32 %v2444, %v2317
        %v2446 = vadd.f32 %v2445, %v2321
        %v2447 = vadd.f32 %v2446, %v2325
        %v2448 = vadd.f32 %v2447, %v2329
        %v2449 = vadd.f32 %v2448, %v2333
        %v2450 = vadd.f32 %v2449, %v2337
        %v2451 = vadd.f32 %v2450, %v2341
        %v2452 = vadd.f32 %v2451, %v2345
        %v2453 = vadd.f32 %v2452, %v2349
        %v2454 = vadd.f32 %v2453, %v2353
        %v2455 = vadd.f32 %v2454, %v2357
        %v2456 = vadd.f32 %v2234, %v2238
        %v2457 = vadd.f32 %v2456, %v2242
        %v2458 = vadd.f32 %v2457, %v2246
        %v2459 = vadd.f32 %v2458, %v2250
        %v2460 = vadd.f32 %v2459, %v2254
        %v2461 = vadd.f32 %v2460, %v2258
        %v2462 = vadd.f32 %v2461, %v2262
        %v2463 = vadd.f32 %v2462, %v2266
        %v2464 = vadd.f32 %v2463, %v2270
        %v2465 = vadd.f32 %v2464, %v2274
        %v2466 = vadd.f32 %v2465, %v2278
        %v2467 = vadd.f32 %v2466, %v2282
        %v2468 = vadd.f32 %v2467, %v2286
        %v2469 = vadd.f32 %v2468, %v2290
        %v2470 = vadd.f32 %v2469, %v2294
        %v2471 = vadd.f32 %v2470, %v2298
        %v2472 = vadd.f32 %v2471, %v2302
        %v2473 = vadd.f32 %v2472, %v2306
        %v2474 = vadd.f32 %v2473, %v2310
        %v2475 = vadd.f32 %v2474, %v2314
        %v2476 = vadd.f32 %v2475, %v2318
        %v2477 = vadd.f32 %v2476, %v2322
        %v2478 = vadd.f32 %v2477, %v2326
        %v2479 = vadd.f32 %v2478, %v2330
        %v2480 = vadd.f32 %v2479, %v2334
        %v2481 = vadd.f32 %v2480, %v2338
        %v2482 = vadd.f32 %v2481, %v2342
        %v2483 = vadd.f32 %v2482, %v2346
        %v2484 = vadd.f32 %v2483, %v2350
        %v2485 = vadd.f32 %v2484, %v2354
        %v2486 = vadd.f32 %v2485, %v2358
        %v2487 = vadd.f32 %v2359, %v2393
        %v2488 = vadd.f32 %v2360, %v2424
        %v2489 = vadd.f32 %v2361, %v2455
        %v2490 = vadd.f32 %v2362, %v2486
        %2491 = vst [vmem:[#allocation2 + $0x20] sm:$0xff] %v2487
        %2492 = vst [vmem:[#allocation2 + $0x28] sm:$0xff] %v2488
        %2493 = vst [vmem:[#allocation2 + $0x30] sm:$0xff] %v2489
        %2494 = vst [vmem:[#allocation2 + $0x38] sm:$0xff] %v2490
        %v2495 = vld [vmem:[%s3 + $0x20] sm:$0xff]
        %v2496 = vld [vmem:[%s3 + $0x48] sm:$0xff]
        %v2497 = vld [vmem:[%s3 + $0x70] sm:$0xff]
        %v2498 = vld [vmem:[%s3 + $0x98] sm:$0xff]
        %v2499 = vld [vmem:[%s4 + $0x8] sm:$0x3]
        %v2501 = vlaneseq
        %v2502 = vshrl.u32 %v2501, 7
        %v2503 = vsub.s32 0, %v2502
        %v2504 = vrot.slane %v2499, %v2503
        %v2505 = vlaneseq
        %v2506 = vshrl.u32 %v2505, 7
        %v2507 = vsub.s32 1, %v2506
        %v2508 = vrot.slane %v2499, %v2507
        %v2515 = vunpack.c.l.b16 %v2495
        %v2516 = vunpack.c.h.b16 %v2495
        %v2517 = vunpack.c.l.b16 %v2496
        %v2518 = vunpack.c.h.b16 %v2496
        %v2519 = vunpack.c.l.b16 %v2497
        %v2520 = vunpack.c.h.b16 %v2497
        %v2521 = vunpack.c.l.b16 %v2498
        %v2522 = vunpack.c.h.b16 %v2498
        %v2523 = vpack.c.b16 %v2517, %v2515
        %v2524 = vpack.c.b16 %v2518, %v2516
        %v2525 = vpack.c.b16 %v2521, %v2519
        %v2526 = vpack.c.b16 %v2522, %v2520
        %2531 = vmatprep.subr.bf16.mxu0 %v2524
        %2532 = vmatpush1.bf16.msra.mxu0 %v2523
        %2533 = vmatprep.subr.bf16.mxu0 %v2526
        %2534 = vmatpush1.bf16.msra.mxu0 %v2525
        %2535 = vmatprep.subr.bf16.mxu0 0
        %2536 = vmatpush1.bf16.msra.mxu0 0
        %2537 = vmatprep.subr.bf16.mxu0 0
        %2538 = vmatpush1.bf16.msra.mxu0 0
        %2539 = vmatprep.subr.bf16.mxu0 0
        %2540 = vmatpush1.bf16.msra.mxu0 0
        %2541 = vmatprep.subr.bf16.mxu0 0
        %2542 = vmatpush1.bf16.msra.mxu0 0
        %2543 = vmatprep.subr.bf16.mxu0 0
        %2544 = vmatpush1.bf16.msra.mxu0 0
        %2545 = vmatprep.subr.bf16.mxu0 0
        %2546 = vmatpush1.bf16.msra.mxu0 0
        %2547 = vmatprep.subr.bf16.mxu0 0
        %2548 = vmatpush1.bf16.msra.mxu0 0
        %2549 = vmatprep.subr.bf16.mxu0 0
        %2550 = vmatpush1.bf16.msra.mxu0 0
        %2551 = vmatprep.subr.bf16.mxu0 0
        %2552 = vmatpush1.bf16.msra.mxu0 0
        %2553 = vmatprep.subr.bf16.mxu0 0
        %2554 = vmatpush1.bf16.msra.mxu0 0
        %2555 = vmatprep.subr.bf16.mxu0 0
        %2556 = vmatpush1.bf16.msra.mxu0 0
        %2557 = vmatprep.subr.bf16.mxu0 0
        %2558 = vmatpush1.bf16.msra.mxu0 0
        %2559 = vmatprep.subr.bf16.mxu0 0
        %2560 = vmatpush1.bf16.msra.mxu0 0
        %2561 = vmatprep.subr.bf16.mxu0 0
        %2562 = vmatpush1.bf16.msra.mxu0 0
        %2563 = vmatprep.mubr.bf16.mxu0 0
        %2564 = vmatmul.mubr.bf16.gmra.mrb[0].mxu0 %v822
        %v2565 = vpop.f32.mrb[0].mxu0
        %v2566 = vadd.f32 %v2504, %v2565
        %v2567 = vpop.f32.mrb[0].mxu0
        %v2568 = vadd.f32 %v2508, %v2567
        %v2569 = vpop.f32.mrb[0].mxu0
        %v2570 = vadd.f32 %v2504, %v2569
        %v2571 = vpop.f32.mrb[0].mxu0
        %v2572 = vadd.f32 %v2508, %v2571
        %2573 = vmatprep.mubr.bf16.mxu0 0
        %2574 = vmatmul.mubr.bf16.gmra.mrb[0].mxu0 %v825
        %v2575 = vpop.f32.mrb[0].mxu0
        %v2576 = vadd.f32 %v2504, %v2575
        %v2577 = vpop.f32.mrb[0].mxu0
        %v2578 = vadd.f32 %v2508, %v2577
        %v2579 = vpop.f32.mrb[0].mxu0
        %v2580 = vadd.f32 %v2504, %v2579
        %v2581 = vpop.f32.mrb[0].mxu0
        %v2582 = vadd.f32 %v2508, %v2581
        %2583 = vmatprep.mubr.bf16.mxu0 0
        %2584 = vmatmul.mubr.bf16.gmra.mrb[0].mxu0 %v828
        %v2585 = vpop.f32.mrb[0].mxu0
        %v2586 = vadd.f32 %v2504, %v2585
        %v2587 = vpop.f32.mrb[0].mxu0
        %v2588 = vadd.f32 %v2508, %v2587
        %v2589 = vpop.f32.mrb[0].mxu0
        %v2590 = vadd.f32 %v2504, %v2589
        %v2591 = vpop.f32.mrb[0].mxu0
        %v2592 = vadd.f32 %v2508, %v2591
        %2593 = vmatprep.mubr.bf16.mxu0 0
        %2594 = vmatmul.mubr.bf16.gmra.mrb[0].mxu0 %v831
        %v2595 = vpop.f32.mrb[0].mxu0
        %v2596 = vadd.f32 %v2504, %v2595
        %v2597 = vpop.f32.mrb[0].mxu0
        %v2598 = vadd.f32 %v2508, %v2597
        %v2599 = vpop.f32.mrb[0].mxu0
        %v2600 = vadd.f32 %v2504, %v2599
        %v2601 = vpop.f32.mrb[0].mxu0
        %v2602 = vadd.f32 %v2508, %v2601
        %2603 = vmatprep.mubr.bf16.mxu0 0
        %2604 = vmatmul.mubr.bf16.gmra.mrb[0].mxu0 %v834
        %v2605 = vpop.f32.mrb[0].mxu0
        %v2606 = vadd.f32 %v2504, %v2605
        %v2607 = vpop.f32.mrb[0].mxu0
        %v2608 = vadd.f32 %v2508, %v2607
        %v2609 = vpop.f32.mrb[0].mxu0
        %v2610 = vadd.f32 %v2504, %v2609
        %v2611 = vpop.f32.mrb[0].mxu0
        %v2612 = vadd.f32 %v2508, %v2611
        %2613 = vmatprep.mubr.bf16.mxu0 0
        %2614 = vmatmul.mubr.bf16.gmra.mrb[0].mxu0 %v837
        %v2615 = vpop.f32.mrb[0].mxu0
        %v2616 = vadd.f32 %v2504, %v2615
        %v2617 = vpop.f32.mrb[0].mxu0
        %v2618 = vadd.f32 %v2508, %v2617
        %v2619 = vpop.f32.mrb[0].mxu0
        %v2620 = vadd.f32 %v2504, %v2619
        %v2621 = vpop.f32.mrb[0].mxu0
        %v2622 = vadd.f32 %v2508, %v2621
        %2623 = vmatprep.mubr.bf16.mxu0 0
        %2624 = vmatmul.mubr.bf16.gmra.mrb[0].mxu0 %v840
        %v2625 = vpop.f32.mrb[0].mxu0
        %v2626 = vadd.f32 %v2504, %v2625
        %v2627 = vpop.f32.mrb[0].mxu0
        %v2628 = vadd.f32 %v2508, %v2627
        %v2629 = vpop.f32.mrb[0].mxu0
        %v2630 = vadd.f32 %v2504, %v2629
        %v2631 = vpop.f32.mrb[0].mxu0
        %v2632 = vadd.f32 %v2508, %v2631
        %2633 = vmatprep.mubr.bf16.mxu0 0
        %2634 = vmatmul.mubr.bf16.gmra.mrb[0].mxu0 %v843
        %v2635 = vpop.f32.mrb[0].mxu0
        %v2636 = vadd.f32 %v2504, %v2635
        %v2637 = vpop.f32.mrb[0].mxu0
        %v2638 = vadd.f32 %v2508, %v2637
        %v2639 = vpop.f32.mrb[0].mxu0
        %v2640 = vadd.f32 %v2504, %v2639
        %v2641 = vpop.f32.mrb[0].mxu0
        %v2642 = vadd.f32 %v2508, %v2641
        %2643 = vmatprep.mubr.bf16.mxu0 0
        %2644 = vmatmul.mubr.bf16.gmra.mrb[0].mxu0 %v846
        %v2645 = vpop.f32.mrb[0].mxu0
        %v2646 = vadd.f32 %v2504, %v2645
        %v2647 = vpop.f32.mrb[0].mxu0
        %v2648 = vadd.f32 %v2508, %v2647
        %v2649 = vpop.f32.mrb[0].mxu0
        %v2650 = vadd.f32 %v2504, %v2649
        %v2651 = vpop.f32.mrb[0].mxu0
        %v2652 = vadd.f32 %v2508, %v2651
        %2653 = vmatprep.mubr.bf16.mxu0 0
        %2654 = vmatmul.mubr.bf16.gmra.mrb[0].mxu0 %v849
        %v2655 = vpop.f32.mrb[0].mxu0
        %v2656 = vadd.f32 %v2504, %v2655
        %v2657 = vpop.f32.mrb[0].mxu0
        %v2658 = vadd.f32 %v2508, %v2657
        %v2659 = vpop.f32.mrb[0].mxu0
        %v2660 = vadd.f32 %v2504, %v2659
        %v2661 = vpop.f32.mrb[0].mxu0
        %v2662 = vadd.f32 %v2508, %v2661
        %2663 = vmatprep.mubr.bf16.mxu0 0
        %2664 = vmatmul.mubr.bf16.gmra.mrb[0].mxu0 %v852
        %v2665 = vpop.f32.mrb[0].mxu0
        %v2666 = vadd.f32 %v2504, %v2665
        %v2667 = vpop.f32.mrb[0].mxu0
        %v2668 = vadd.f32 %v2508, %v2667
        %v2669 = vpop.f32.mrb[0].mxu0
        %v2670 = vadd.f32 %v2504, %v2669
        %v2671 = vpop.f32.mrb[0].mxu0
        %v2672 = vadd.f32 %v2508, %v2671
        %2673 = vmatprep.mubr.bf16.mxu0 0
        %2674 = vmatmul.mubr.bf16.gmra.mrb[0].mxu0 %v855
        %v2675 = vpop.f32.mrb[0].mxu0
        %v2676 = vadd.f32 %v2504, %v2675
        %v2677 = vpop.f32.mrb[0].mxu0
        %v2678 = vadd.f32 %v2508, %v2677
        %v2679 = vpop.f32.mrb[0].mxu0
        %v2680 = vadd.f32 %v2504, %v2679
        %v2681 = vpop.f32.mrb[0].mxu0
        %v2682 = vadd.f32 %v2508, %v2681
        %2683 = vmatprep.mubr.bf16.mxu0 0
        %2684 = vmatmul.mubr.bf16.gmra.mrb[0].mxu0 %v858
        %v2685 = vpop.f32.mrb[0].mxu0
        %v2686 = vadd.f32 %v2504, %v2685
        %v2687 = vpop.f32.mrb[0].mxu0
        %v2688 = vadd.f32 %v2508, %v2687
        %v2689 = vpop.f32.mrb[0].mxu0
        %v2690 = vadd.f32 %v2504, %v2689
        %v2691 = vpop.f32.mrb[0].mxu0
        %v2692 = vadd.f32 %v2508, %v2691
        %2693 = vmatprep.mubr.bf16.mxu0 0
        %2694 = vmatmul.mubr.bf16.gmra.mrb[0].mxu0 %v861
        %v2695 = vpop.f32.mrb[0].mxu0
        %v2696 = vadd.f32 %v2504, %v2695
        %v2697 = vpop.f32.mrb[0].mxu0
        %v2698 = vadd.f32 %v2508, %v2697
        %v2699 = vpop.f32.mrb[0].mxu0
        %v2700 = vadd.f32 %v2504, %v2699
        %v2701 = vpop.f32.mrb[0].mxu0
        %v2702 = vadd.f32 %v2508, %v2701
        %2703 = vmatprep.mubr.bf16.mxu0 0
        %2704 = vmatmul.mubr.bf16.gmra.mrb[0].mxu0 %v864
        %v2705 = vpop.f32.mrb[0].mxu0
        %v2706 = vadd.f32 %v2504, %v2705
        %v2707 = vpop.f32.mrb[0].mxu0
        %v2708 = vadd.f32 %v2508, %v2707
        %v2709 = vpop.f32.mrb[0].mxu0
        %v2710 = vadd.f32 %v2504, %v2709
        %v2711 = vpop.f32.mrb[0].mxu0
        %v2712 = vadd.f32 %v2508, %v2711
        %2713 = vmatprep.mubr.bf16.mxu0 0
        %2714 = vmatmul.mubr.bf16.gmra.mrb[0].mxu0 %v867
        %v2715 = vpop.f32.mrb[0].mxu0
        %v2716 = vadd.f32 %v2504, %v2715
        %v2717 = vpop.f32.mrb[0].mxu0
        %v2718 = vadd.f32 %v2508, %v2717
        %v2719 = vpop.f32.mrb[0].mxu0
        %v2720 = vadd.f32 %v2504, %v2719
        %v2721 = vpop.f32.mrb[0].mxu0
        %v2722 = vadd.f32 %v2508, %v2721
        %2723 = vdwg.mxu0
        %v2724 = vmax.f32 %v2566, 0.0
        %v2725 = vmax.f32 %v2568, 0.0
        %v2726 = vmax.f32 %v2570, 0.0
        %v2727 = vmax.f32 %v2572, 0.0
        %v2728 = vmax.f32 %v2576, 0.0
        %v2729 = vmax.f32 %v2578, 0.0
        %v2730 = vmax.f32 %v2580, 0.0
        %v2731 = vmax.f32 %v2582, 0.0
        %v2732 = vmax.f32 %v2586, 0.0
        %v2733 = vmax.f32 %v2588, 0.0
        %v2734 = vmax.f32 %v2590, 0.0
        %v2735 = vmax.f32 %v2592, 0.0
        %v2736 = vmax.f32 %v2596, 0.0
        %v2737 = vmax.f32 %v2598, 0.0
        %v2738 = vmax.f32 %v2600, 0.0
        %v2739 = vmax.f32 %v2602, 0.0
        %v2740 = vmax.f32 %v2606, 0.0
        %v2741 = vmax.f32 %v2608, 0.0
        %v2742 = vmax.f32 %v2610, 0.0
        %v2743 = vmax.f32 %v2612, 0.0
        %v2744 = vmax.f32 %v2616, 0.0
        %v2745 = vmax.f32 %v2618, 0.0
        %v2746 = vmax.f32 %v2620, 0.0
        %v2747 = vmax.f32 %v2622, 0.0
        %v2748 = vmax.f32 %v2626, 0.0
        %v2749 = vmax.f32 %v2628, 0.0
        %v2750 = vmax.f32 %v2630, 0.0
        %v2751 = vmax.f32 %v2632, 0.0
        %v2752 = vmax.f32 %v2636, 0.0
        %v2753 = vmax.f32 %v2638, 0.0
        %v2754 = vmax.f32 %v2640, 0.0
        %v2755 = vmax.f32 %v2642, 0.0
        %v2756 = vmax.f32 %v2646, 0.0
        %v2757 = vmax.f32 %v2648, 0.0
        %v2758 = vmax.f32 %v2650, 0.0
        %v2759 = vmax.f32 %v2652, 0.0
        %v2760 = vmax.f32 %v2656, 0.0
        %v2761 = vmax.f32 %v2658, 0.0
        %v2762 = vmax.f32 %v2660, 0.0
        %v2763 = vmax.f32 %v2662, 0.0
        %v2764 = vmax.f32 %v2666, 0.0
        %v2765 = vmax.f32 %v2668, 0.0
        %v2766 = vmax.f32 %v2670, 0.0
        %v2767 = vmax.f32 %v2672, 0.0
        %v2768 = vmax.f32 %v2676, 0.0
        %v2769 = vmax.f32 %v2678, 0.0
        %v2770 = vmax.f32 %v2680, 0.0
        %v2771 = vmax.f32 %v2682, 0.0
        %v2772 = vmax.f32 %v2686, 0.0
        %v2773 = vmax.f32 %v2688, 0.0
        %v2774 = vmax.f32 %v2690, 0.0
        %v2775 = vmax.f32 %v2692, 0.0
        %v2776 = vmax.f32 %v2696, 0.0
        %v2777 = vmax.f32 %v2698, 0.0
        %v2778 = vmax.f32 %v2700, 0.0
        %v2779 = vmax.f32 %v2702, 0.0
        %v2780 = vmax.f32 %v2706, 0.0
        %v2781 = vmax.f32 %v2708, 0.0
        %v2782 = vmax.f32 %v2710, 0.0
        %v2783 = vmax.f32 %v2712, 0.0
        %v2784 = vmax.f32 %v2716, 0.0
        %v2785 = vmax.f32 %v2718, 0.0
        %v2786 = vmax.f32 %v2720, 0.0
        %v2787 = vmax.f32 %v2722, 0.0
        %v2788 = vmin.f32 %v2724, 6.0
        %v2789 = vmin.f32 %v2725, 6.0
        %v2790 = vmin.f32 %v2726, 6.0
        %v2791 = vmin.f32 %v2727, 6.0
        %v2792 = vmin.f32 %v2728, 6.0
        %v2793 = vmin.f32 %v2729, 6.0
        %v2794 = vmin.f32 %v2730, 6.0
        %v2795 = vmin.f32 %v2731, 6.0
        %v2796 = vmin.f32 %v2732, 6.0
        %v2797 = vmin.f32 %v2733, 6.0
        %v2798 = vmin.f32 %v2734, 6.0
        %v2799 = vmin.f32 %v2735, 6.0
        %v2800 = vmin.f32 %v2736, 6.0
        %v2801 = vmin.f32 %v2737, 6.0
        %v2802 = vmin.f32 %v2738, 6.0
        %v2803 = vmin.f32 %v2739, 6.0
        %v2804 = vmin.f32 %v2740, 6.0
        %v2805 = vmin.f32 %v2741, 6.0
        %v2806 = vmin.f32 %v2742, 6.0
        %v2807 = vmin.f32 %v2743, 6.0
        %v2808 = vmin.f32 %v2744, 6.0
        %v2809 = vmin.f32 %v2745, 6.0
        %v2810 = vmin.f32 %v2746, 6.0
        %v2811 = vmin.f32 %v2747, 6.0
        %v2812 = vmin.f32 %v2748, 6.0
        %v2813 = vmin.f32 %v2749, 6.0
        %v2814 = vmin.f32 %v2750, 6.0
        %v2815 = vmin.f32 %v2751, 6.0
        %v2816 = vmin.f32 %v2752, 6.0
        %v2817 = vmin.f32 %v2753, 6.0
        %v2818 = vmin.f32 %v2754, 6.0
        %v2819 = vmin.f32 %v2755, 6.0
        %v2820 = vmin.f32 %v2756, 6.0
        %v2821 = vmin.f32 %v2757, 6.0
        %v2822 = vmin.f32 %v2758, 6.0
        %v2823 = vmin.f32 %v2759, 6.0
        %v2824 = vmin.f32 %v2760, 6.0
        %v2825 = vmin.f32 %v2761, 6.0
        %v2826 = vmin.f32 %v2762, 6.0
        %v2827 = vmin.f32 %v2763, 6.0
        %v2828 = vmin.f32 %v2764, 6.0
        %v2829 = vmin.f32 %v2765, 6.0
        %v2830 = vmin.f32 %v2766, 6.0
        %v2831 = vmin.f32 %v2767, 6.0
        %v2832 = vmin.f32 %v2768, 6.0
        %v2833 = vmin.f32 %v2769, 6.0
        %v2834 = vmin.f32 %v2770, 6.0
        %v2835 = vmin.f32 %v2771, 6.0
        %v2836 = vmin.f32 %v2772, 6.0
        %v2837 = vmin.f32 %v2773, 6.0
        %v2838 = vmin.f32 %v2774, 6.0
        %v2839 = vmin.f32 %v2775, 6.0
        %v2840 = vmin.f32 %v2776, 6.0
        %v2841 = vmin.f32 %v2777, 6.0
        %v2842 = vmin.f32 %v2778, 6.0
        %v2843 = vmin.f32 %v2779, 6.0
        %v2844 = vmin.f32 %v2780, 6.0
        %v2845 = vmin.f32 %v2781, 6.0
        %v2846 = vmin.f32 %v2782, 6.0
        %v2847 = vmin.f32 %v2783, 6.0
        %v2848 = vmin.f32 %v2784, 6.0
        %v2849 = vmin.f32 %v2785, 6.0
        %v2850 = vmin.f32 %v2786, 6.0
        %v2851 = vmin.f32 %v2787, 6.0
        %v2852 = vld [vmem:[#allocation2 + $0x40] sm:$0xff]
        %v2853 = vld [vmem:[#allocation2 + $0x48] sm:$0xff]
        %v2854 = vadd.f32 %v2788, %v2790
        %v2855 = vadd.f32 %v2854, %v2792
        %v2856 = vadd.f32 %v2855, %v2794
        %v2857 = vadd.f32 %v2856, %v2796
        %v2858 = vadd.f32 %v2857, %v2798
        %v2859 = vadd.f32 %v2858, %v2800
        %v2860 = vadd.f32 %v2859, %v2802
        %v2861 = vadd.f32 %v2860, %v2804
        %v2862 = vadd.f32 %v2861, %v2806
        %v2863 = vadd.f32 %v2862, %v2808
        %v2864 = vadd.f32 %v2863, %v2810
        %v2865 = vadd.f32 %v2864, %v2812
        %v2866 = vadd.f32 %v2865, %v2814
        %v2867 = vadd.f32 %v2866, %v2816
        %v2868 = vadd.f32 %v2867, %v2818
        %v2869 = vadd.f32 %v2868, %v2820
        %v2870 = vadd.f32 %v2869, %v2822
        %v2871 = vadd.f32 %v2870, %v2824
        %v2872 = vadd.f32 %v2871, %v2826
        %v2873 = vadd.f32 %v2872, %v2828
        %v2874 = vadd.f32 %v2873, %v2830
        %v2875 = vadd.f32 %v2874, %v2832
        %v2876 = vadd.f32 %v2875, %v2834
        %v2877 = vadd.f32 %v2876, %v2836
        %v2878 = vadd.f32 %v2877, %v2838
        %v2879 = vadd.f32 %v2878, %v2840
        %v2880 = vadd.f32 %v2879, %v2842
        %v2881 = vadd.f32 %v2880, %v2844
        %v2882 = vadd.f32 %v2881, %v2846
        %v2883 = vadd.f32 %v2882, %v2848
        %v2884 = vadd.f32 %v2883, %v2850
        %v2885 = vadd.f32 %v2789, %v2791
        %v2886 = vadd.f32 %v2885, %v2793
        %v2887 = vadd.f32 %v2886, %v2795
        %v2888 = vadd.f32 %v2887, %v2797
        %v2889 = vadd.f32 %v2888, %v2799
        %v2890 = vadd.f32 %v2889, %v2801
        %v2891 = vadd.f32 %v2890, %v2803
        %v2892 = vadd.f32 %v2891, %v2805
        %v2893 = vadd.f32 %v2892, %v2807
        %v2894 = vadd.f32 %v2893, %v2809
        %v2895 = vadd.f32 %v2894, %v2811
        %v2896 = vadd.f32 %v2895, %v2813
        %v2897 = vadd.f32 %v2896, %v2815
        %v2898 = vadd.f32 %v2897, %v2817
        %v2899 = vadd.f32 %v2898, %v2819
        %v2900 = vadd.f32 %v2899, %v2821
        %v2901 = vadd.f32 %v2900, %v2823
        %v2902 = vadd.f32 %v2901, %v2825
        %v2903 = vadd.f32 %v2902, %v2827
        %v2904 = vadd.f32 %v2903, %v2829
        %v2905 = vadd.f32 %v2904, %v2831
        %v2906 = vadd.f32 %v2905, %v2833
        %v2907 = vadd.f32 %v2906, %v2835
        %v2908 = vadd.f32 %v2907, %v2837
        %v2909 = vadd.f32 %v2908, %v2839
        %v2910 = vadd.f32 %v2909, %v2841
        %v2911 = vadd.f32 %v2910, %v2843
        %v2912 = vadd.f32 %v2911, %v2845
        %v2913 = vadd.f32 %v2912, %v2847
        %v2914 = vadd.f32 %v2913, %v2849
        %v2915 = vadd.f32 %v2914, %v2851
        %v2916 = vadd.f32 %v2852, %v2884
        %v2917 = vadd.f32 %v2853, %v2915
        %2918 = vst [vmem:[#allocation2 + $0x40] sm:$0xff] %v2916
        %2919 = vst [vmem:[#allocation2 + $0x48] sm:$0xff] %v2917
        // Predicated region
        $region53: #{single_path_supernet_forward.1} parent=47 // pred_check
          %p2920 = pneg %p305
        $region54: #{single_path_supernet_forward.1} parent=47 // pred_check_branch
          %2922 = sbr.rel (%p2920) target = $region56
        $region55: #{single_path_supernet_forward.1} parent=47 // pred_region
          %v2923 = vld [vmem:[#allocation2] sm:$0xff]
          %v2924 = vld [vmem:[#allocation2 + $0x8] sm:$0xff]
          %v2925 = vld [vmem:[#allocation2 + $0x10] sm:$0xff]
          %v2926 = vld [vmem:[#allocation2 + $0x18] sm:$0xff]
          %v2927 = vld [vmem:[#allocation2 + $0x20] sm:$0xff]
          %v2928 = vld [vmem:[#allocation2 + $0x28] sm:$0xff]
          %v2929 = vld [vmem:[#allocation2 + $0x30] sm:$0xff]
          %v2930 = vld [vmem:[#allocation2 + $0x38] sm:$0xff]
          %v2931 = vld [vmem:[#allocation2 + $0x40] sm:$0xff]
          %v2932 = vld [vmem:[#allocation2 + $0x48] sm:$0xff]
          %v2933 = vrot.slane %v2923, 4
          %v2934 = vadd.f32 %v2923, %v2933
          %v2935 = vrot.slane %v2934, 2
          %v2936 = vadd.f32 %v2934, %v2935
          %v2937 = vrot.slane %v2936, 1
          %v2938 = vadd.f32 %v2936, %v2937
          %v2939 = vrot.slane %v2924, 4
          %v2940 = vadd.f32 %v2924, %v2939
          %v2941 = vrot.slane %v2940, 2
          %v2942 = vadd.f32 %v2940, %v2941
          %v2943 = vrot.slane %v2942, 1
          %v2944 = vadd.f32 %v2942, %v2943
          %v2945 = vrot.slane %v2925, 4
          %v2946 = vadd.f32 %v2925, %v2945
          %v2947 = vrot.slane %v2946, 2
          %v2948 = vadd.f32 %v2946, %v2947
          %v2949 = vrot.slane %v2948, 1
          %v2950 = vadd.f32 %v2948, %v2949
          %v2951 = vrot.slane %v2926, 4
          %v2952 = vadd.f32 %v2926, %v2951
          %v2953 = vrot.slane %v2952, 2
          %v2954 = vadd.f32 %v2952, %v2953
          %v2955 = vrot.slane %v2954, 1
          %v2956 = vadd.f32 %v2954, %v2955
          %v2957 = vrot.slane %v2927, 4
          %v2958 = vadd.f32 %v2927, %v2957
          %v2959 = vrot.slane %v2958, 2
          %v2960 = vadd.f32 %v2958, %v2959
          %v2961 = vrot.slane %v2960, 1
          %v2962 = vadd.f32 %v2960, %v2961
          %v2963 = vrot.slane %v2928, 4
          %v2964 = vadd.f32 %v2928, %v2963
          %v2965 = vrot.slane %v2964, 2
          %v2966 = vadd.f32 %v2964, %v2965
          %v2967 = vrot.slane %v2966, 1
          %v2968 = vadd.f32 %v2966, %v2967
          %v2969 = vrot.slane %v2929, 4
          %v2970 = vadd.f32 %v2929, %v2969
          %v2971 = vrot.slane %v2970, 2
          %v2972 = vadd.f32 %v2970, %v2971
          %v2973 = vrot.slane %v2972, 1
          %v2974 = vadd.f32 %v2972, %v2973
          %v2975 = vrot.slane %v2930, 4
          %v2976 = vadd.f32 %v2930, %v2975
          %v2977 = vrot.slane %v2976, 2
          %v2978 = vadd.f32 %v2976, %v2977
          %v2979 = vrot.slane %v2978, 1
          %v2980 = vadd.f32 %v2978, %v2979
          %v2981 = vrot.slane %v2931, 4
          %v2982 = vadd.f32 %v2931, %v2981
          %v2983 = vrot.slane %v2982, 2
          %v2984 = vadd.f32 %v2982, %v2983
          %v2985 = vrot.slane %v2984, 1
          %v2986 = vadd.f32 %v2984, %v2985
          %v2987 = vrot.slane %v2932, 4
          %v2988 = vadd.f32 %v2932, %v2987
          %v2989 = vrot.slane %v2988, 2
          %v2990 = vadd.f32 %v2988, %v2989
          %v2991 = vrot.slane %v2990, 1
          %v2992 = vadd.f32 %v2990, %v2991
          %v2993 = vmul.f32 %v2938, 0.00390625
          %v2994 = vmul.f32 %v2944, 0.00390625
          %v2995 = vmul.f32 %v2950, 0.00390625
          %v2996 = vmul.f32 %v2956, 0.00390625
          %v2997 = vmul.f32 %v2962, 0.00390625
          %v2998 = vmul.f32 %v2968, 0.00390625
          %v2999 = vmul.f32 %v2974, 0.00390625
          %v3000 = vmul.f32 %v2980, 0.00390625
          %v3001 = vmul.f32 %v2986, 0.00390625
          %v3002 = vmul.f32 %v2992, 0.00390625
          %v3003 = vpack.c.bf16 %v2993, %v2993
          %v3004 = vpack.c.bf16 %v2994, %v2994
          %v3005 = vpack.c.bf16 %v2995, %v2995
          %v3006 = vpack.c.bf16 %v2996, %v2996
          %v3007 = vpack.c.bf16 %v2997, %v2997
          %v3008 = vpack.c.bf16 %v2998, %v2998
          %v3009 = vpack.c.bf16 %v2999, %v2999
          %v3010 = vpack.c.bf16 %v3000, %v3000
          %v3011 = vpack.c.bf16 %v3001, %v3001
          %v3012 = vpack.c.bf16 %v3002, %v3002
          %v3013 = vld [vmem:[%s5] sm:$0xf]
          %v3014 = vld [vmem:[%s5 + $0x4] sm:$0xf]
          %v3015 = vld [vmem:[%s5 + $0x8] sm:$0xf]
          %v3016 = vld [vmem:[%s5 + $0xc] sm:$0xf]
          %v3017 = vld [vmem:[%s5 + $0x10] sm:$0xf]
          %v3018 = vld [vmem:[%s5 + $0x14] sm:$0xf]
          %v3019 = vld [vmem:[%s5 + $0x18] sm:$0xf]
          %v3020 = vld [vmem:[%s5 + $0x1c] sm:$0xf]
          %v3021 = vld [vmem:[%s5 + $0x20] sm:$0xf]
          %v3022 = vld [vmem:[%s5 + $0x24] sm:$0xf]
          %v3023 = vld [vmem:[%s5 + $0x28] sm:$0xf]
          %v3024 = vld [vmem:[%s5 + $0x2c] sm:$0xf]
          %v3025 = vld [vmem:[%s5 + $0x30] sm:$0xf]
          %v3026 = vld [vmem:[%s5 + $0x34] sm:$0xf]
          %v3027 = vld [vmem:[%s5 + $0x38] sm:$0xf]
          %v3028 = vld [vmem:[%s5 + $0x3c] sm:$0xf]
          %v3029 = vld [vmem:[%s5 + $0x40] sm:$0xf]
          %v3030 = vld [vmem:[%s5 + $0x44] sm:$0xf]
          %v3031 = vld [vmem:[%s5 + $0x48] sm:$0xf]
          %v3032 = vld [vmem:[%s5 + $0x4c] sm:$0xf]
          %v3033 = vld [vmem:[%s5 + $0x50] sm:$0xf]
          %v3034 = vld [vmem:[%s5 + $0x54] sm:$0xf]
          %v3035 = vld [vmem:[%s5 + $0x58] sm:$0xf]
          %v3036 = vld [vmem:[%s5 + $0x5c] sm:$0xf]
          %v3037 = vld [vmem:[%s5 + $0x60] sm:$0xf]
          %v3038 = vld [vmem:[%s5 + $0x64] sm:$0xf]
          %v3039 = vld [vmem:[%s5 + $0x68] sm:$0xf]
          %v3040 = vld [vmem:[%s5 + $0x6c] sm:$0xf]
          %v3041 = vld [vmem:[%s5 + $0x70] sm:$0xf]
          %v3042 = vld [vmem:[%s5 + $0x74] sm:$0xf]
          %v3043 = vld [vmem:[%s5 + $0x78] sm:$0xf]
          %v3044 = vld [vmem:[%s5 + $0x7c] sm:$0xf]
          %v3045 = vld [vmem:[%s5 + $0x80] sm:$0xf]
          %v3046 = vld [vmem:[%s5 + $0x84] sm:$0xf]
          %v3047 = vld [vmem:[%s5 + $0x88] sm:$0xf]
          %v3048 = vld [vmem:[%s5 + $0x8c] sm:$0xf]
          %v3049 = vld [vmem:[%s5 + $0x90] sm:$0xf]
          %v3050 = vld [vmem:[%s5 + $0x94] sm:$0xf]
          %v3051 = vld [vmem:[%s5 + $0x98] sm:$0xf]
          %v3052 = vld [vmem:[%s5 + $0x9c] sm:$0xf]
          %v3053 = vld [vmem:[%s5 + $0xa0] sm:$0xf]
          %v3054 = vld [vmem:[%s5 + $0xa4] sm:$0xf]
          %v3055 = vld [vmem:[%s5 + $0xa8] sm:$0xf]
          %v3056 = vld [vmem:[%s5 + $0xac] sm:$0xf]
          %v3057 = vld [vmem:[%s5 + $0xb0] sm:$0xf]
          %v3058 = vld [vmem:[%s5 + $0xb4] sm:$0xf]
          %v3059 = vld [vmem:[%s5 + $0xb8] sm:$0xf]
          %v3060 = vld [vmem:[%s5 + $0xbc] sm:$0xf]
          %v3061 = vld [vmem:[%s5 + $0xc0] sm:$0xf]
          %v3062 = vld [vmem:[%s5 + $0xc4] sm:$0xf]
          %v3063 = vld [vmem:[%s5 + $0xc8] sm:$0xf]
          %v3064 = vld [vmem:[%s5 + $0xcc] sm:$0xf]
          %v3065 = vld [vmem:[%s5 + $0xd0] sm:$0xf]
          %v3066 = vld [vmem:[%s5 + $0xd4] sm:$0xf]
          %v3067 = vld [vmem:[%s5 + $0xd8] sm:$0xf]
          %v3068 = vld [vmem:[%s5 + $0xdc] sm:$0xf]
          %v3069 = vld [vmem:[%s5 + $0xe0] sm:$0xf]
          %v3070 = vld [vmem:[%s5 + $0xe4] sm:$0xf]
          %v3071 = vld [vmem:[%s5 + $0xe8] sm:$0xf]
          %v3072 = vld [vmem:[%s5 + $0xec] sm:$0xf]
          %v3073 = vld [vmem:[%s5 + $0xf0] sm:$0xf]
          %v3074 = vld [vmem:[%s5 + $0xf4] sm:$0xf]
          %v3075 = vld [vmem:[%s5 + $0xf8] sm:$0xf]
          %v3076 = vld [vmem:[%s5 + $0xfc] sm:$0xf]
          %v3077 = vld [vmem:[%s5 + $0x100] sm:$0xf]
          %v3078 = vld [vmem:[%s5 + $0x104] sm:$0xf]
          %v3079 = vld [vmem:[%s5 + $0x108] sm:$0xf]
          %v3080 = vld [vmem:[%s5 + $0x10c] sm:$0xf]
          %v3081 = vld [vmem:[%s5 + $0x110] sm:$0xf]
          %v3082 = vld [vmem:[%s5 + $0x114] sm:$0xf]
          %v3083 = vld [vmem:[%s5 + $0x118] sm:$0xf]
          %v3084 = vld [vmem:[%s5 + $0x11c] sm:$0xf]
          %v3085 = vld [vmem:[%s5 + $0x120] sm:$0xf]
          %v3086 = vld [vmem:[%s5 + $0x124] sm:$0xf]
          %v3087 = vld [vmem:[%s5 + $0x128] sm:$0xf]
          %v3088 = vld [vmem:[%s5 + $0x12c] sm:$0xf]
          %v3089 = vld [vmem:[%s5 + $0x130] sm:$0xf]
          %v3090 = vld [vmem:[%s5 + $0x134] sm:$0xf]
          %v3091 = vld [vmem:[%s5 + $0x138] sm:$0xf]
          %v3092 = vld [vmem:[%s5 + $0x13c] sm:$0xf]
          %v3093 = vld [vmem:[%s5 + $0x140] sm:$0xf]
          %v3094 = vld [vmem:[%s5 + $0x144] sm:$0xf]
          %v3095 = vld [vmem:[%s5 + $0x148] sm:$0xf]
          %v3096 = vld [vmem:[%s5 + $0x14c] sm:$0xf]
          %v3097 = vld [vmem:[%s5 + $0x150] sm:$0xf]
          %v3098 = vld [vmem:[%s5 + $0x154] sm:$0xf]
          %v3099 = vld [vmem:[%s5 + $0x158] sm:$0xf]
          %v3100 = vld [vmem:[%s5 + $0x15c] sm:$0xf]
          %v3101 = vld [vmem:[%s5 + $0x160] sm:$0xf]
          %v3102 = vld [vmem:[%s5 + $0x164] sm:$0xf]
          %v3103 = vld [vmem:[%s5 + $0x168] sm:$0xf]
          %v3104 = vld [vmem:[%s5 + $0x16c] sm:$0xf]
          %v3105 = vld [vmem:[%s5 + $0x170] sm:$0xf]
          %v3106 = vld [vmem:[%s5 + $0x174] sm:$0xf]
          %v3107 = vld [vmem:[%s5 + $0x178] sm:$0xf]
          %v3108 = vld [vmem:[%s5 + $0x17c] sm:$0xf]
          %v3109 = vld [vmem:[%s5 + $0x180] sm:$0xf]
          %v3110 = vld [vmem:[%s5 + $0x184] sm:$0xf]
          %v3111 = vld [vmem:[%s5 + $0x188] sm:$0xf]
          %v3112 = vld [vmem:[%s5 + $0x18c] sm:$0xf]
          %v3113 = vld [vmem:[%s5 + $0x190] sm:$0xf]
          %v3114 = vld [vmem:[%s5 + $0x194] sm:$0xf]
          %v3115 = vld [vmem:[%s5 + $0x198] sm:$0xf]
          %v3116 = vld [vmem:[%s5 + $0x19c] sm:$0xf]
          %v3117 = vld [vmem:[%s5 + $0x1a0] sm:$0xf]
          %v3118 = vld [vmem:[%s5 + $0x1a4] sm:$0xf]
          %v3119 = vld [vmem:[%s5 + $0x1a8] sm:$0xf]
          %v3120 = vld [vmem:[%s5 + $0x1ac] sm:$0xf]
          %v3121 = vld [vmem:[%s5 + $0x1b0] sm:$0xf]
          %v3122 = vld [vmem:[%s5 + $0x1b4] sm:$0xf]
          %v3123 = vld [vmem:[%s5 + $0x1b8] sm:$0xf]
          %v3124 = vld [vmem:[%s5 + $0x1bc] sm:$0xf]
          %v3125 = vld [vmem:[%s5 + $0x1c0] sm:$0xf]
          %v3126 = vld [vmem:[%s5 + $0x1c4] sm:$0xf]
          %v3127 = vld [vmem:[%s5 + $0x1c8] sm:$0xf]
          %v3128 = vld [vmem:[%s5 + $0x1cc] sm:$0xf]
          %v3129 = vld [vmem:[%s5 + $0x1d0] sm:$0xf]
          %v3130 = vld [vmem:[%s5 + $0x1d4] sm:$0xf]
          %v3131 = vld [vmem:[%s5 + $0x1d8] sm:$0xf]
          %v3132 = vld [vmem:[%s5 + $0x1dc] sm:$0xf]
          %v3133 = vld [vmem:[%s5 + $0x1e0] sm:$0xf]
          %v3134 = vld [vmem:[%s5 + $0x1e4] sm:$0xf]
          %v3135 = vld [vmem:[%s5 + $0x1e8] sm:$0xf]
          %v3136 = vld [vmem:[%s5 + $0x1ec] sm:$0xf]
          %v3137 = vld [vmem:[%s5 + $0x1f0] sm:$0xf]
          %v3138 = vld [vmem:[%s5 + $0x1f4] sm:$0xf]
          %v3139 = vld [vmem:[%s5 + $0x1f8] sm:$0xf]
          %v3140 = vld [vmem:[%s5 + $0x1fc] sm:$0xf]
          %v3141 = vld [vmem:[%s5 + $0x200] sm:$0xf]
          %v3142 = vld [vmem:[%s5 + $0x204] sm:$0xf]
          %v3143 = vld [vmem:[%s5 + $0x208] sm:$0xf]
          %v3144 = vld [vmem:[%s5 + $0x20c] sm:$0xf]
          %v3145 = vld [vmem:[%s5 + $0x210] sm:$0xf]
          %v3146 = vld [vmem:[%s5 + $0x214] sm:$0xf]
          %v3147 = vld [vmem:[%s5 + $0x218] sm:$0xf]
          %v3148 = vld [vmem:[%s5 + $0x21c] sm:$0xf]
          %v3149 = vld [vmem:[%s5 + $0x220] sm:$0xf]
          %v3150 = vld [vmem:[%s5 + $0x224] sm:$0xf]
          %v3151 = vld [vmem:[%s5 + $0x228] sm:$0xf]
          %v3152 = vld [vmem:[%s5 + $0x22c] sm:$0xf]
          %v3153 = vld [vmem:[%s5 + $0x230] sm:$0xf]
          %v3154 = vld [vmem:[%s5 + $0x234] sm:$0xf]
          %v3155 = vld [vmem:[%s5 + $0x238] sm:$0xf]
          %v3156 = vld [vmem:[%s5 + $0x23c] sm:$0xf]
          %v3157 = vld [vmem:[%s5 + $0x240] sm:$0xf]
          %v3158 = vld [vmem:[%s5 + $0x244] sm:$0xf]
          %v3159 = vld [vmem:[%s5 + $0x248] sm:$0xf]
          %v3160 = vld [vmem:[%s5 + $0x24c] sm:$0xf]
          %v3161 = vld [vmem:[%s5 + $0x250] sm:$0xf]
          %v3162 = vld [vmem:[%s5 + $0x254] sm:$0xf]
          %v3163 = vld [vmem:[%s5 + $0x258] sm:$0xf]
          %v3164 = vld [vmem:[%s5 + $0x25c] sm:$0xf]
          %v3165 = vld [vmem:[%s5 + $0x260] sm:$0xf]
          %v3166 = vld [vmem:[%s5 + $0x264] sm:$0xf]
          %v3167 = vld [vmem:[%s5 + $0x268] sm:$0xf]
          %v3168 = vld [vmem:[%s5 + $0x26c] sm:$0xf]
          %v3169 = vld [vmem:[%s5 + $0x270] sm:$0xf]
          %v3170 = vld [vmem:[%s5 + $0x274] sm:$0xf]
          %v3171 = vld [vmem:[%s5 + $0x278] sm:$0xf]
          %v3172 = vld [vmem:[%s5 + $0x27c] sm:$0xf]
          %v3173 = vld [vmem:[%s6] sm:$0x1]
          %v3334 = vunpack.c.l.b16 %v3013
          %v3335 = vunpack.c.l.b16 %v3014
          %v3336 = vunpack.c.l.b16 %v3015
          %v3337 = vunpack.c.l.b16 %v3016
          %v3338 = vunpack.c.l.b16 %v3017
          %v3339 = vunpack.c.l.b16 %v3018
          %v3340 = vunpack.c.l.b16 %v3019
          %v3341 = vunpack.c.l.b16 %v3020
          %v3342 = vunpack.c.l.b16 %v3021
          %v3343 = vunpack.c.l.b16 %v3022
          %v3344 = vunpack.c.l.b16 %v3023
          %v3345 = vunpack.c.l.b16 %v3024
          %v3346 = vunpack.c.l.b16 %v3025
          %v3347 = vunpack.c.l.b16 %v3026
          %v3348 = vunpack.c.l.b16 %v3027
          %v3349 = vunpack.c.l.b16 %v3028
          %v3350 = vunpack.c.l.b16 %v3029
          %v3351 = vunpack.c.l.b16 %v3030
          %v3352 = vunpack.c.l.b16 %v3031
          %v3353 = vunpack.c.l.b16 %v3032
          %v3354 = vunpack.c.l.b16 %v3033
          %v3355 = vunpack.c.l.b16 %v3034
          %v3356 = vunpack.c.l.b16 %v3035
          %v3357 = vunpack.c.l.b16 %v3036
          %v3358 = vunpack.c.l.b16 %v3037
          %v3359 = vunpack.c.l.b16 %v3038
          %v3360 = vunpack.c.l.b16 %v3039
          %v3361 = vunpack.c.l.b16 %v3040
          %v3362 = vunpack.c.l.b16 %v3041
          %v3363 = vunpack.c.l.b16 %v3042
          %v3364 = vunpack.c.l.b16 %v3043
          %v3365 = vunpack.c.l.b16 %v3044
          %v3366 = vunpack.c.l.b16 %v3045
          %v3367 = vunpack.c.l.b16 %v3046
          %v3368 = vunpack.c.l.b16 %v3047
          %v3369 = vunpack.c.l.b16 %v3048
          %v3370 = vunpack.c.l.b16 %v3049
          %v3371 = vunpack.c.l.b16 %v3050
          %v3372 = vunpack.c.l.b16 %v3051
          %v3373 = vunpack.c.l.b16 %v3052
          %v3374 = vunpack.c.l.b16 %v3053
          %v3375 = vunpack.c.l.b16 %v3054
          %v3376 = vunpack.c.l.b16 %v3055
          %v3377 = vunpack.c.l.b16 %v3056
          %v3378 = vunpack.c.l.b16 %v3057
          %v3379 = vunpack.c.l.b16 %v3058
          %v3380 = vunpack.c.l.b16 %v3059
          %v3381 = vunpack.c.l.b16 %v3060
          %v3382 = vunpack.c.l.b16 %v3061
          %v3383 = vunpack.c.l.b16 %v3062
          %v3384 = vunpack.c.l.b16 %v3063
          %v3385 = vunpack.c.l.b16 %v3064
          %v3386 = vunpack.c.l.b16 %v3065
          %v3387 = vunpack.c.l.b16 %v3066
          %v3388 = vunpack.c.l.b16 %v3067
          %v3389 = vunpack.c.l.b16 %v3068
          %v3390 = vunpack.c.l.b16 %v3069
          %v3391 = vunpack.c.l.b16 %v3070
          %v3392 = vunpack.c.l.b16 %v3071
          %v3393 = vunpack.c.l.b16 %v3072
          %v3394 = vunpack.c.l.b16 %v3073
          %v3395 = vunpack.c.l.b16 %v3074
          %v3396 = vunpack.c.l.b16 %v3075
          %v3397 = vunpack.c.l.b16 %v3076
          %v3398 = vunpack.c.l.b16 %v3077
          %v3399 = vunpack.c.l.b16 %v3078
          %v3400 = vunpack.c.l.b16 %v3079
          %v3401 = vunpack.c.l.b16 %v3080
          %v3402 = vunpack.c.l.b16 %v3081
          %v3403 = vunpack.c.l.b16 %v3082
          %v3404 = vunpack.c.l.b16 %v3083
          %v3405 = vunpack.c.l.b16 %v3084
          %v3406 = vunpack.c.l.b16 %v3085
          %v3407 = vunpack.c.l.b16 %v3086
          %v3408 = vunpack.c.l.b16 %v3087
          %v3409 = vunpack.c.l.b16 %v3088
          %v3410 = vunpack.c.l.b16 %v3089
          %v3411 = vunpack.c.l.b16 %v3090
          %v3412 = vunpack.c.l.b16 %v3091
          %v3413 = vunpack.c.l.b16 %v3092
          %v3414 = vunpack.c.l.b16 %v3093
          %v3415 = vunpack.c.l.b16 %v3094
          %v3416 = vunpack.c.l.b16 %v3095
          %v3417 = vunpack.c.l.b16 %v3096
          %v3418 = vunpack.c.l.b16 %v3097
          %v3419 = vunpack.c.l.b16 %v3098
          %v3420 = vunpack.c.l.b16 %v3099
          %v3421 = vunpack.c.l.b16 %v3100
          %v3422 = vunpack.c.l.b16 %v3101
          %v3423 = vunpack.c.l.b16 %v3102
          %v3424 = vunpack.c.l.b16 %v3103
          %v3425 = vunpack.c.l.b16 %v3104
          %v3426 = vunpack.c.l.b16 %v3105
          %v3427 = vunpack.c.l.b16 %v3106
          %v3428 = vunpack.c.l.b16 %v3107
          %v3429 = vunpack.c.l.b16 %v3108
          %v3430 = vunpack.c.l.b16 %v3109
          %v3431 = vunpack.c.l.b16 %v3110
          %v3432 = vunpack.c.l.b16 %v3111
          %v3433 = vunpack.c.l.b16 %v3112
          %v3434 = vunpack.c.l.b16 %v3113
          %v3435 = vunpack.c.l.b16 %v3114
          %v3436 = vunpack.c.l.b16 %v3115
          %v3437 = vunpack.c.l.b16 %v3116
          %v3438 = vunpack.c.l.b16 %v3117
          %v3439 = vunpack.c.l.b16 %v3118
          %v3440 = vunpack.c.l.b16 %v3119
          %v3441 = vunpack.c.l.b16 %v3120
          %v3442 = vunpack.c.l.b16 %v3121
          %v3443 = vunpack.c.l.b16 %v3122
          %v3444 = vunpack.c.l.b16 %v3123
          %v3445 = vunpack.c.l.b16 %v3124
          %v3446 = vunpack.c.l.b16 %v3125
          %v3447 = vunpack.c.l.b16 %v3126
          %v3448 = vunpack.c.l.b16 %v3127
          %v3449 = vunpack.c.l.b16 %v3128
          %v3450 = vunpack.c.l.b16 %v3129
          %v3451 = vunpack.c.l.b16 %v3130
          %v3452 = vunpack.c.l.b16 %v3131
          %v3453 = vunpack.c.l.b16 %v3132
          %v3454 = vunpack.c.l.b16 %v3133
          %v3455 = vunpack.c.l.b16 %v3134
          %v3456 = vunpack.c.l.b16 %v3135
          %v3457 = vunpack.c.l.b16 %v3136
          %v3458 = vunpack.c.l.b16 %v3137
          %v3459 = vunpack.c.l.b16 %v3138
          %v3460 = vunpack.c.l.b16 %v3139
          %v3461 = vunpack.c.l.b16 %v3140
          %v3462 = vunpack.c.l.b16 %v3141
          %v3463 = vunpack.c.l.b16 %v3142
          %v3464 = vunpack.c.l.b16 %v3143
          %v3465 = vunpack.c.l.b16 %v3144
          %v3466 = vunpack.c.l.b16 %v3145
          %v3467 = vunpack.c.l.b16 %v3146
          %v3468 = vunpack.c.l.b16 %v3147
          %v3469 = vunpack.c.l.b16 %v3148
          %v3470 = vunpack.c.l.b16 %v3149
          %v3471 = vunpack.c.l.b16 %v3150
          %v3472 = vunpack.c.l.b16 %v3151
          %v3473 = vunpack.c.l.b16 %v3152
          %v3474 = vunpack.c.l.b16 %v3153
          %v3475 = vunpack.c.l.b16 %v3154
          %v3476 = vunpack.c.l.b16 %v3155
          %v3477 = vunpack.c.l.b16 %v3156
          %v3478 = vunpack.c.l.b16 %v3157
          %v3479 = vunpack.c.l.b16 %v3158
          %v3480 = vunpack.c.l.b16 %v3159
          %v3481 = vunpack.c.l.b16 %v3160
          %v3482 = vunpack.c.l.b16 %v3161
          %v3483 = vunpack.c.l.b16 %v3162
          %v3484 = vunpack.c.l.b16 %v3163
          %v3485 = vunpack.c.l.b16 %v3164
          %v3486 = vunpack.c.l.b16 %v3165
          %v3487 = vunpack.c.l.b16 %v3166
          %v3488 = vunpack.c.l.b16 %v3167
          %v3489 = vunpack.c.l.b16 %v3168
          %v3490 = vunpack.c.l.b16 %v3169
          %v3491 = vunpack.c.l.b16 %v3170
          %v3492 = vunpack.c.l.b16 %v3171
          %v3493 = vunpack.c.l.b16 %v3172
          %v3494 = vpack.c.b16 %v3335, %v3334
          %v3495 = vpack.c.b16 %v3337, %v3336
          %v3496 = vpack.c.b16 %v3339, %v3338
          %v3497 = vpack.c.b16 %v3341, %v3340
          %v3498 = vpack.c.b16 %v3343, %v3342
          %v3499 = vpack.c.b16 %v3345, %v3344
          %v3500 = vpack.c.b16 %v3347, %v3346
          %v3501 = vpack.c.b16 %v3349, %v3348
          %v3502 = vpack.c.b16 %v3351, %v3350
          %v3503 = vpack.c.b16 %v3353, %v3352
          %v3504 = vpack.c.b16 %v3355, %v3354
          %v3505 = vpack.c.b16 %v3357, %v3356
          %v3506 = vpack.c.b16 %v3359, %v3358
          %v3507 = vpack.c.b16 %v3361, %v3360
          %v3508 = vpack.c.b16 %v3363, %v3362
          %v3509 = vpack.c.b16 %v3365, %v3364
          %v3510 = vpack.c.b16 %v3367, %v3366
          %v3511 = vpack.c.b16 %v3369, %v3368
          %v3512 = vpack.c.b16 %v3371, %v3370
          %v3513 = vpack.c.b16 %v3373, %v3372
          %v3514 = vpack.c.b16 %v3375, %v3374
          %v3515 = vpack.c.b16 %v3377, %v3376
          %v3516 = vpack.c.b16 %v3379, %v3378
          %v3517 = vpack.c.b16 %v3381, %v3380
          %v3518 = vpack.c.b16 %v3383, %v3382
          %v3519 = vpack.c.b16 %v3385, %v3384
          %v3520 = vpack.c.b16 %v3387, %v3386
          %v3521 = vpack.c.b16 %v3389, %v3388
          %v3522 = vpack.c.b16 %v3391, %v3390
          %v3523 = vpack.c.b16 %v3393, %v3392
          %v3524 = vpack.c.b16 %v3395, %v3394
          %v3525 = vpack.c.b16 %v3397, %v3396
          %v3526 = vpack.c.b16 %v3399, %v3398
          %v3527 = vpack.c.b16 %v3401, %v3400
          %v3528 = vpack.c.b16 %v3403, %v3402
          %v3529 = vpack.c.b16 %v3405, %v3404
          %v3530 = vpack.c.b16 %v3407, %v3406
          %v3531 = vpack.c.b16 %v3409, %v3408
          %v3532 = vpack.c.b16 %v3411, %v3410
          %v3533 = vpack.c.b16 %v3413, %v3412
          %v3534 = vpack.c.b16 %v3415, %v3414
          %v3535 = vpack.c.b16 %v3417, %v3416
          %v3536 = vpack.c.b16 %v3419, %v3418
          %v3537 = vpack.c.b16 %v3421, %v3420
          %v3538 = vpack.c.b16 %v3423, %v3422
          %v3539 = vpack.c.b16 %v3425, %v3424
          %v3540 = vpack.c.b16 %v3427, %v3426
          %v3541 = vpack.c.b16 %v3429, %v3428
          %v3542 = vpack.c.b16 %v3431, %v3430
          %v3543 = vpack.c.b16 %v3433, %v3432
          %v3544 = vpack.c.b16 %v3435, %v3434
          %v3545 = vpack.c.b16 %v3437, %v3436
          %v3546 = vpack.c.b16 %v3439, %v3438
          %v3547 = vpack.c.b16 %v3441, %v3440
          %v3548 = vpack.c.b16 %v3443, %v3442
          %v3549 = vpack.c.b16 %v3445, %v3444
          %v3550 = vpack.c.b16 %v3447, %v3446
          %v3551 = vpack.c.b16 %v3449, %v3448
          %v3552 = vpack.c.b16 %v3451, %v3450
          %v3553 = vpack.c.b16 %v3453, %v3452
          %v3554 = vpack.c.b16 %v3455, %v3454
          %v3555 = vpack.c.b16 %v3457, %v3456
          %v3556 = vpack.c.b16 %v3459, %v3458
          %v3557 = vpack.c.b16 %v3461, %v3460
          %v3558 = vpack.c.b16 %v3463, %v3462
          %v3559 = vpack.c.b16 %v3465, %v3464
          %v3560 = vpack.c.b16 %v3467, %v3466
          %v3561 = vpack.c.b16 %v3469, %v3468
          %v3562 = vpack.c.b16 %v3471, %v3470
          %v3563 = vpack.c.b16 %v3473, %v3472
          %v3564 = vpack.c.b16 %v3475, %v3474
          %v3565 = vpack.c.b16 %v3477, %v3476
          %v3566 = vpack.c.b16 %v3479, %v3478
          %v3567 = vpack.c.b16 %v3481, %v3480
          %v3568 = vpack.c.b16 %v3483, %v3482
          %v3569 = vpack.c.b16 %v3485, %v3484
          %v3570 = vpack.c.b16 %v3487, %v3486
          %v3571 = vpack.c.b16 %v3489, %v3488
          %v3572 = vpack.c.b16 %v3491, %v3490
          %v3573 = vpack.c.b16 %v3493, %v3492
          %3654 = vmatprep.subr.bf16.mxu0 0
          %3655 = vmatpush1.bf16.msra.mxu0 %v3494
          %3656 = vmatprep.subr.bf16.mxu0 0
          %3657 = vmatpush1.bf16.msra.mxu0 %v3495
          %3658 = vmatprep.subr.bf16.mxu0 0
          %3659 = vmatpush1.bf16.msra.mxu0 %v3496
          %3660 = vmatprep.subr.bf16.mxu0 0
          %3661 = vmatpush1.bf16.msra.mxu0 %v3497
          %3662 = vmatprep.subr.bf16.mxu0 0
          %3663 = vmatpush1.bf16.msra.mxu0 %v3498
          %3664 = vmatprep.subr.bf16.mxu0 0
          %3665 = vmatpush1.bf16.msra.mxu0 %v3499
          %3666 = vmatprep.subr.bf16.mxu0 0
          %3667 = vmatpush1.bf16.msra.mxu0 %v3500
          %3668 = vmatprep.subr.bf16.mxu0 0
          %3669 = vmatpush1.bf16.msra.mxu0 %v3501
          %3670 = vmatprep.subr.bf16.mxu0 0
          %3671 = vmatpush1.bf16.msra.mxu0 %v3502
          %3672 = vmatprep.subr.bf16.mxu0 0
          %3673 = vmatpush1.bf16.msra.mxu0 %v3503
          %3674 = vmatprep.subr.bf16.mxu0 0
          %3675 = vmatpush1.bf16.msra.mxu0 %v3504
          %3676 = vmatprep.subr.bf16.mxu0 0
          %3677 = vmatpush1.bf16.msra.mxu0 %v3505
          %3678 = vmatprep.subr.bf16.mxu0 0
          %3679 = vmatpush1.bf16.msra.mxu0 %v3506
          %3680 = vmatprep.subr.bf16.mxu0 0
          %3681 = vmatpush1.bf16.msra.mxu0 %v3507
          %3682 = vmatprep.subr.bf16.mxu0 0
          %3683 = vmatpush1.bf16.msra.mxu0 %v3508
          %3684 = vmatprep.subr.bf16.mxu0 0
          %3685 = vmatpush1.bf16.msra.mxu0 %v3509
          %3686 = vmatprep.mubr.bf16.mxu0 %v3004
          %3687 = vmatmul.mubr.bf16.gmra.mrb[0].mxu0 %v3003
          %v3688 = vpop.f32.mrb[0].mxu0
          %v3689 = vadd.f32 %v3173, %v3688
          %v3690 = vpop.f32.mrb[0].mxu0
          %v3691 = vpop.f32.mrb[0].mxu0
          %v3692 = vpop.f32.mrb[0].mxu0
          %3693 = vdwg.mxu0
          %3694 = vmatprep.subr.bf16.mxu0 0
          %3695 = vmatpush1.bf16.msra.mxu0 %v3510
          %3696 = vmatprep.subr.bf16.mxu0 0
          %3697 = vmatpush1.bf16.msra.mxu0 %v3511
          %3698 = vmatprep.subr.bf16.mxu0 0
          %3699 = vmatpush1.bf16.msra.mxu0 %v3512
          %3700 = vmatprep.subr.bf16.mxu0 0
          %3701 = vmatpush1.bf16.msra.mxu0 %v3513
          %3702 = vmatprep.subr.bf16.mxu0 0
          %3703 = vmatpush1.bf16.msra.mxu0 %v3514
          %3704 = vmatprep.subr.bf16.mxu0 0
          %3705 = vmatpush1.bf16.msra.mxu0 %v3515
          %3706 = vmatprep.subr.bf16.mxu0 0
          %3707 = vmatpush1.bf16.msra.mxu0 %v3516
          %3708 = vmatprep.subr.bf16.mxu0 0
          %3709 = vmatpush1.bf16.msra.mxu0 %v3517
          %3710 = vmatprep.subr.bf16.mxu0 0
          %3711 = vmatpush1.bf16.msra.mxu0 %v3518
          %3712 = vmatprep.subr.bf16.mxu0 0
          %3713 = vmatpush1.bf16.msra.mxu0 %v3519
          %3714 = vmatprep.subr.bf16.mxu0 0
          %3715 = vmatpush1.bf16.msra.mxu0 %v3520
          %3716 = vmatprep.subr.bf16.mxu0 0
          %3717 = vmatpush1.bf16.msra.mxu0 %v3521
          %3718 = vmatprep.subr.bf16.mxu0 0
          %3719 = vmatpush1.bf16.msra.mxu0 %v3522
          %3720 = vmatprep.subr.bf16.mxu0 0
          %3721 = vmatpush1.bf16.msra.mxu0 %v3523
          %3722 = vmatprep.subr.bf16.mxu0 0
          %3723 = vmatpush1.bf16.msra.mxu0 %v3524
          %3724 = vmatprep.subr.bf16.mxu0 0
          %3725 = vmatpush1.bf16.msra.mxu0 %v3525
          %3726 = vmatprep.mubr.bf16.mxu0 %v3006
          %3727 = vmatmul.mubr.bf16.gmra.mrb[0].mxu0 %v3005
          %v3728 = vpop.f32.mrb[0].mxu0
          %v3729 = vadd.f32 %v3689, %v3728
          %v3730 = vpop.f32.mrb[0].mxu0
          %v3731 = vpop.f32.mrb[0].mxu0
          %v3732 = vpop.f32.mrb[0].mxu0
          %3733 = vdwg.mxu0
          %3734 = vmatprep.subr.bf16.mxu0 0
          %3735 = vmatpush1.bf16.msra.mxu0 %v3526
          %3736 = vmatprep.subr.bf16.mxu0 0
          %3737 = vmatpush1.bf16.msra.mxu0 %v3527
          %3738 = vmatprep.subr.bf16.mxu0 0
          %3739 = vmatpush1.bf16.msra.mxu0 %v3528
          %3740 = vmatprep.subr.bf16.mxu0 0
          %3741 = vmatpush1.bf16.msra.mxu0 %v3529
          %3742 = vmatprep.subr.bf16.mxu0 0
          %3743 = vmatpush1.bf16.msra.mxu0 %v3530
          %3744 = vmatprep.subr.bf16.mxu0 0
          %3745 = vmatpush1.bf16.msra.mxu0 %v3531
          %3746 = vmatprep.subr.bf16.mxu0 0
          %3747 = vmatpush1.bf16.msra.mxu0 %v3532
          %3748 = vmatprep.subr.bf16.mxu0 0
          %3749 = vmatpush1.bf16.msra.mxu0 %v3533
          %3750 = vmatprep.subr.bf16.mxu0 0
          %3751 = vmatpush1.bf16.msra.mxu0 %v3534
          %3752 = vmatprep.subr.bf16.mxu0 0
          %3753 = vmatpush1.bf16.msra.mxu0 %v3535
          %3754 = vmatprep.subr.bf16.mxu0 0
          %3755 = vmatpush1.bf16.msra.mxu0 %v3536
          %3756 = vmatprep.subr.bf16.mxu0 0
          %3757 = vmatpush1.bf16.msra.mxu0 %v3537
          %3758 = vmatprep.subr.bf16.mxu0 0
          %3759 = vmatpush1.bf16.msra.mxu0 %v3538
          %3760 = vmatprep.subr.bf16.mxu0 0
          %3761 = vmatpush1.bf16.msra.mxu0 %v3539
          %3762 = vmatprep.subr.bf16.mxu0 0
          %3763 = vmatpush1.bf16.msra.mxu0 %v3540
          %3764 = vmatprep.subr.bf16.mxu0 0
          %3765 = vmatpush1.bf16.msra.mxu0 %v3541
          %3766 = vmatprep.mubr.bf16.mxu0 %v3008
          %3767 = vmatmul.mubr.bf16.gmra.mrb[0].mxu0 %v3007
          %v3768 = vpop.f32.mrb[0].mxu0
          %v3769 = vadd.f32 %v3729, %v3768
          %v3770 = vpop.f32.mrb[0].mxu0
          %v3771 = vpop.f32.mrb[0].mxu0
          %v3772 = vpop.f32.mrb[0].mxu0
          %3773 = vdwg.mxu0
          %3774 = vmatprep.subr.bf16.mxu0 0
          %3775 = vmatpush1.bf16.msra.mxu0 %v3542
          %3776 = vmatprep.subr.bf16.mxu0 0
          %3777 = vmatpush1.bf16.msra.mxu0 %v3543
          %3778 = vmatprep.subr.bf16.mxu0 0
          %3779 = vmatpush1.bf16.msra.mxu0 %v3544
          %3780 = vmatprep.subr.bf16.mxu0 0
          %3781 = vmatpush1.bf16.msra.mxu0 %v3545
          %3782 = vmatprep.subr.bf16.mxu0 0
          %3783 = vmatpush1.bf16.msra.mxu0 %v3546
          %3784 = vmatprep.subr.bf16.mxu0 0
          %3785 = vmatpush1.bf16.msra.mxu0 %v3547
          %3786 = vmatprep.subr.bf16.mxu0 0
          %3787 = vmatpush1.bf16.msra.mxu0 %v3548
          %3788 = vmatprep.subr.bf16.mxu0 0
          %3789 = vmatpush1.bf16.msra.mxu0 %v3549
          %3790 = vmatprep.subr.bf16.mxu0 0
          %3791 = vmatpush1.bf16.msra.mxu0 %v3550
          %3792 = vmatprep.subr.bf16.mxu0 0
          %3793 = vmatpush1.bf16.msra.mxu0 %v3551
          %3794 = vmatprep.subr.bf16.mxu0 0
          %3795 = vmatpush1.bf16.msra.mxu0 %v3552
          %3796 = vmatprep.subr.bf16.mxu0 0
          %3797 = vmatpush1.bf16.msra.mxu0 %v3553
          %3798 = vmatprep.subr.bf16.mxu0 0
          %3799 = vmatpush1.bf16.msra.mxu0 %v3554
          %3800 = vmatprep.subr.bf16.mxu0 0
          %3801 = vmatpush1.bf16.msra.mxu0 %v3555
          %3802 = vmatprep.subr.bf16.mxu0 0
          %3803 = vmatpush1.bf16.msra.mxu0 %v3556
          %3804 = vmatprep.subr.bf16.mxu0 0
          %3805 = vmatpush1.bf16.msra.mxu0 %v3557
          %3806 = vmatprep.mubr.bf16.mxu0 %v3010
          %3807 = vmatmul.mubr.bf16.gmra.mrb[0].mxu0 %v3009
          %v3808 = vpop.f32.mrb[0].mxu0
          %v3809 = vadd.f32 %v3769, %v3808
          %v3810 = vpop.f32.mrb[0].mxu0
          %v3811 = vpop.f32.mrb[0].mxu0
          %v3812 = vpop.f32.mrb[0].mxu0
          %3813 = vdwg.mxu0
          %3814 = vmatprep.subr.bf16.mxu0 0
          %3815 = vmatpush1.bf16.msra.mxu0 %v3558
          %3816 = vmatprep.subr.bf16.mxu0 0
          %3817 = vmatpush1.bf16.msra.mxu0 %v3559
          %3818 = vmatprep.subr.bf16.mxu0 0
          %3819 = vmatpush1.bf16.msra.mxu0 %v3560
          %3820 = vmatprep.subr.bf16.mxu0 0
          %3821 = vmatpush1.bf16.msra.mxu0 %v3561
          %3822 = vmatprep.subr.bf16.mxu0 0
          %3823 = vmatpush1.bf16.msra.mxu0 %v3562
          %3824 = vmatprep.subr.bf16.mxu0 0
          %3825 = vmatpush1.bf16.msra.mxu0 %v3563
          %3826 = vmatprep.subr.bf16.mxu0 0
          %3827 = vmatpush1.bf16.msra.mxu0 %v3564
          %3828 = vmatprep.subr.bf16.mxu0 0
          %3829 = vmatpush1.bf16.msra.mxu0 %v3565
          %3830 = vmatprep.subr.bf16.mxu0 0
          %3831 = vmatpush1.bf16.msra.mxu0 %v3566
          %3832 = vmatprep.subr.bf16.mxu0 0
          %3833 = vmatpush1.bf16.msra.mxu0 %v3567
          %3834 = vmatprep.subr.bf16.mxu0 0
          %3835 = vmatpush1.bf16.msra.mxu0 %v3568
          %3836 = vmatprep.subr.bf16.mxu0 0
          %3837 = vmatpush1.bf16.msra.mxu0 %v3569
          %3838 = vmatprep.subr.bf16.mxu0 0
          %3839 = vmatpush1.bf16.msra.mxu0 %v3570
          %3840 = vmatprep.subr.bf16.mxu0 0
          %3841 = vmatpush1.bf16.msra.mxu0 %v3571
          %3842 = vmatprep.subr.bf16.mxu0 0
          %3843 = vmatpush1.bf16.msra.mxu0 %v3572
          %3844 = vmatprep.subr.bf16.mxu0 0
          %3845 = vmatpush1.bf16.msra.mxu0 %v3573
          %3846 = vmatprep.mubr.bf16.mxu0 %v3012
          %3847 = vmatmul.mubr.bf16.gmra.mrb[0].mxu0 %v3011
          %v3848 = vpop.f32.mrb[0].mxu0
          %v3849 = vadd.f32 %v3809, %v3848
          %v3850 = vpop.f32.mrb[0].mxu0
          %v3851 = vpop.f32.mrb[0].mxu0
          %v3852 = vpop.f32.mrb[0].mxu0
          %3853 = vdwg.mxu0
          %3854 = vst [vmem:[%s293] sm:$0x1] %v3849
        $region56: #{single_path_supernet_forward.1} parent=47 // pred_fallthru
          _
        %s3855 = sand.u32 %s195, 1
        %s3856 = scalar_lea.sflag [#allocation4], %s3855
        %s3857 = sand.u32 %s195, 1
        %s3858 = scalar_lea.vmem [#allocation3], %s3857
        // Predicated region
        $region57: #{single_path_supernet_forward.1} parent=47 // pred_check
          %p3859 = pneg %p205
        $region58: #{single_path_supernet_forward.1} parent=47 // pred_check_branch
          %3861 = sbr.rel (%p3859) target = $region60
        $region59: #{single_path_supernet_forward.1} parent=47 // pred_region
          %s3863 = ssub.s32 16, 16
          %3864 = vsyncadd %s3856, %s3863
          %s3865 = smul.addr %s25, 16
          %s3866 = scalar_lea.hbm %s7, %s3865
          %s3868 = sshll.u32 %s3858, 4
          %s3869 = int_to_ptr.vmem [resolvable:$true] %s3868
          %3871 = dma.vmem_to_hbm [thread:$0]  %s3869, 16, %s3866, %s3856
        $region60: #{single_path_supernet_forward.1} parent=47 // pred_fallthru
          _
      $region48: #{single_path_supernet_forward.1} parent=5 // pred_fallthru
        _
      %p3872 = scmp.le.s32.totalorder 2, %s16
      // Predicated region
      $region61: #{single_path_supernet_forward.1} parent=5 // pred_check
        %p3873 = pneg %p3872
      $region62: #{single_path_supernet_forward.1} parent=5 // pred_check_branch
        %3875 = sbr.rel (%p3873) target = $region64
      $region63: #{single_path_supernet_forward.1} parent=5 // pred_region
        %s3876 = ssub.s32 %s16, 2
        // Predicated region
        $region65: #{single_path_supernet_forward.1} parent=63 // pred_check
          %p3877 = pneg %p211
        $region66: #{single_path_supernet_forward.1} parent=63 // pred_check_branch
          %3879 = sbr.rel (%p3877) target = $region68
        $region67: #{single_path_supernet_forward.1} parent=63 // pred_region
          %s3880 = sand.u32 %s196, 1
          %s3881 = scalar_lea.sflag [#allocation4], %s3880
          %s3882 = sand.u32 %s196, 1
          %s3883 = scalar_lea.vmem [#allocation3], %s3882
          %3884 = dma.done %s3881, 16
        $region68: #{single_path_supernet_forward.1} parent=63 // pred_fallthru
          _
      $region64: #{single_path_supernet_forward.1} parent=5 // pred_fallthru
        _
    $region6: #{single_path_supernet_forward.1} parent=1 // loop_footer
      %s20 = sadd.s32 1, %s16
    $region7: #{single_path_supernet_forward.1} parent=1 // loop_footer_branch
      %15 = sbr.rel target = $region3
    $region8: #{single_path_supernet_forward.1} parent=1 // loop_exit
      _
    %3885 = vsyncpa [#allocation4], 1
    %s3886 = scalar_lea.sflag [#allocation4], 1
    %3887 = vsyncpa %s3886, 1

</llo_original>
